<compile_context>
chip_gen: v7x
topology: tpu7x:2x2x1
jax: 0.10.0
libtpu: 0.0.40
codegen_flags: <defaults>
</compile_context>

<pallas_src>
import functools

import jax
import jax.numpy as jnp
from jax import lax
from jax.experimental import pallas as pl
from jax.experimental.pallas import tpu as pltpu

# ---- module hyper-params (dim must be divisible by num_heads) ----
DIM = 32
NUM_HEADS = 4
HEAD_DIM = DIM // NUM_HEADS
MLP_HIDDEN = int(DIM * 4.0)
LN_EPS = 1e-5
SCALE = HEAD_DIM ** (-0.5)

# rows of the packed (8, 128) bias slab
_ROW_BQKV, _ROW_BPROJ, _ROW_BFC1, _ROW_BFC2 = 0, 1, 2, 3


def _normalize(x):
    # LayerNorm without affine (gamma/beta are folded into the next matmul).
    mu = jnp.mean(x, axis=-1, keepdims=True)
    xc = x - mu
    var = jnp.mean(xc * xc, axis=-1, keepdims=True)
    return xc * lax.rsqrt(var + LN_EPS)


def _gelu_exact(x):
    # nn.GELU() default is the exact (erf) formulation
    return 0.5 * x * (1.0 + lax.erf(x * (2.0 ** -0.5)))


def block_kernel(x_ref, wattn_ref, wfc1_ref, wfc2_ref, vecs_ref, o_ref, *,
                 batch_tile, seq_len):
    rows = batch_tile * seq_len
    x = x_ref[...].astype(jnp.float32)                    # (rows, C) flat slab

    # Packed bias slab: one (8,128) vreg load, sliced once per grid step.
    V = vecs_ref[...]
    bqkv = V[_ROW_BQKV:_ROW_BQKV + 1, 0:3 * DIM]          # (1, 96)
    bproj = V[_ROW_BPROJ:_ROW_BPROJ + 1, 0:DIM]
    bfc1 = V[_ROW_BFC1:_ROW_BFC1 + 1, 0:MLP_HIDDEN]
    bfc2 = V[_ROW_BFC2:_ROW_BFC2 + 1, 0:DIM]

    # One lane-dense (32, 128) slab: [ wq | wk | wv | wproj ] (LN1 + scale
    # already folded into wq/wk/wv).
    W = wattn_ref[...]
    wqkv = W[:, 0:3 * DIM]                                # (32, 96)
    wproj = W[:, 3 * DIM:4 * DIM]                         # (32, 32)

    # ---------------- attention branch ----------------
    xn = _normalize(x)                                    # LN1 (affine folded)
    qkv = jnp.dot(xn, wqkv, preferred_element_type=jnp.float32) + bqkv
    qkv3 = qkv.reshape(batch_tile, seq_len, 3 * DIM)      # (BT, N, 96)

    head_outs = []
    for h in range(NUM_HEADS):                            # static unroll (H=4)
        lo = h * HEAD_DIM
        qh = qkv3[:, :, lo:lo + HEAD_DIM]                 # (BT, N, hd)
        kh = qkv3[:, :, DIM + lo:DIM + lo + HEAD_DIM]
        vh = qkv3[:, :, 2 * DIM + lo:2 * DIM + lo + HEAD_DIM]
        s = jnp.einsum("bqd,bkd->bqk", qh, kh,
                       preferred_element_type=jnp.float32)     # (BT, N, N)
        s = s - jnp.max(s, axis=-1, keepdims=True)
        p = jnp.exp(s)
        denom = jnp.sum(p, axis=-1, keepdims=True)
        p = p * pl.reciprocal(denom, approx=False)        # EUP, keeps f32 parity
        head_outs.append(jnp.einsum("bqk,bkd->bqd", p, vh,
                                    preferred_element_type=jnp.float32))

    # Concatenate heads -> one K=32 projection matmul (instead of 4x K=8).
    o_heads = jnp.concatenate(head_outs, axis=-1).reshape(rows, DIM)
    attn_out = jnp.dot(o_heads, wproj, preferred_element_type=jnp.float32) + bproj
    x1 = x + attn_out                                     # first residual

    # ---------------- MLP branch ----------------
    xn2 = _normalize(x1)                                  # LN2 (affine folded)
    f1 = jnp.dot(xn2, wfc1_ref[...],
                 preferred_element_type=jnp.float32) + bfc1
    f1 = _gelu_exact(f1)
    f2 = jnp.dot(f1, wfc2_ref[...],
                 preferred_element_type=jnp.float32) + bfc2

    o_ref[...] = (x1 + f2).astype(o_ref.dtype)            # second residual


def pack_params(p):
    """One-time parameter packing / folding (outside the kernel hot path).

    Folds LayerNorm affine params and the attention scale into the following
    Linear weights and packs everything into 4 lane-dense buffers.
    """
    ln1w, ln1b = p["ln1_w"], p["ln1_b"]                   # (1, C)
    ln2w, ln2b = p["ln2_w"], p["ln2_b"]

    qkv_w = p["qkv_w"]                                    # (C, 3C): [q | k | v]
    wq = qkv_w[:, 0:DIM]
    wk = qkv_w[:, DIM:2 * DIM]
    wv = qkv_w[:, 2 * DIM:3 * DIM]

    g1 = ln1w.reshape(DIM, 1)
    wq_f = (g1 * wq) * SCALE                              # scale folded into q
    bq_f = (ln1b @ wq) * SCALE
    wk_f = g1 * wk
    bk_f = ln1b @ wk
    wv_f = g1 * wv
    bv_f = ln1b @ wv

    g2 = ln2w.reshape(DIM, 1)
    wfc1_f = g2 * p["fc1_w"]                              # (C, 4C)
    bfc1_f = p["fc1_b"] + ln2b @ p["fc1_w"]               # (1, 4C)

    # Single fully lane-dense (32, 128) attention-weight slab.
    w_attn = jnp.concatenate([wq_f, wk_f, wv_f, p["proj_w"]], axis=1)

    vecs = jnp.zeros((8, 128), jnp.float32)
    vecs = vecs.at[_ROW_BQKV, 0:DIM].set(bq_f[0])
    vecs = vecs.at[_ROW_BQKV, DIM:2 * DIM].set(bk_f[0])
    vecs = vecs.at[_ROW_BQKV, 2 * DIM:3 * DIM].set(bv_f[0])
    vecs = vecs.at[_ROW_BPROJ, 0:DIM].set(p["proj_b"][0])
    vecs = vecs.at[_ROW_BFC1, 0:MLP_HIDDEN].set(bfc1_f[0])
    vecs = vecs.at[_ROW_BFC2, 0:DIM].set(p["fc2_b"][0])

    return {"w_attn": w_attn, "w_fc1": wfc1_f, "w_fc2": p["fc2_w"], "vecs": vecs}


def vit_block(x, packed):
    """x: (B, N, C) float32.  packed: output of pack_params()."""
    B, N, C = x.shape
    assert C == DIM

    # BATCH_TILE: keep >= 2 grid steps when possible so v7x's 2 TensorCores
    # both get work; the whole tile is processed as one (BT*N, C) 2-D slab.
    if B >= 2 and B % 2 == 0:
        batch_tile = B // 2
    else:
        batch_tile = B
    n_steps = B // batch_tile
    rows = batch_tile * N

    x2 = x.reshape(B * N, C)                              # wrapper-side flatten

    in_specs = [
        pl.BlockSpec((rows, C), lambda i: (i, 0)),
        pl.BlockSpec((DIM, 4 * DIM), lambda i: (0, 0)),
        pl.BlockSpec((DIM, MLP_HIDDEN), lambda i: (0, 0)),
        pl.BlockSpec((MLP_HIDDEN, DIM), lambda i: (0, 0)),
        pl.BlockSpec((8, 128), lambda i: (0, 0)),
    ]
    out_spec = pl.BlockSpec((rows, C), lambda i: (i, 0))

    out2 = pl.pallas_call(
        functools.partial(block_kernel, batch_tile=batch_tile, seq_len=N),
        out_shape=jax.ShapeDtypeStruct((B * N, C), x.dtype),
        grid=(n_steps,),
        in_specs=in_specs,
        out_specs=out_spec,
        compiler_params=pltpu.CompilerParams(
            dimension_semantics=("parallel",)),
    )(x2, packed["w_attn"], packed["w_fc1"], packed["w_fc2"], packed["vecs"])
    return out2.reshape(B, N, C)


def init_params(key):
    """Deterministic synthetic weights (PyTorch-Linear-style uniform init)."""
    ks = jax.random.split(key, 8)

    def lin_w(k, fan_in, fan_out):
        bound = 1.0 / (fan_in ** 0.5)
        return jax.random.uniform(k, (fan_in, fan_out), jnp.float32, -bound, bound)

    def lin_b(k, fan_in, fan_out):
        bound = 1.0 / (fan_in ** 0.5)
        return jax.random.uniform(k, (1, fan_out), jnp.float32, -bound, bound)

    return {
        # LayerNorm default init: weight=1, bias=0
        "ln1_w": jnp.ones((1, DIM), jnp.float32),
        "ln1_b": jnp.zeros((1, DIM), jnp.float32),
        "ln2_w": jnp.ones((1, DIM), jnp.float32),
        "ln2_b": jnp.zeros((1, DIM), jnp.float32),
        # Attention (qkv_bias=False -> no qkv bias)
        "qkv_w": lin_w(ks[0], DIM, 3 * DIM),
        "proj_w": lin_w(ks[1], DIM, DIM),
        "proj_b": lin_b(ks[2], DIM, DIM),
        # MLP
        "fc1_w": lin_w(ks[3], DIM, MLP_HIDDEN),
        "fc1_b": lin_b(ks[4], DIM, MLP_HIDDEN),
        "fc2_w": lin_w(ks[5], MLP_HIDDEN, DIM),
        "fc2_b": lin_b(ks[6], MLP_HIDDEN, DIM),
    }


def block_ref(x, p):
    """Pure-JAX reference mirroring the PyTorch forward exactly."""
    B, N, C = x.shape

    def ln(v, w, b):
        mu = jnp.mean(v, axis=-1, keepdims=True)
        var = jnp.mean((v - mu) ** 2, axis=-1, keepdims=True)
        return (v - mu) / jnp.sqrt(var + LN_EPS) * w + b

    h = ln(x, p["ln1_w"], p["ln1_b"])
    qkv = h @ p["qkv_w"]                                  # (B, N, 3C)
    qkv = qkv.reshape(B, N, 3, NUM_HEADS, HEAD_DIM).transpose(2, 0, 3, 1, 4)
    q, k, v = qkv[0], qkv[1], qkv[2]                      # (B, H, N, hd)
    q = q * SCALE
    attn = jnp.einsum("bhnd,bhmd->bhnm", q, k)
    attn = jax.nn.softmax(attn, axis=-1)
    o = jnp.einsum("bhnm,bhmd->bhnd", attn, v)            # (B, H, N, hd)
    o = o.transpose(0, 2, 1, 3).reshape(B, N, C)
    o = o @ p["proj_w"] + p["proj_b"]
    x1 = x + o

    h2 = ln(x1, p["ln2_w"], p["ln2_b"])
    f1 = h2 @ p["fc1_w"] + p["fc1_b"]
    f1 = 0.5 * f1 * (1.0 + lax.erf(f1 / jnp.sqrt(2.0)))
    f2 = f1 @ p["fc2_w"] + p["fc2_b"]
    return x1 + f2


if __name__ == "__main__":
    key = jax.random.PRNGKey(0)
    kx, kp = jax.random.split(key)

    B, N = 8, 8
    x = jax.random.normal(kx, (B, N, DIM), jnp.float32)
    params = init_params(kp)
    packed = pack_params(params)

    out = jax.block_until_ready(vit_block(x, packed))
    ref = jax.block_until_ready(block_ref(x, params))

    assert out.shape == (B, N, DIM), out.shape
    assert jnp.allclose(out, ref, atol=5e-4, rtol=5e-4), (
        float(jnp.max(jnp.abs(out - ref))))
    print("KERNEL_OK")
</pallas_src>

<mosaic_0001>
module attributes {stable_mosaic.version = 11 : i64} {
  func.func @block_kernel(%arg0: i32, %arg1: memref<32x32xf32, #tpu.memory_space<vmem>>, %arg2: memref<32x128xf32, #tpu.memory_space<vmem>>, %arg3: memref<32x128xf32, #tpu.memory_space<vmem>>, %arg4: memref<128x32xf32, #tpu.memory_space<vmem>>, %arg5: memref<8x128xf32, #tpu.memory_space<vmem>>, %arg6: memref<32x32xf32, #tpu.memory_space<vmem>>) attributes {dimension_semantics = [#tpu.dimension_semantics<parallel>], iteration_bounds = array<i64: 2>, scalar_prefetch = 0 : i64, scratch_operands = 0 : i64, tpu.core_type = #tpu.core_type<tc>, window_params = [{transform_indices = @transform_0, window_bounds = array<i64: 32, 32>}, {pipeline_mode = #tpu.pipeline_mode<synchronous>, transform_indices = @transform_1, window_bounds = array<i64: 32, 128>}, {pipeline_mode = #tpu.pipeline_mode<synchronous>, transform_indices = @transform_2, window_bounds = array<i64: 32, 128>}, {pipeline_mode = #tpu.pipeline_mode<synchronous>, transform_indices = @transform_3, window_bounds = array<i64: 128, 32>}, {pipeline_mode = #tpu.pipeline_mode<synchronous>, transform_indices = @transform_4, window_bounds = array<i64: 8, 128>}, {transform_indices = @transform_5, window_bounds = array<i64: 32, 32>}]} {
    %c0 = arith.constant 0 : index
    %c0_0 = arith.constant 0 : index
    %0 = vector.load %arg1[%c0, %c0_0] : memref<32x32xf32, #tpu.memory_space<vmem>>, vector<32x32xf32>
    %c0_1 = arith.constant 0 : index
    %c0_2 = arith.constant 0 : index
    %1 = vector.load %arg5[%c0_1, %c0_2] : memref<8x128xf32, #tpu.memory_space<vmem>>, vector<8x128xf32>
    %2 = vector.extract_strided_slice %1 {offsets = [0, 0], sizes = [1, 96], strides = [1, 1]} : vector<8x128xf32> to vector<1x96xf32>
    %3 = vector.extract_strided_slice %1 {offsets = [1, 0], sizes = [1, 32], strides = [1, 1]} : vector<8x128xf32> to vector<1x32xf32>
    %4 = vector.extract_strided_slice %1 {offsets = [2, 0], sizes = [1, 128], strides = [1, 1]} : vector<8x128xf32> to vector<1x128xf32>
    %5 = vector.extract_strided_slice %1 {offsets = [3, 0], sizes = [1, 32], strides = [1, 1]} : vector<8x128xf32> to vector<1x32xf32>
    %c0_3 = arith.constant 0 : index
    %c0_4 = arith.constant 0 : index
    %6 = vector.load %arg2[%c0_3, %c0_4] : memref<32x128xf32, #tpu.memory_space<vmem>>, vector<32x128xf32>
    %7 = vector.extract_strided_slice %6 {offsets = [0, 0], sizes = [32, 96], strides = [1, 1]} : vector<32x128xf32> to vector<32x96xf32>
    %8 = vector.extract_strided_slice %6 {offsets = [0, 96], sizes = [32, 32], strides = [1, 1]} : vector<32x128xf32> to vector<32x32xf32>
    %cst = arith.constant dense<0.000000e+00> : vector<32xf32>
    %9 = vector.multi_reduction <add>, %0, %cst [1] : vector<32x32xf32> to vector<32xf32>
    %10 = vector.shape_cast %9 : vector<32xf32> to vector<32x1xf32>
    %cst_5 = arith.constant 3.200000e+01 : f32
    %11 = vector.broadcast %cst_5 : f32 to vector<32x1xf32>
    %12 = arith.divf %10, %11 : vector<32x1xf32>
    %13 = vector.broadcast %12 : vector<32x1xf32> to vector<32x32xf32>
    %14 = arith.subf %0, %13 : vector<32x32xf32>
    %15 = arith.mulf %14, %14 : vector<32x32xf32>
    %cst_6 = arith.constant dense<0.000000e+00> : vector<32xf32>
    %16 = vector.multi_reduction <add>, %15, %cst_6 [1] : vector<32x32xf32> to vector<32xf32>
    %17 = vector.shape_cast %16 : vector<32xf32> to vector<32x1xf32>
    %cst_7 = arith.constant 3.200000e+01 : f32
    %18 = vector.broadcast %cst_7 : f32 to vector<32x1xf32>
    %19 = arith.divf %17, %18 : vector<32x1xf32>
    %cst_8 = arith.constant 9.99999974E-6 : f32
    %20 = vector.broadcast %cst_8 : f32 to vector<32x1xf32>
    %21 = arith.addf %19, %20 : vector<32x1xf32>
    %22 = math.rsqrt %21 : vector<32x1xf32>
    %23 = vector.broadcast %22 : vector<32x1xf32> to vector<32x32xf32>
    %24 = arith.mulf %14, %23 : vector<32x32xf32>
    %cst_9 = arith.constant dense<0.000000e+00> : vector<32x96xf32>
    %25 = tpu.matmul %24, %7, %cst_9 {dimension_numbers = #tpu.dot_dimension_numbers<[1], [0], [0], [1], [0, 0, 1, 1], [], []>} : vector<32x32xf32>, vector<32x96xf32>, vector<32x96xf32> -> vector<32x96xf32>
    %26 = vector.broadcast %2 : vector<1x96xf32> to vector<32x96xf32>
    %27 = arith.addf %25, %26 : vector<32x96xf32>
    %28 = vector.shape_cast %27 : vector<32x96xf32> to vector<4x8x96xf32>
    %29 = vector.extract_strided_slice %28 {offsets = [0, 0, 0], sizes = [4, 8, 8], strides = [1, 1, 1]} : vector<4x8x96xf32> to vector<4x8x8xf32>
    %30 = vector.extract_strided_slice %28 {offsets = [0, 0, 32], sizes = [4, 8, 8], strides = [1, 1, 1]} : vector<4x8x96xf32> to vector<4x8x8xf32>
    %31 = vector.extract_strided_slice %28 {offsets = [0, 0, 64], sizes = [4, 8, 8], strides = [1, 1, 1]} : vector<4x8x96xf32> to vector<4x8x8xf32>
    "tpu.trace_start"() <{level = 10 : i32, message = "bqd,bkd->bqk"}> : () -> ()
    %cst_10 = arith.constant dense<0.000000e+00> : vector<4x8x8xf32>
    %32 = tpu.matmul %29, %30, %cst_10 {dimension_numbers = #tpu.dot_dimension_numbers<[2], [2], [1], [1], [0, 0, 0, 1, 1, 1], [0], [0]>} : vector<4x8x8xf32>, vector<4x8x8xf32>, vector<4x8x8xf32> -> vector<4x8x8xf32>
    "tpu.trace_stop"() : () -> ()
    %cst_11 = arith.constant dense<0xFF800000> : vector<4x8xf32>
    %33 = vector.multi_reduction <maximumf>, %32, %cst_11 [2] : vector<4x8x8xf32> to vector<4x8xf32>
    %34 = vector.shape_cast %33 : vector<4x8xf32> to vector<4x8x1xf32>
    %35 = vector.broadcast %34 : vector<4x8x1xf32> to vector<4x8x8xf32>
    %36 = arith.subf %32, %35 : vector<4x8x8xf32>
    %37 = math.exp %36 : vector<4x8x8xf32>
    %cst_12 = arith.constant dense<0.000000e+00> : vector<4x8xf32>
    %38 = vector.multi_reduction <add>, %37, %cst_12 [2] : vector<4x8x8xf32> to vector<4x8xf32>
    %39 = vector.shape_cast %38 : vector<4x8xf32> to vector<4x8x1xf32>
    %40 = tpu.reciprocal %39 : vector<4x8x1xf32> -> vector<4x8x1xf32>
    %41 = vector.broadcast %40 : vector<4x8x1xf32> to vector<4x8x8xf32>
    %42 = arith.mulf %37, %41 : vector<4x8x8xf32>
    "tpu.trace_start"() <{level = 10 : i32, message = "bqk,bkd->bqd"}> : () -> ()
    %cst_13 = arith.constant dense<0.000000e+00> : vector<4x8x8xf32>
    %43 = tpu.matmul %42, %31, %cst_13 {dimension_numbers = #tpu.dot_dimension_numbers<[2], [1], [1], [2], [0, 0, 0, 1, 1, 2], [0], [0]>} : vector<4x8x8xf32>, vector<4x8x8xf32>, vector<4x8x8xf32> -> vector<4x8x8xf32>
    "tpu.trace_stop"() : () -> ()
    %44 = vector.extract_strided_slice %28 {offsets = [0, 0, 8], sizes = [4, 8, 8], strides = [1, 1, 1]} : vector<4x8x96xf32> to vector<4x8x8xf32>
    %45 = vector.extract_strided_slice %28 {offsets = [0, 0, 40], sizes = [4, 8, 8], strides = [1, 1, 1]} : vector<4x8x96xf32> to vector<4x8x8xf32>
    %46 = vector.extract_strided_slice %28 {offsets = [0, 0, 72], sizes = [4, 8, 8], strides = [1, 1, 1]} : vector<4x8x96xf32> to vector<4x8x8xf32>
    "tpu.trace_start"() <{level = 10 : i32, message = "bqd,bkd->bqk"}> : () -> ()
    %cst_14 = arith.constant dense<0.000000e+00> : vector<4x8x8xf32>
    %47 = tpu.matmul %44, %45, %cst_14 {dimension_numbers = #tpu.dot_dimension_numbers<[2], [2], [1], [1], [0, 0, 0, 1, 1, 1], [0], [0]>} : vector<4x8x8xf32>, vector<4x8x8xf32>, vector<4x8x8xf32> -> vector<4x8x8xf32>
    "tpu.trace_stop"() : () -> ()
    %cst_15 = arith.constant dense<0xFF800000> : vector<4x8xf32>
    %48 = vector.multi_reduction <maximumf>, %47, %cst_15 [2] : vector<4x8x8xf32> to vector<4x8xf32>
    %49 = vector.shape_cast %48 : vector<4x8xf32> to vector<4x8x1xf32>
    %50 = vector.broadcast %49 : vector<4x8x1xf32> to vector<4x8x8xf32>
    %51 = arith.subf %47, %50 : vector<4x8x8xf32>
    %52 = math.exp %51 : vector<4x8x8xf32>
    %cst_16 = arith.constant dense<0.000000e+00> : vector<4x8xf32>
    %53 = vector.multi_reduction <add>, %52, %cst_16 [2] : vector<4x8x8xf32> to vector<4x8xf32>
    %54 = vector.shape_cast %53 : vector<4x8xf32> to vector<4x8x1xf32>
    %55 = tpu.reciprocal %54 : vector<4x8x1xf32> -> vector<4x8x1xf32>
    %56 = vector.broadcast %55 : vector<4x8x1xf32> to vector<4x8x8xf32>
    %57 = arith.mulf %52, %56 : vector<4x8x8xf32>
    "tpu.trace_start"() <{level = 10 : i32, message = "bqk,bkd->bqd"}> : () -> ()
    %cst_17 = arith.constant dense<0.000000e+00> : vector<4x8x8xf32>
    %58 = tpu.matmul %57, %46, %cst_17 {dimension_numbers = #tpu.dot_dimension_numbers<[2], [1], [1], [2], [0, 0, 0, 1, 1, 2], [0], [0]>} : vector<4x8x8xf32>, vector<4x8x8xf32>, vector<4x8x8xf32> -> vector<4x8x8xf32>
    "tpu.trace_stop"() : () -> ()
    %59 = vector.extract_strided_slice %28 {offsets = [0, 0, 16], sizes = [4, 8, 8], strides = [1, 1, 1]} : vector<4x8x96xf32> to vector<4x8x8xf32>
    %60 = vector.extract_strided_slice %28 {offsets = [0, 0, 48], sizes = [4, 8, 8], strides = [1, 1, 1]} : vector<4x8x96xf32> to vector<4x8x8xf32>
    %61 = vector.extract_strided_slice %28 {offsets = [0, 0, 80], sizes = [4, 8, 8], strides = [1, 1, 1]} : vector<4x8x96xf32> to vector<4x8x8xf32>
    "tpu.trace_start"() <{level = 10 : i32, message = "bqd,bkd->bqk"}> : () -> ()
    %cst_18 = arith.constant dense<0.000000e+00> : vector<4x8x8xf32>
    %62 = tpu.matmul %59, %60, %cst_18 {dimension_numbers = #tpu.dot_dimension_numbers<[2], [2], [1], [1], [0, 0, 0, 1, 1, 1], [0], [0]>} : vector<4x8x8xf32>, vector<4x8x8xf32>, vector<4x8x8xf32> -> vector<4x8x8xf32>
    "tpu.trace_stop"() : () -> ()
    %cst_19 = arith.constant dense<0xFF800000> : vector<4x8xf32>
    %63 = vector.multi_reduction <maximumf>, %62, %cst_19 [2] : vector<4x8x8xf32> to vector<4x8xf32>
    %64 = vector.shape_cast %63 : vector<4x8xf32> to vector<4x8x1xf32>
    %65 = vector.broadcast %64 : vector<4x8x1xf32> to vector<4x8x8xf32>
    %66 = arith.subf %62, %65 : vector<4x8x8xf32>
    %67 = math.exp %66 : vector<4x8x8xf32>
    %cst_20 = arith.constant dense<0.000000e+00> : vector<4x8xf32>
    %68 = vector.multi_reduction <add>, %67, %cst_20 [2] : vector<4x8x8xf32> to vector<4x8xf32>
    %69 = vector.shape_cast %68 : vector<4x8xf32> to vector<4x8x1xf32>
    %70 = tpu.reciprocal %69 : vector<4x8x1xf32> -> vector<4x8x1xf32>
    %71 = vector.broadcast %70 : vector<4x8x1xf32> to vector<4x8x8xf32>
    %72 = arith.mulf %67, %71 : vector<4x8x8xf32>
    "tpu.trace_start"() <{level = 10 : i32, message = "bqk,bkd->bqd"}> : () -> ()
    %cst_21 = arith.constant dense<0.000000e+00> : vector<4x8x8xf32>
    %73 = tpu.matmul %72, %61, %cst_21 {dimension_numbers = #tpu.dot_dimension_numbers<[2], [1], [1], [2], [0, 0, 0, 1, 1, 2], [0], [0]>} : vector<4x8x8xf32>, vector<4x8x8xf32>, vector<4x8x8xf32> -> vector<4x8x8xf32>
    "tpu.trace_stop"() : () -> ()
    %74 = vector.extract_strided_slice %28 {offsets = [0, 0, 24], sizes = [4, 8, 8], strides = [1, 1, 1]} : vector<4x8x96xf32> to vector<4x8x8xf32>
    %75 = vector.extract_strided_slice %28 {offsets = [0, 0, 56], sizes = [4, 8, 8], strides = [1, 1, 1]} : vector<4x8x96xf32> to vector<4x8x8xf32>
    %76 = vector.extract_strided_slice %28 {offsets = [0, 0, 88], sizes = [4, 8, 8], strides = [1, 1, 1]} : vector<4x8x96xf32> to vector<4x8x8xf32>
    "tpu.trace_start"() <{level = 10 : i32, message = "bqd,bkd->bqk"}> : () -> ()
    %cst_22 = arith.constant dense<0.000000e+00> : vector<4x8x8xf32>
    %77 = tpu.matmul %74, %75, %cst_22 {dimension_numbers = #tpu.dot_dimension_numbers<[2], [2], [1], [1], [0, 0, 0, 1, 1, 1], [0], [0]>} : vector<4x8x8xf32>, vector<4x8x8xf32>, vector<4x8x8xf32> -> vector<4x8x8xf32>
    "tpu.trace_stop"() : () -> ()
    %cst_23 = arith.constant dense<0xFF800000> : vector<4x8xf32>
    %78 = vector.multi_reduction <maximumf>, %77, %cst_23 [2] : vector<4x8x8xf32> to vector<4x8xf32>
    %79 = vector.shape_cast %78 : vector<4x8xf32> to vector<4x8x1xf32>
    %80 = vector.broadcast %79 : vector<4x8x1xf32> to vector<4x8x8xf32>
    %81 = arith.subf %77, %80 : vector<4x8x8xf32>
    %82 = math.exp %81 : vector<4x8x8xf32>
    %cst_24 = arith.constant dense<0.000000e+00> : vector<4x8xf32>
    %83 = vector.multi_reduction <add>, %82, %cst_24 [2] : vector<4x8x8xf32> to vector<4x8xf32>
    %84 = vector.shape_cast %83 : vector<4x8xf32> to vector<4x8x1xf32>
    %85 = tpu.reciprocal %84 : vector<4x8x1xf32> -> vector<4x8x1xf32>
    %86 = vector.broadcast %85 : vector<4x8x1xf32> to vector<4x8x8xf32>
    %87 = arith.mulf %82, %86 : vector<4x8x8xf32>
    "tpu.trace_start"() <{level = 10 : i32, message = "bqk,bkd->bqd"}> : () -> ()
    %cst_25 = arith.constant dense<0.000000e+00> : vector<4x8x8xf32>
    %88 = tpu.matmul %87, %76, %cst_25 {dimension_numbers = #tpu.dot_dimension_numbers<[2], [1], [1], [2], [0, 0, 0, 1, 1, 2], [0], [0]>} : vector<4x8x8xf32>, vector<4x8x8xf32>, vector<4x8x8xf32> -> vector<4x8x8xf32>
    "tpu.trace_stop"() : () -> ()
    %89 = tpu.concatenate %43, %58, %73, %88 in 2 : vector<4x8x8xf32>, vector<4x8x8xf32>, vector<4x8x8xf32>, vector<4x8x8xf32> -> vector<4x8x32xf32>
    %90 = vector.shape_cast %89 : vector<4x8x32xf32> to vector<32x32xf32>
    %cst_26 = arith.constant dense<0.000000e+00> : vector<32x32xf32>
    %91 = tpu.matmul %90, %8, %cst_26 {dimension_numbers = #tpu.dot_dimension_numbers<[1], [0], [0], [1], [0, 0, 1, 1], [], []>} : vector<32x32xf32>, vector<32x32xf32>, vector<32x32xf32> -> vector<32x32xf32>
    %92 = vector.broadcast %3 : vector<1x32xf32> to vector<32x32xf32>
    %93 = arith.addf %91, %92 : vector<32x32xf32>
    %94 = arith.addf %0, %93 : vector<32x32xf32>
    %cst_27 = arith.constant dense<0.000000e+00> : vector<32xf32>
    %95 = vector.multi_reduction <add>, %94, %cst_27 [1] : vector<32x32xf32> to vector<32xf32>
    %96 = vector.shape_cast %95 : vector<32xf32> to vector<32x1xf32>
    %cst_28 = arith.constant 3.200000e+01 : f32
    %97 = vector.broadcast %cst_28 : f32 to vector<32x1xf32>
    %98 = arith.divf %96, %97 : vector<32x1xf32>
    %99 = vector.broadcast %98 : vector<32x1xf32> to vector<32x32xf32>
    %100 = arith.subf %94, %99 : vector<32x32xf32>
    %101 = arith.mulf %100, %100 : vector<32x32xf32>
    %cst_29 = arith.constant dense<0.000000e+00> : vector<32xf32>
    %102 = vector.multi_reduction <add>, %101, %cst_29 [1] : vector<32x32xf32> to vector<32xf32>
    %103 = vector.shape_cast %102 : vector<32xf32> to vector<32x1xf32>
    %cst_30 = arith.constant 3.200000e+01 : f32
    %104 = vector.broadcast %cst_30 : f32 to vector<32x1xf32>
    %105 = arith.divf %103, %104 : vector<32x1xf32>
    %cst_31 = arith.constant 9.99999974E-6 : f32
    %106 = vector.broadcast %cst_31 : f32 to vector<32x1xf32>
    %107 = arith.addf %105, %106 : vector<32x1xf32>
    %108 = math.rsqrt %107 : vector<32x1xf32>
    %109 = vector.broadcast %108 : vector<32x1xf32> to vector<32x32xf32>
    %110 = arith.mulf %100, %109 : vector<32x32xf32>
    %c0_32 = arith.constant 0 : index
    %c0_33 = arith.constant 0 : index
    %111 = vector.load %arg3[%c0_32, %c0_33] : memref<32x128xf32, #tpu.memory_space<vmem>>, vector<32x128xf32>
    %cst_34 = arith.constant dense<0.000000e+00> : vector<32x128xf32>
    %112 = tpu.matmul %110, %111, %cst_34 {dimension_numbers = #tpu.dot_dimension_numbers<[1], [0], [0], [1], [0, 0, 1, 1], [], []>} : vector<32x32xf32>, vector<32x128xf32>, vector<32x128xf32> -> vector<32x128xf32>
    %113 = vector.broadcast %4 : vector<1x128xf32> to vector<32x128xf32>
    %114 = arith.addf %112, %113 : vector<32x128xf32>
    %cst_35 = arith.constant 5.000000e-01 : f32
    %115 = vector.broadcast %cst_35 : f32 to vector<32x128xf32>
    %116 = arith.mulf %115, %114 : vector<32x128xf32>
    %cst_36 = arith.constant 0.707106769 : f32
    %117 = vector.broadcast %cst_36 : f32 to vector<32x128xf32>
    %118 = arith.mulf %114, %117 : vector<32x128xf32>
    %119 = math.erf %118 : vector<32x128xf32>
    %cst_37 = arith.constant 1.000000e+00 : f32
    %120 = vector.broadcast %cst_37 : f32 to vector<32x128xf32>
    %121 = arith.addf %120, %119 : vector<32x128xf32>
    %122 = arith.mulf %116, %121 : vector<32x128xf32>
    %c0_38 = arith.constant 0 : index
    %c0_39 = arith.constant 0 : index
    %123 = vector.load %arg4[%c0_38, %c0_39] : memref<128x32xf32, #tpu.memory_space<vmem>>, vector<128x32xf32>
    %cst_40 = arith.constant dense<0.000000e+00> : vector<32x32xf32>
    %124 = tpu.matmul %122, %123, %cst_40 {dimension_numbers = #tpu.dot_dimension_numbers<[1], [0], [0], [1], [0, 0, 1, 1], [], []>} : vector<32x128xf32>, vector<128x32xf32>, vector<32x32xf32> -> vector<32x32xf32>
    %125 = vector.broadcast %5 : vector<1x32xf32> to vector<32x32xf32>
    %126 = arith.addf %124, %125 : vector<32x32xf32>
    %127 = arith.addf %94, %126 : vector<32x32xf32>
    %c0_41 = arith.constant 0 : index
    %c0_42 = arith.constant 0 : index
    %128 = vector.load %arg6[%c0_41, %c0_42] : memref<32x32xf32, #tpu.memory_space<vmem>>, vector<32x32xf32>
    tpu.vector_store %arg6[%c0_41, %c0_42], %127 {strides = array<i32>} : memref<32x32xf32, #tpu.memory_space<vmem>>, vector<32x32xf32>,
    return
  }
  func.func @transform_0(%arg0: i32) -> (i32, i32) {
    %c0_i32 = arith.constant 0 : i32
    %c0_i32_0 = arith.constant 0 : i32
    return %arg0, %c0_i32 : i32, i32
  }
  func.func @transform_1(%arg0: i32) -> (i32, i32) {
    %c0_i32 = arith.constant 0 : i32
    %c0_i32_0 = arith.constant 0 : i32
    %c0_i32_1 = arith.constant 0 : i32
    return %c0_i32, %c0_i32_0 : i32, i32
  }
  func.func @transform_2(%arg0: i32) -> (i32, i32) {
    %c0_i32 = arith.constant 0 : i32
    %c0_i32_0 = arith.constant 0 : i32
    %c0_i32_1 = arith.constant 0 : i32
    return %c0_i32, %c0_i32_0 : i32, i32
  }
  func.func @transform_3(%arg0: i32) -> (i32, i32) {
    %c0_i32 = arith.constant 0 : i32
    %c0_i32_0 = arith.constant 0 : i32
    %c0_i32_1 = arith.constant 0 : i32
    return %c0_i32, %c0_i32_0 : i32, i32
  }
  func.func @transform_4(%arg0: i32) -> (i32, i32) {
    %c0_i32 = arith.constant 0 : i32
    %c0_i32_0 = arith.constant 0 : i32
    %c0_i32_1 = arith.constant 0 : i32
    return %c0_i32, %c0_i32_0 : i32, i32
  }
  func.func @transform_5(%arg0: i32) -> (i32, i32) {
    %c0_i32 = arith.constant 0 : i32
    %c0_i32_0 = arith.constant 0 : i32
    return %arg0, %c0_i32 : i32, i32
  }
}

</mosaic_0001>

<llo_original>
// kernel: tpu_custom_call.1
$region0: #{tpu_custom_call.1}
  #allocation0 [shape = 'u32[]', space=smem, size = 0x4, offset = 0x4, fixed_abs, tag = 'smem constant byte address 0x4 - core index']
  #allocation1 [shape = 'u32[144,128]{1,0:T(1,128)}', space=vmem, size = 0x12000, scoped, tag = 'internal scratch']
  %s0 = inlined_call_operand.vmem [shape: f32[64,32], index: 0, kind: input, shape index: {}]
  %s1 = inlined_call_operand.vmem [shape: f32[32,128], index: 1, kind: input, shape index: {}]
  %s2 = inlined_call_operand.vmem [shape: f32[32,128], index: 2, kind: input, shape index: {}]
  %s3 = inlined_call_operand.vmem [shape: f32[128,32], index: 3, kind: input, shape index: {}]
  %s4 = inlined_call_operand.vmem [shape: f32[8,128], index: 4, kind: input, shape index: {}]
  %s5 = inlined_call_operand.vmem [shape: f32[64,32], index: 5, kind: output, shape index: {}]
  %s6 = sld [smem:[#allocation0]]
  $region53: #{tpu_custom_call.1} parent=0
    _
  %s8 = ssub.s32 1, %s6
  %s9 = scalar_select 0, %s8, %s6
  loop: start=0, step=1, limit=4
  $region2: #{tpu_custom_call.1} parent=0 // loop_pre_header
    _
  $region3: #{tpu_custom_call.1} parent=0 // loop_header
    %s11 = sphi 0, %s15
    %p12 = scmp.ge.s32.totalorder %s11, 4
    %s21 = sphi 0, %s23
    %s24 = sphi 0, %s21
    %s25 = sphi 0, %s24
    %s41 = sphi 0, %s25
    %s45 = sphi 0, %s45
    %s47 = sphi 0, %s45
    %s48 = sphi 0, %s47
    %s62 = sphi 0, %s48
    %s66 = sphi 0, %s66
    %s68 = sphi 0, %s66
    %s69 = sphi 0, %s68
    %s83 = sphi 0, %s69
    %s87 = sphi 0, %s87
    %s89 = sphi 0, %s87
    %s90 = sphi 0, %s89
    %s104 = sphi 0, %s90
    %s108 = sphi 0, %s108
    %s110 = sphi 0, %s108
    %s111 = sphi 0, %s110
    %s125 = sphi 0, %s111
    %s131 = sphi 0, %s133
    %s134 = sphi 0, %s131
    %s135 = sphi 0, %s134
    %s151 = sphi 0, %s135
  $region4: #{tpu_custom_call.1} parent=0 // loop_header_branch
    %14 = sbr.rel (%p12) target = $region8
  $region5: #{tpu_custom_call.1} parent=0 // loop_body
    %s16 = ssub.s32 %s11, 1
    %s17 = ssub.s32 %s11, 2
    %s18 = sadd.s32 %s11, 1
    %s19 = ssub.s32 %s11, %s18
    %p20 = scmp.eq.s32.totalorder %s19, 0
    %s22 = sadd.s32 %s21, 1
    %s23 = scalar_select %p20, %s21, %s22
    %p26 = pneg %p20
    %p27 = scmp.eq.s32.totalorder %s11, 1
    %p28 = por %p26, %p27
    %p29 = scmp.ne.s32.totalorder %s21, %s24
    %p30 = scmp.eq.s32.totalorder %s11, 0
    %p31 = por %p29, %p30
    %p32 = scmp.ne.s32.totalorder %s21, %s24
    %p33 = scmp.eq.s32.totalorder %s16, 1
    %p34 = por %p32, %p33
    %p35 = scmp.ne.s32.totalorder %s24, %s25
    %p36 = scmp.eq.s32.totalorder %s16, 0
    %p37 = por %p35, %p36
    %p38 = scmp.ne.s32.totalorder %s24, %s25
    %p39 = scmp.eq.s32.totalorder %s17, 1
    %p40 = por %p38, %p39
    %p42 = scmp.ne.s32.totalorder %s25, %s41
    %p43 = scmp.eq.s32.totalorder %s17, 0
    %p44 = por %p42, %p43
    %s46 = sadd.s32 %s45, 1
    %p49 = scmp.eq.s32.totalorder %s11, 1
    %p50 = scmp.ne.s32.totalorder %s45, %s47
    %p51 = scmp.eq.s32.totalorder %s11, 0
    %p52 = por %p50, %p51
    %p53 = scmp.ne.s32.totalorder %s45, %s47
    %p54 = scmp.eq.s32.totalorder %s16, 1
    %p55 = por %p53, %p54
    %p56 = scmp.ne.s32.totalorder %s47, %s48
    %p57 = scmp.eq.s32.totalorder %s16, 0
    %p58 = por %p56, %p57
    %p59 = scmp.ne.s32.totalorder %s47, %s48
    %p60 = scmp.eq.s32.totalorder %s17, 1
    %p61 = por %p59, %p60
    %p63 = scmp.ne.s32.totalorder %s48, %s62
    %p64 = scmp.eq.s32.totalorder %s17, 0
    %p65 = por %p63, %p64
    %s67 = sadd.s32 %s66, 1
    %p70 = scmp.eq.s32.totalorder %s11, 1
    %p71 = scmp.ne.s32.totalorder %s66, %s68
    %p72 = scmp.eq.s32.totalorder %s11, 0
    %p73 = por %p71, %p72
    %p74 = scmp.ne.s32.totalorder %s66, %s68
    %p75 = scmp.eq.s32.totalorder %s16, 1
    %p76 = por %p74, %p75
    %p77 = scmp.ne.s32.totalorder %s68, %s69
    %p78 = scmp.eq.s32.totalorder %s16, 0
    %p79 = por %p77, %p78
    %p80 = scmp.ne.s32.totalorder %s68, %s69
    %p81 = scmp.eq.s32.totalorder %s17, 1
    %p82 = por %p80, %p81
    %p84 = scmp.ne.s32.totalorder %s69, %s83
    %p85 = scmp.eq.s32.totalorder %s17, 0
    %p86 = por %p84, %p85
    %s88 = sadd.s32 %s87, 1
    %p91 = scmp.eq.s32.totalorder %s11, 1
    %p92 = scmp.ne.s32.totalorder %s87, %s89
    %p93 = scmp.eq.s32.totalorder %s11, 0
    %p94 = por %p92, %p93
    %p95 = scmp.ne.s32.totalorder %s87, %s89
    %p96 = scmp.eq.s32.totalorder %s16, 1
    %p97 = por %p95, %p96
    %p98 = scmp.ne.s32.totalorder %s89, %s90
    %p99 = scmp.eq.s32.totalorder %s16, 0
    %p100 = por %p98, %p99
    %p101 = scmp.ne.s32.totalorder %s89, %s90
    %p102 = scmp.eq.s32.totalorder %s17, 1
    %p103 = por %p101, %p102
    %p105 = scmp.ne.s32.totalorder %s90, %s104
    %p106 = scmp.eq.s32.totalorder %s17, 0
    %p107 = por %p105, %p106
    %s109 = sadd.s32 %s108, 1
    %p112 = scmp.eq.s32.totalorder %s11, 1
    %p113 = scmp.ne.s32.totalorder %s108, %s110
    %p114 = scmp.eq.s32.totalorder %s11, 0
    %p115 = por %p113, %p114
    %p116 = scmp.ne.s32.totalorder %s108, %s110
    %p117 = scmp.eq.s32.totalorder %s16, 1
    %p118 = por %p116, %p117
    %p119 = scmp.ne.s32.totalorder %s110, %s111
    %p120 = scmp.eq.s32.totalorder %s16, 0
    %p121 = por %p119, %p120
    %p122 = scmp.ne.s32.totalorder %s110, %s111
    %p123 = scmp.eq.s32.totalorder %s17, 1
    %p124 = por %p122, %p123
    %p126 = scmp.ne.s32.totalorder %s111, %s125
    %p127 = scmp.eq.s32.totalorder %s17, 0
    %p128 = por %p126, %p127
    %s129 = ssub.s32 %s11, %s18
    %p130 = scmp.eq.s32.totalorder %s129, 0
    %s132 = sadd.s32 %s131, 1
    %s133 = scalar_select %p130, %s131, %s132
    %p136 = pneg %p130
    %p137 = scmp.eq.s32.totalorder %s11, 1
    %p138 = por %p136, %p137
    %p139 = scmp.ne.s32.totalorder %s131, %s134
    %p140 = scmp.eq.s32.totalorder %s11, 0
    %p141 = por %p139, %p140
    %p142 = scmp.ne.s32.totalorder %s131, %s134
    %p143 = scmp.eq.s32.totalorder %s16, 1
    %p144 = por %p142, %p143
    %p145 = scmp.ne.s32.totalorder %s134, %s135
    %p146 = scmp.eq.s32.totalorder %s16, 0
    %p147 = por %p145, %p146
    %p148 = scmp.ne.s32.totalorder %s134, %s135
    %p149 = scmp.eq.s32.totalorder %s17, 1
    %p150 = por %p148, %p149
    %p152 = scmp.ne.s32.totalorder %s135, %s151
    %p153 = scmp.eq.s32.totalorder %s17, 0
    %p154 = por %p152, %p153
    %p155 = scmp.le.s32.totalorder 1, %s11
    %p156 = scmp.lt.s32.totalorder %s11, 3
    %p157 = pnand %p155, %p156
    %p158 = pneg %p157
    // Predicated region
    $region9: #{tpu_custom_call.1} parent=5 // pred_check
      _
    $region10: #{tpu_custom_call.1} parent=5 // pred_check_branch
      %160 = sbr.rel (%p157) target = $region12
    $region11: #{tpu_custom_call.1} parent=5 // pred_region
      %s161 = ssub.s32 %s11, 1
      // Predicated region
      $region13: #{tpu_custom_call.1} parent=11 // pred_check
        %p162 = pneg %p58
      $region14: #{tpu_custom_call.1} parent=11 // pred_check_branch
        %164 = sbr.rel (%p162) target = $region16
      $region15: #{tpu_custom_call.1} parent=11 // pred_region
        _
      $region16: #{tpu_custom_call.1} parent=11 // pred_fallthru
        _
      // Predicated region
      $region17: #{tpu_custom_call.1} parent=11 // pred_check
        %p165 = pneg %p79
      $region18: #{tpu_custom_call.1} parent=11 // pred_check_branch
        %167 = sbr.rel (%p165) target = $region20
      $region19: #{tpu_custom_call.1} parent=11 // pred_region
        _
      $region20: #{tpu_custom_call.1} parent=11 // pred_fallthru
        _
      // Predicated region
      $region21: #{tpu_custom_call.1} parent=11 // pred_check
        %p168 = pneg %p100
      $region22: #{tpu_custom_call.1} parent=11 // pred_check_branch
        %170 = sbr.rel (%p168) target = $region24
      $region23: #{tpu_custom_call.1} parent=11 // pred_region
        _
      $region24: #{tpu_custom_call.1} parent=11 // pred_fallthru
        _
      // Predicated region
      $region25: #{tpu_custom_call.1} parent=11 // pred_check
        %p171 = pneg %p121
      $region26: #{tpu_custom_call.1} parent=11 // pred_check_branch
        %173 = sbr.rel (%p171) target = $region28
      $region27: #{tpu_custom_call.1} parent=11 // pred_region
        _
      $region28: #{tpu_custom_call.1} parent=11 // pred_fallthru
        _
    $region12: #{tpu_custom_call.1} parent=5 // pred_fallthru
      _
    %p174 = scmp.lt.s32.totalorder %s11, 2
    // Predicated region
    $region29: #{tpu_custom_call.1} parent=5 // pred_check
      %p175 = pneg %p174
    $region30: #{tpu_custom_call.1} parent=5 // pred_check_branch
      %177 = sbr.rel (%p175) target = $region32
    $region31: #{tpu_custom_call.1} parent=5 // pred_region
      // Predicated region
      $region33: #{tpu_custom_call.1} parent=31 // pred_check
        %p178 = pneg %p31
      $region34: #{tpu_custom_call.1} parent=31 // pred_check_branch
        %180 = sbr.rel (%p178) target = $region36
      $region35: #{tpu_custom_call.1} parent=31 // pred_region
        %s181 = smul.u32 4, %s11
        %p182 = scmp.lt.s32.totalorder %s181, 7
        %s183 = scalar_select %p182, %s181, 7
        %s184 = smul.addr %s183, 8
        %s185 = scalar_lea.vmem %s0, %s184
        %s186 = smul.u32 4, %s11
      $region36: #{tpu_custom_call.1} parent=31 // pred_fallthru
        _
    $region32: #{tpu_custom_call.1} parent=5 // pred_fallthru
      _
    %p187 = scmp.le.s32.totalorder 1, %s11
    %p188 = scmp.lt.s32.totalorder %s11, 3
    %p189 = pnand %p187, %p188
    %p190 = pneg %p189
    // Predicated region
    $region37: #{tpu_custom_call.1} parent=5 // pred_check
      _
    $region38: #{tpu_custom_call.1} parent=5 // pred_check_branch
      %192 = sbr.rel (%p189) target = $region40
    $region39: #{tpu_custom_call.1} parent=5 // pred_region
      %s193 = ssub.s32 %s11, 1
      %s194 = smul.u32 4, %s16
      %p195 = scmp.lt.s32.totalorder %s194, 7
      %s196 = scalar_select %p195, %s194, 7
      %s197 = smul.addr %s196, 8
      %s198 = scalar_lea.vmem %s0, %s197
      %p199 = pneg %p37
      %p200 = pneg %p34
      %p201 = pneg %p58
      %p202 = pneg %p55
      %p203 = pneg %p79
      %p204 = pneg %p76
      %p205 = pneg %p100
      %p206 = pneg %p97
      %p207 = pneg %p121
      %p208 = pneg %p118
      %p209 = pneg %p147
      %p210 = pneg %p144
      %s211 = smul.u32 4, %s16
      %p212 = scmp.lt.s32.totalorder %s211, 7
      %s213 = scalar_select %p212, %s211, 7
      %s214 = smul.addr %s213, 8
      %s215 = scalar_lea.vmem %s5, %s214
      %s216 = smul.u32 4, %s16
      %p217 = scmp.lt.s32.totalorder %s216, 7
      %s218 = scalar_select %p217, %s216, 7
      %s219 = smul.addr %s218, 8
      %s220 = scalar_lea.vmem %s0, %s219
      %s221 = smul.u32 4, %s16
      %s222 = smul.u32 4, %s16
      %p223 = scmp.lt.s32.totalorder %s222, 7
      %s224 = scalar_select %p223, %s222, 7
      %s225 = smul.addr %s224, 8
      %s226 = scalar_lea.vmem %s5, %s225
      %s227 = smul.u32 4, %s16
      %v228 = vld [vmem:[%s220] sm:$0xff]
      %v229 = vld [vmem:[%s220 + $0x8] sm:$0xff]
      %v230 = vld [vmem:[%s220 + $0x10] sm:$0xff]
      %v231 = vld [vmem:[%s220 + $0x18] sm:$0xff]
      %v232 = vld [vmem:[%s4] sm:$0xff]
      %v233 = vld [vmem:[%s1] sm:$0xff]
      %v234 = vld [vmem:[%s1 + $0x8] sm:$0xff]
      %v235 = vld [vmem:[%s1 + $0x10] sm:$0xff]
      %v236 = vld [vmem:[%s1 + $0x18] sm:$0xff]
      %vm237 = vcmask 261120
      %v238 = vsel %vm237, %v228, 0.0
      %239 = vadd.xlane.f32.xlu0 %v238
      %v240 = vpop.xlane.xlu0 %239
      %v241 = vsel %vm237, %v229, 0.0
      %242 = vadd.xlane.f32.xlu0 %v241
      %v243 = vpop.xlane.xlu0 %242
      %v244 = vsel %vm237, %v230, 0.0
      %245 = vadd.xlane.f32.xlu0 %v244
      %v246 = vpop.xlane.xlu0 %245
      %v247 = vsel %vm237, %v231, 0.0
      %248 = vadd.xlane.f32.xlu0 %v247
      %v249 = vpop.xlane.xlu0 %248
      %v250 = vrcp.pop 32.0
      %v251 = vmul.f32 %v240, %v250
      %v252 = vmul.f32 %v243, %v250
      %v253 = vmul.f32 %v246, %v250
      %v254 = vmul.f32 %v249, %v250
      %v255 = vsub.f32 %v228, %v251
      %v256 = vsub.f32 %v229, %v252
      %v257 = vsub.f32 %v230, %v253
      %v258 = vsub.f32 %v231, %v254
      %v259 = vmul.f32 %v255, %v255
      %v260 = vmul.f32 %v256, %v256
      %v261 = vmul.f32 %v257, %v257
      %v262 = vmul.f32 %v258, %v258
      %v263 = vsel %vm237, %v259, 0.0
      %264 = vadd.xlane.f32.xlu0 %v263
      %v265 = vpop.xlane.xlu0 %264
      %v266 = vsel %vm237, %v260, 0.0
      %267 = vadd.xlane.f32.xlu0 %v266
      %v268 = vpop.xlane.xlu0 %267
      %v269 = vsel %vm237, %v261, 0.0
      %270 = vadd.xlane.f32.xlu0 %v269
      %v271 = vpop.xlane.xlu0 %270
      %v272 = vsel %vm237, %v262, 0.0
      %273 = vadd.xlane.f32.xlu0 %v272
      %v274 = vpop.xlane.xlu0 %273
      %v275 = vmul.f32 %v265, %v250
      %v276 = vmul.f32 %v268, %v250
      %v277 = vmul.f32 %v271, %v250
      %v278 = vmul.f32 %v274, %v250
      %v279 = vadd.f32 %v275, 1e-05
      %v280 = vadd.f32 %v276, 1e-05
      %v281 = vadd.f32 %v277, 1e-05
      %v282 = vadd.f32 %v278, 1e-05
      %v283 = vrsqrt.pop %v279
      %v284 = vrsqrt.pop %v280
      %v285 = vrsqrt.pop %v281
      %v286 = vrsqrt.pop %v282
      %v287 = vmul.f32 %v255, %v283
      %v288 = vmul.f32 %v256, %v284
      %v289 = vmul.f32 %v257, %v285
      %v290 = vmul.f32 %v258, %v286
      %v291 = vlaneseq
      %v292 = vshrl.u32 %v291, 7
      %v293 = vsub.s32 0, %v292
      %v294 = vrot.slane %v232, %v293
      %v296 = vsel %vm237, %v287, 0
      %v299 = vsel %vm237, %v288, 0
      %v302 = vsel %vm237, %v289, 0
      %v305 = vsel %vm237, %v290, 0
      %307 = vmatprep.subr.mxu0 0.0
      %308 = vmatpush1.msra.mxu0 %v233
      %309 = vmatprep.subr.mxu0 0.0
      %310 = vmatpush1.msra.mxu0 %v234
      %311 = vmatprep.subr.mxu0 0.0
      %312 = vmatpush1.msra.mxu0 %v235
      %313 = vmatprep.subr.mxu0 0.0
      %314 = vmatpush1.msra.mxu0 %v236
      %315 = vmatprep.subr.mxu0 0.0
      %316 = vmatpush1.msra.mxu0 0.0
      %317 = vmatprep.subr.mxu0 0.0
      %318 = vmatpush1.msra.mxu0 0.0
      %319 = vmatprep.subr.mxu0 0.0
      %320 = vmatpush1.msra.mxu0 0.0
      %321 = vmatprep.subr.mxu0 0.0
      %322 = vmatpush1.msra.mxu0 0.0
      %323 = vmatprep.subr.mxu0 0.0
      %324 = vmatpush1.msra.mxu0 0.0
      %325 = vmatprep.subr.mxu0 0.0
      %326 = vmatpush1.msra.mxu0 0.0
      %327 = vmatprep.subr.mxu0 0.0
      %328 = vmatpush1.msra.mxu0 0.0
      %329 = vmatprep.subr.mxu0 0.0
      %330 = vmatpush1.msra.mxu0 0.0
      %331 = vmatprep.subr.mxu0 0.0
      %332 = vmatpush1.msra.mxu0 0.0
      %333 = vmatprep.subr.mxu0 0.0
      %334 = vmatpush1.msra.mxu0 0.0
      %335 = vmatprep.subr.mxu0 0.0
      %336 = vmatpush1.msra.mxu0 0.0
      %337 = vmatprep.subr.mxu0 0.0
      %338 = vmatpush1.msra.mxu0 0.0
      %339 = vmatprep.subr.mxu0 0.0
      %340 = vmatpush1.msra.mxu0 0.0
      %341 = vmatprep.subr.mxu0 0.0
      %342 = vmatpush1.msra.mxu0 0.0
      %343 = vmatprep.subr.mxu0 0.0
      %344 = vmatpush1.msra.mxu0 0.0
      %345 = vmatprep.subr.mxu0 0.0
      %346 = vmatpush1.msra.mxu0 0.0
      %347 = vmatprep.subr.mxu0 0.0
      %348 = vmatpush1.msra.mxu0 0.0
      %349 = vmatprep.subr.mxu0 0.0
      %350 = vmatpush1.msra.mxu0 0.0
      %351 = vmatprep.subr.mxu0 0.0
      %352 = vmatpush1.msra.mxu0 0.0
      %353 = vmatprep.subr.mxu0 0.0
      %354 = vmatpush1.msra.mxu0 0.0
      %355 = vmatprep.subr.mxu0 0.0
      %356 = vmatpush1.msra.mxu0 0.0
      %357 = vmatprep.subr.mxu0 0.0
      %358 = vmatpush1.msra.mxu0 0.0
      %359 = vmatprep.subr.mxu0 0.0
      %360 = vmatpush1.msra.mxu0 0.0
      %361 = vmatprep.subr.mxu0 0.0
      %362 = vmatpush1.msra.mxu0 0.0
      %363 = vmatprep.subr.mxu0 0.0
      %364 = vmatpush1.msra.mxu0 0.0
      %365 = vmatprep.subr.mxu0 0.0
      %366 = vmatpush1.msra.mxu0 0.0
      %367 = vmatprep.subr.mxu0 0.0
      %368 = vmatpush1.msra.mxu0 0.0
      %369 = vmatprep.subr.mxu0 0.0
      %370 = vmatpush1.msra.mxu0 0.0
      %371 = vmatprep.mubr.f32.mxu0 0.0
      %372 = vmatmul.mubr.f32.gmra.mrb[0].mxu0 %v296
      %v373 = vpop.f32.mrb[0].mxu0
      %v374 = vadd.f32 %v294, %v373
      %v375 = vpop.f32.mrb[0].mxu0
      %376 = vmatprep.mubr.f32.mxu0 0.0
      %377 = vmatmul.mubr.f32.gmra.mrb[0].mxu0 %v299
      %v378 = vpop.f32.mrb[0].mxu0
      %v379 = vadd.f32 %v294, %v378
      %v380 = vpop.f32.mrb[0].mxu0
      %381 = vmatprep.mubr.f32.mxu0 0.0
      %382 = vmatmul.mubr.f32.gmra.mrb[0].mxu0 %v302
      %v383 = vpop.f32.mrb[0].mxu0
      %v384 = vadd.f32 %v294, %v383
      %v385 = vpop.f32.mrb[0].mxu0
      %386 = vmatprep.mubr.f32.mxu0 0.0
      %387 = vmatmul.mubr.f32.gmra.mrb[0].mxu0 %v305
      %v388 = vpop.f32.mrb[0].mxu0
      %v389 = vadd.f32 %v294, %v388
      %v390 = vpop.f32.mrb[0].mxu0
      %391 = vdwg.mxu0
      %393 = vrot.lane.b32.xlu0 %v374, 96
      %v394 = vpop.permute.xlu0 %393
      %vm395 = vcmask 64512
      %v396 = vsel %vm395, %v374, 0
      %v398 = vsel %vm395, %v394, 0
      %400 = vmatprep.subr.mxu0 0.0
      %401 = vmatpush1.xpose.msra.mxu0 %v398
      %402 = vmatprep.subr.mxu0 0.0
      %403 = vmatpush1.xpose.msra.mxu0 0.0
      %404 = vmatprep.subr.mxu0 0.0
      %405 = vmatpush1.xpose.msra.mxu0 0.0
      %406 = vmatprep.subr.mxu0 0.0
      %407 = vmatpush1.xpose.msra.mxu0 0.0
      %408 = vmatprep.subr.mxu0 0.0
      %409 = vmatpush1.xpose.msra.mxu0 0.0
      %410 = vmatprep.subr.mxu0 0.0
      %411 = vmatpush1.xpose.msra.mxu0 0.0
      %412 = vmatprep.subr.mxu0 0.0
      %413 = vmatpush1.xpose.msra.mxu0 0.0
      %414 = vmatprep.subr.mxu0 0.0
      %415 = vmatpush1.xpose.msra.mxu0 0.0
      %416 = vmatprep.subr.mxu0 0.0
      %417 = vmatpush1.xpose.msra.mxu0 0.0
      %418 = vmatprep.subr.mxu0 0.0
      %419 = vmatpush1.xpose.msra.mxu0 0.0
      %420 = vmatprep.subr.mxu0 0.0
      %421 = vmatpush1.xpose.msra.mxu0 0.0
      %422 = vmatprep.subr.mxu0 0.0
      %423 = vmatpush1.xpose.msra.mxu0 0.0
      %424 = vmatprep.subr.mxu0 0.0
      %425 = vmatpush1.xpose.msra.mxu0 0.0
      %426 = vmatprep.subr.mxu0 0.0
      %427 = vmatpush1.xpose.msra.mxu0 0.0
      %428 = vmatprep.subr.mxu0 0.0
      %429 = vmatpush1.xpose.msra.mxu0 0.0
      %430 = vmatprep.subr.mxu0 0.0
      %431 = vmatpush1.xpose.msra.mxu0 0.0
      %432 = vmatprep.subr.mxu0 0.0
      %433 = vmatpush1.xpose.msra.mxu0 0.0
      %434 = vmatprep.subr.mxu0 0.0
      %435 = vmatpush1.xpose.msra.mxu0 0.0
      %436 = vmatprep.subr.mxu0 0.0
      %437 = vmatpush1.xpose.msra.mxu0 0.0
      %438 = vmatprep.subr.mxu0 0.0
      %439 = vmatpush1.xpose.msra.mxu0 0.0
      %440 = vmatprep.subr.mxu0 0.0
      %441 = vmatpush1.xpose.msra.mxu0 0.0
      %442 = vmatprep.subr.mxu0 0.0
      %443 = vmatpush1.xpose.msra.mxu0 0.0
      %444 = vmatprep.subr.mxu0 0.0
      %445 = vmatpush1.xpose.msra.mxu0 0.0
      %446 = vmatprep.subr.mxu0 0.0
      %447 = vmatpush1.xpose.msra.mxu0 0.0
      %448 = vmatprep.subr.mxu0 0.0
      %449 = vmatpush1.xpose.msra.mxu0 0.0
      %450 = vmatprep.subr.mxu0 0.0
      %451 = vmatpush1.xpose.msra.mxu0 0.0
      %452 = vmatprep.subr.mxu0 0.0
      %453 = vmatpush1.xpose.msra.mxu0 0.0
      %454 = vmatprep.subr.mxu0 0.0
      %455 = vmatpush1.xpose.msra.mxu0 0.0
      %456 = vmatprep.subr.mxu0 0.0
      %457 = vmatpush1.xpose.msra.mxu0 0.0
      %458 = vmatprep.subr.mxu0 0.0
      %459 = vmatpush1.xpose.msra.mxu0 0.0
      %460 = vmatprep.subr.mxu0 0.0
      %461 = vmatpush1.xpose.msra.mxu0 0.0
      %462 = vmatprep.subr.mxu0 0.0
      %463 = vmatpush1.xpose.msra.mxu0 0.0
      %464 = vmatprep.mubr.f32.mxu0 0.0
      %465 = vmatmul.mubr.f32.gmra.mrb[0].mxu0 %v396
      %v466 = vpop.f32.mrb[0].mxu0
      %v467 = vadd.f32 0.0, %v466
      %v468 = vpop.f32.mrb[0].mxu0
      %469 = vdwg.mxu0
      %471 = vrot.lane.b32.xlu0 %v379, 96
      %v472 = vpop.permute.xlu0 %471
      %v473 = vsel %vm395, %v379, 0
      %v475 = vsel %vm395, %v472, 0
      %477 = vmatprep.subr.mxu0 0.0
      %478 = vmatpush1.xpose.msra.mxu0 %v475
      %479 = vmatprep.subr.mxu0 0.0
      %480 = vmatpush1.xpose.msra.mxu0 0.0
      %481 = vmatprep.subr.mxu0 0.0
      %482 = vmatpush1.xpose.msra.mxu0 0.0
      %483 = vmatprep.subr.mxu0 0.0
      %484 = vmatpush1.xpose.msra.mxu0 0.0
      %485 = vmatprep.subr.mxu0 0.0
      %486 = vmatpush1.xpose.msra.mxu0 0.0
      %487 = vmatprep.subr.mxu0 0.0
      %488 = vmatpush1.xpose.msra.mxu0 0.0
      %489 = vmatprep.subr.mxu0 0.0
      %490 = vmatpush1.xpose.msra.mxu0 0.0
      %491 = vmatprep.subr.mxu0 0.0
      %492 = vmatpush1.xpose.msra.mxu0 0.0
      %493 = vmatprep.subr.mxu0 0.0
      %494 = vmatpush1.xpose.msra.mxu0 0.0
      %495 = vmatprep.subr.mxu0 0.0
      %496 = vmatpush1.xpose.msra.mxu0 0.0
      %497 = vmatprep.subr.mxu0 0.0
      %498 = vmatpush1.xpose.msra.mxu0 0.0
      %499 = vmatprep.subr.mxu0 0.0
      %500 = vmatpush1.xpose.msra.mxu0 0.0
      %501 = vmatprep.subr.mxu0 0.0
      %502 = vmatpush1.xpose.msra.mxu0 0.0
      %503 = vmatprep.subr.mxu0 0.0
      %504 = vmatpush1.xpose.msra.mxu0 0.0
      %505 = vmatprep.subr.mxu0 0.0
      %506 = vmatpush1.xpose.msra.mxu0 0.0
      %507 = vmatprep.subr.mxu0 0.0
      %508 = vmatpush1.xpose.msra.mxu0 0.0
      %509 = vmatprep.subr.mxu0 0.0
      %510 = vmatpush1.xpose.msra.mxu0 0.0
      %511 = vmatprep.subr.mxu0 0.0
      %512 = vmatpush1.xpose.msra.mxu0 0.0
      %513 = vmatprep.subr.mxu0 0.0
      %514 = vmatpush1.xpose.msra.mxu0 0.0
      %515 = vmatprep.subr.mxu0 0.0
      %516 = vmatpush1.xpose.msra.mxu0 0.0
      %517 = vmatprep.subr.mxu0 0.0
      %518 = vmatpush1.xpose.msra.mxu0 0.0
      %519 = vmatprep.subr.mxu0 0.0
      %520 = vmatpush1.xpose.msra.mxu0 0.0
      %521 = vmatprep.subr.mxu0 0.0
      %522 = vmatpush1.xpose.msra.mxu0 0.0
      %523 = vmatprep.subr.mxu0 0.0
      %524 = vmatpush1.xpose.msra.mxu0 0.0
      %525 = vmatprep.subr.mxu0 0.0
      %526 = vmatpush1.xpose.msra.mxu0 0.0
      %527 = vmatprep.subr.mxu0 0.0
      %528 = vmatpush1.xpose.msra.mxu0 0.0
      %529 = vmatprep.subr.mxu0 0.0
      %530 = vmatpush1.xpose.msra.mxu0 0.0
      %531 = vmatprep.subr.mxu0 0.0
      %532 = vmatpush1.xpose.msra.mxu0 0.0
      %533 = vmatprep.subr.mxu0 0.0
      %534 = vmatpush1.xpose.msra.mxu0 0.0
      %535 = vmatprep.subr.mxu0 0.0
      %536 = vmatpush1.xpose.msra.mxu0 0.0
      %537 = vmatprep.subr.mxu0 0.0
      %538 = vmatpush1.xpose.msra.mxu0 0.0
      %539 = vmatprep.subr.mxu0 0.0
      %540 = vmatpush1.xpose.msra.mxu0 0.0
      %541 = vmatprep.mubr.f32.mxu0 0.0
      %542 = vmatmul.mubr.f32.gmra.mrb[0].mxu0 %v473
      %v543 = vpop.f32.mrb[0].mxu0
      %v544 = vadd.f32 0.0, %v543
      %v545 = vpop.f32.mrb[0].mxu0
      %546 = vdwg.mxu0
      %548 = vrot.lane.b32.xlu0 %v384, 96
      %v549 = vpop.permute.xlu0 %548
      %v550 = vsel %vm395, %v384, 0
      %v552 = vsel %vm395, %v549, 0
      %554 = vmatprep.subr.mxu0 0.0
      %555 = vmatpush1.xpose.msra.mxu0 %v552
      %556 = vmatprep.subr.mxu0 0.0
      %557 = vmatpush1.xpose.msra.mxu0 0.0
      %558 = vmatprep.subr.mxu0 0.0
      %559 = vmatpush1.xpose.msra.mxu0 0.0
      %560 = vmatprep.subr.mxu0 0.0
      %561 = vmatpush1.xpose.msra.mxu0 0.0
      %562 = vmatprep.subr.mxu0 0.0
      %563 = vmatpush1.xpose.msra.mxu0 0.0
      %564 = vmatprep.subr.mxu0 0.0
      %565 = vmatpush1.xpose.msra.mxu0 0.0
      %566 = vmatprep.subr.mxu0 0.0
      %567 = vmatpush1.xpose.msra.mxu0 0.0
      %568 = vmatprep.subr.mxu0 0.0
      %569 = vmatpush1.xpose.msra.mxu0 0.0
      %570 = vmatprep.subr.mxu0 0.0
      %571 = vmatpush1.xpose.msra.mxu0 0.0
      %572 = vmatprep.subr.mxu0 0.0
      %573 = vmatpush1.xpose.msra.mxu0 0.0
      %574 = vmatprep.subr.mxu0 0.0
      %575 = vmatpush1.xpose.msra.mxu0 0.0
      %576 = vmatprep.subr.mxu0 0.0
      %577 = vmatpush1.xpose.msra.mxu0 0.0
      %578 = vmatprep.subr.mxu0 0.0
      %579 = vmatpush1.xpose.msra.mxu0 0.0
      %580 = vmatprep.subr.mxu0 0.0
      %581 = vmatpush1.xpose.msra.mxu0 0.0
      %582 = vmatprep.subr.mxu0 0.0
      %583 = vmatpush1.xpose.msra.mxu0 0.0
      %584 = vmatprep.subr.mxu0 0.0
      %585 = vmatpush1.xpose.msra.mxu0 0.0
      %586 = vmatprep.subr.mxu0 0.0
      %587 = vmatpush1.xpose.msra.mxu0 0.0
      %588 = vmatprep.subr.mxu0 0.0
      %589 = vmatpush1.xpose.msra.mxu0 0.0
      %590 = vmatprep.subr.mxu0 0.0
      %591 = vmatpush1.xpose.msra.mxu0 0.0
      %592 = vmatprep.subr.mxu0 0.0
      %593 = vmatpush1.xpose.msra.mxu0 0.0
      %594 = vmatprep.subr.mxu0 0.0
      %595 = vmatpush1.xpose.msra.mxu0 0.0
      %596 = vmatprep.subr.mxu0 0.0
      %597 = vmatpush1.xpose.msra.mxu0 0.0
      %598 = vmatprep.subr.mxu0 0.0
      %599 = vmatpush1.xpose.msra.mxu0 0.0
      %600 = vmatprep.subr.mxu0 0.0
      %601 = vmatpush1.xpose.msra.mxu0 0.0
      %602 = vmatprep.subr.mxu0 0.0
      %603 = vmatpush1.xpose.msra.mxu0 0.0
      %604 = vmatprep.subr.mxu0 0.0
      %605 = vmatpush1.xpose.msra.mxu0 0.0
      %606 = vmatprep.subr.mxu0 0.0
      %607 = vmatpush1.xpose.msra.mxu0 0.0
      %608 = vmatprep.subr.mxu0 0.0
      %609 = vmatpush1.xpose.msra.mxu0 0.0
      %610 = vmatprep.subr.mxu0 0.0
      %611 = vmatpush1.xpose.msra.mxu0 0.0
      %612 = vmatprep.subr.mxu0 0.0
      %613 = vmatpush1.xpose.msra.mxu0 0.0
      %614 = vmatprep.subr.mxu0 0.0
      %615 = vmatpush1.xpose.msra.mxu0 0.0
      %616 = vmatprep.subr.mxu0 0.0
      %617 = vmatpush1.xpose.msra.mxu0 0.0
      %618 = vmatprep.mubr.f32.mxu0 0.0
      %619 = vmatmul.mubr.f32.gmra.mrb[0].mxu0 %v550
      %v620 = vpop.f32.mrb[0].mxu0
      %v621 = vadd.f32 0.0, %v620
      %v622 = vpop.f32.mrb[0].mxu0
      %623 = vdwg.mxu0
      %625 = vrot.lane.b32.xlu0 %v389, 96
      %v626 = vpop.permute.xlu0 %625
      %v627 = vsel %vm395, %v389, 0
      %v629 = vsel %vm395, %v626, 0
      %631 = vmatprep.subr.mxu0 0.0
      %632 = vmatpush1.xpose.msra.mxu0 %v629
      %633 = vmatprep.subr.mxu0 0.0
      %634 = vmatpush1.xpose.msra.mxu0 0.0
      %635 = vmatprep.subr.mxu0 0.0
      %636 = vmatpush1.xpose.msra.mxu0 0.0
      %637 = vmatprep.subr.mxu0 0.0
      %638 = vmatpush1.xpose.msra.mxu0 0.0
      %639 = vmatprep.subr.mxu0 0.0
      %640 = vmatpush1.xpose.msra.mxu0 0.0
      %641 = vmatprep.subr.mxu0 0.0
      %642 = vmatpush1.xpose.msra.mxu0 0.0
      %643 = vmatprep.subr.mxu0 0.0
      %644 = vmatpush1.xpose.msra.mxu0 0.0
      %645 = vmatprep.subr.mxu0 0.0
      %646 = vmatpush1.xpose.msra.mxu0 0.0
      %647 = vmatprep.subr.mxu0 0.0
      %648 = vmatpush1.xpose.msra.mxu0 0.0
      %649 = vmatprep.subr.mxu0 0.0
      %650 = vmatpush1.xpose.msra.mxu0 0.0
      %651 = vmatprep.subr.mxu0 0.0
      %652 = vmatpush1.xpose.msra.mxu0 0.0
      %653 = vmatprep.subr.mxu0 0.0
      %654 = vmatpush1.xpose.msra.mxu0 0.0
      %655 = vmatprep.subr.mxu0 0.0
      %656 = vmatpush1.xpose.msra.mxu0 0.0
      %657 = vmatprep.subr.mxu0 0.0
      %658 = vmatpush1.xpose.msra.mxu0 0.0
      %659 = vmatprep.subr.mxu0 0.0
      %660 = vmatpush1.xpose.msra.mxu0 0.0
      %661 = vmatprep.subr.mxu0 0.0
      %662 = vmatpush1.xpose.msra.mxu0 0.0
      %663 = vmatprep.subr.mxu0 0.0
      %664 = vmatpush1.xpose.msra.mxu0 0.0
      %665 = vmatprep.subr.mxu0 0.0
      %666 = vmatpush1.xpose.msra.mxu0 0.0
      %667 = vmatprep.subr.mxu0 0.0
      %668 = vmatpush1.xpose.msra.mxu0 0.0
      %669 = vmatprep.subr.mxu0 0.0
      %670 = vmatpush1.xpose.msra.mxu0 0.0
      %671 = vmatprep.subr.mxu0 0.0
      %672 = vmatpush1.xpose.msra.mxu0 0.0
      %673 = vmatprep.subr.mxu0 0.0
      %674 = vmatpush1.xpose.msra.mxu0 0.0
      %675 = vmatprep.subr.mxu0 0.0
      %676 = vmatpush1.xpose.msra.mxu0 0.0
      %677 = vmatprep.subr.mxu0 0.0
      %678 = vmatpush1.xpose.msra.mxu0 0.0
      %679 = vmatprep.subr.mxu0 0.0
      %680 = vmatpush1.xpose.msra.mxu0 0.0
      %681 = vmatprep.subr.mxu0 0.0
      %682 = vmatpush1.xpose.msra.mxu0 0.0
      %683 = vmatprep.subr.mxu0 0.0
      %684 = vmatpush1.xpose.msra.mxu0 0.0
      %685 = vmatprep.subr.mxu0 0.0
      %686 = vmatpush1.xpose.msra.mxu0 0.0
      %687 = vmatprep.subr.mxu0 0.0
      %688 = vmatpush1.xpose.msra.mxu0 0.0
      %689 = vmatprep.subr.mxu0 0.0
      %690 = vmatpush1.xpose.msra.mxu0 0.0
      %691 = vmatprep.subr.mxu0 0.0
      %692 = vmatpush1.xpose.msra.mxu0 0.0
      %693 = vmatprep.subr.mxu0 0.0
      %694 = vmatpush1.xpose.msra.mxu0 0.0
      %695 = vmatprep.mubr.f32.mxu0 0.0
      %696 = vmatmul.mubr.f32.gmra.mrb[0].mxu0 %v627
      %v697 = vpop.f32.mrb[0].mxu0
      %v698 = vadd.f32 0.0, %v697
      %v699 = vpop.f32.mrb[0].mxu0
      %700 = vdwg.mxu0
      %v701 = vsel %vm395, %v467, -inf
      %702 = vmax.xlane.f32.xlu0 %v701
      %v703 = vpop.xlane.xlu0 %702
      %v704 = vsel %vm395, %v544, -inf
      %705 = vmax.xlane.f32.xlu0 %v704
      %v706 = vpop.xlane.xlu0 %705
      %v707 = vsel %vm395, %v621, -inf
      %708 = vmax.xlane.f32.xlu0 %v707
      %v709 = vpop.xlane.xlu0 %708
      %v710 = vsel %vm395, %v698, -inf
      %711 = vmax.xlane.f32.xlu0 %v710
      %v712 = vpop.xlane.xlu0 %711
      %v713 = vsub.f32 %v467, %v703
      %v714 = vsub.f32 %v544, %v706
      %v715 = vsub.f32 %v621, %v709
      %v716 = vsub.f32 %v698, %v712
      %v717 = vmul.f32 %v713, 1.442695
      %v718 = vpow.pop %v717
      %v719 = vmul.f32 %v714, 1.442695
      %v720 = vpow.pop %v719
      %v721 = vmul.f32 %v715, 1.442695
      %v722 = vpow.pop %v721
      %v723 = vmul.f32 %v716, 1.442695
      %v724 = vpow.pop %v723
      %v725 = vsel %vm395, %v718, 0.0
      %726 = vadd.xlane.f32.xlu0 %v725
      %v727 = vpop.xlane.xlu0 %726
      %v728 = vsel %vm395, %v720, 0.0
      %729 = vadd.xlane.f32.xlu0 %v728
      %v730 = vpop.xlane.xlu0 %729
      %v731 = vsel %vm395, %v722, 0.0
      %732 = vadd.xlane.f32.xlu0 %v731
      %v733 = vpop.xlane.xlu0 %732
      %v734 = vsel %vm395, %v724, 0.0
      %735 = vadd.xlane.f32.xlu0 %v734
      %v736 = vpop.xlane.xlu0 %735
      %v737 = vrcp.pop %v727
      %v738 = vrcp.pop %v730
      %v739 = vrcp.pop %v733
      %v740 = vrcp.pop %v736
      %v741 = vmul.f32 %v718, %v737
      %v742 = vmul.f32 %v720, %v738
      %v743 = vmul.f32 %v722, %v739
      %v744 = vmul.f32 %v724, %v740
      %745 = vrot.lane.b32.xlu0 %v374, 64
      %v746 = vpop.permute.xlu0 %745
      %v749 = vsel %vm395, %v741, 0
      %751 = vmatprep.subr.mxu0 0.0
      %752 = vmatpush1.msra.mxu0 %v746
      %753 = vmatprep.subr.mxu0 0.0
      %754 = vmatpush1.msra.mxu0 0.0
      %755 = vmatprep.subr.mxu0 0.0
      %756 = vmatpush1.msra.mxu0 0.0
      %757 = vmatprep.subr.mxu0 0.0
      %758 = vmatpush1.msra.mxu0 0.0
      %759 = vmatprep.subr.mxu0 0.0
      %760 = vmatpush1.msra.mxu0 0.0
      %761 = vmatprep.subr.mxu0 0.0
      %762 = vmatpush1.msra.mxu0 0.0
      %763 = vmatprep.subr.mxu0 0.0
      %764 = vmatpush1.msra.mxu0 0.0
      %765 = vmatprep.subr.mxu0 0.0
      %766 = vmatpush1.msra.mxu0 0.0
      %767 = vmatprep.subr.mxu0 0.0
      %768 = vmatpush1.msra.mxu0 0.0
      %769 = vmatprep.subr.mxu0 0.0
      %770 = vmatpush1.msra.mxu0 0.0
      %771 = vmatprep.subr.mxu0 0.0
      %772 = vmatpush1.msra.mxu0 0.0
      %773 = vmatprep.subr.mxu0 0.0
      %774 = vmatpush1.msra.mxu0 0.0
      %775 = vmatprep.subr.mxu0 0.0
      %776 = vmatpush1.msra.mxu0 0.0
      %777 = vmatprep.subr.mxu0 0.0
      %778 = vmatpush1.msra.mxu0 0.0
      %779 = vmatprep.subr.mxu0 0.0
      %780 = vmatpush1.msra.mxu0 0.0
      %781 = vmatprep.subr.mxu0 0.0
      %782 = vmatpush1.msra.mxu0 0.0
      %783 = vmatprep.subr.mxu0 0.0
      %784 = vmatpush1.msra.mxu0 0.0
      %785 = vmatprep.subr.mxu0 0.0
      %786 = vmatpush1.msra.mxu0 0.0
      %787 = vmatprep.subr.mxu0 0.0
      %788 = vmatpush1.msra.mxu0 0.0
      %789 = vmatprep.subr.mxu0 0.0
      %790 = vmatpush1.msra.mxu0 0.0
      %791 = vmatprep.subr.mxu0 0.0
      %792 = vmatpush1.msra.mxu0 0.0
      %793 = vmatprep.subr.mxu0 0.0
      %794 = vmatpush1.msra.mxu0 0.0
      %795 = vmatprep.subr.mxu0 0.0
      %796 = vmatpush1.msra.mxu0 0.0
      %797 = vmatprep.subr.mxu0 0.0
      %798 = vmatpush1.msra.mxu0 0.0
      %799 = vmatprep.subr.mxu0 0.0
      %800 = vmatpush1.msra.mxu0 0.0
      %801 = vmatprep.subr.mxu0 0.0
      %802 = vmatpush1.msra.mxu0 0.0
      %803 = vmatprep.subr.mxu0 0.0
      %804 = vmatpush1.msra.mxu0 0.0
      %805 = vmatprep.subr.mxu0 0.0
      %806 = vmatpush1.msra.mxu0 0.0
      %807 = vmatprep.subr.mxu0 0.0
      %808 = vmatpush1.msra.mxu0 0.0
      %809 = vmatprep.subr.mxu0 0.0
      %810 = vmatpush1.msra.mxu0 0.0
      %811 = vmatprep.subr.mxu0 0.0
      %812 = vmatpush1.msra.mxu0 0.0
      %813 = vmatprep.subr.mxu0 0.0
      %814 = vmatpush1.msra.mxu0 0.0
      %815 = vmatprep.mubr.f32.mxu0 0.0
      %816 = vmatmul.mubr.f32.gmra.mrb[0].mxu0 %v749
      %v817 = vpop.f32.mrb[0].mxu0
      %v818 = vadd.f32 0.0, %v817
      %v819 = vpop.f32.mrb[0].mxu0
      %820 = vdwg.mxu0
      %821 = vrot.lane.b32.xlu0 %v379, 64
      %v822 = vpop.permute.xlu0 %821
      %v825 = vsel %vm395, %v742, 0
      %827 = vmatprep.subr.mxu0 0.0
      %828 = vmatpush1.msra.mxu0 %v822
      %829 = vmatprep.subr.mxu0 0.0
      %830 = vmatpush1.msra.mxu0 0.0
      %831 = vmatprep.subr.mxu0 0.0
      %832 = vmatpush1.msra.mxu0 0.0
      %833 = vmatprep.subr.mxu0 0.0
      %834 = vmatpush1.msra.mxu0 0.0
      %835 = vmatprep.subr.mxu0 0.0
      %836 = vmatpush1.msra.mxu0 0.0
      %837 = vmatprep.subr.mxu0 0.0
      %838 = vmatpush1.msra.mxu0 0.0
      %839 = vmatprep.subr.mxu0 0.0
      %840 = vmatpush1.msra.mxu0 0.0
      %841 = vmatprep.subr.mxu0 0.0
      %842 = vmatpush1.msra.mxu0 0.0
      %843 = vmatprep.subr.mxu0 0.0
      %844 = vmatpush1.msra.mxu0 0.0
      %845 = vmatprep.subr.mxu0 0.0
      %846 = vmatpush1.msra.mxu0 0.0
      %847 = vmatprep.subr.mxu0 0.0
      %848 = vmatpush1.msra.mxu0 0.0
      %849 = vmatprep.subr.mxu0 0.0
      %850 = vmatpush1.msra.mxu0 0.0
      %851 = vmatprep.subr.mxu0 0.0
      %852 = vmatpush1.msra.mxu0 0.0
      %853 = vmatprep.subr.mxu0 0.0
      %854 = vmatpush1.msra.mxu0 0.0
      %855 = vmatprep.subr.mxu0 0.0
      %856 = vmatpush1.msra.mxu0 0.0
      %857 = vmatprep.subr.mxu0 0.0
      %858 = vmatpush1.msra.mxu0 0.0
      %859 = vmatprep.subr.mxu0 0.0
      %860 = vmatpush1.msra.mxu0 0.0
      %861 = vmatprep.subr.mxu0 0.0
      %862 = vmatpush1.msra.mxu0 0.0
      %863 = vmatprep.subr.mxu0 0.0
      %864 = vmatpush1.msra.mxu0 0.0
      %865 = vmatprep.subr.mxu0 0.0
      %866 = vmatpush1.msra.mxu0 0.0
      %867 = vmatprep.subr.mxu0 0.0
      %868 = vmatpush1.msra.mxu0 0.0
      %869 = vmatprep.subr.mxu0 0.0
      %870 = vmatpush1.msra.mxu0 0.0
      %871 = vmatprep.subr.mxu0 0.0
      %872 = vmatpush1.msra.mxu0 0.0
      %873 = vmatprep.subr.mxu0 0.0
      %874 = vmatpush1.msra.mxu0 0.0
      %875 = vmatprep.subr.mxu0 0.0
      %876 = vmatpush1.msra.mxu0 0.0
      %877 = vmatprep.subr.mxu0 0.0
      %878 = vmatpush1.msra.mxu0 0.0
      %879 = vmatprep.subr.mxu0 0.0
      %880 = vmatpush1.msra.mxu0 0.0
      %881 = vmatprep.subr.mxu0 0.0
      %882 = vmatpush1.msra.mxu0 0.0
      %883 = vmatprep.subr.mxu0 0.0
      %884 = vmatpush1.msra.mxu0 0.0
      %885 = vmatprep.subr.mxu0 0.0
      %886 = vmatpush1.msra.mxu0 0.0
      %887 = vmatprep.subr.mxu0 0.0
      %888 = vmatpush1.msra.mxu0 0.0
      %889 = vmatprep.subr.mxu0 0.0
      %890 = vmatpush1.msra.mxu0 0.0
      %891 = vmatprep.mubr.f32.mxu0 0.0
      %892 = vmatmul.mubr.f32.gmra.mrb[0].mxu0 %v825
      %v893 = vpop.f32.mrb[0].mxu0
      %v894 = vadd.f32 0.0, %v893
      %v895 = vpop.f32.mrb[0].mxu0
      %896 = vdwg.mxu0
      %897 = vrot.lane.b32.xlu0 %v384, 64
      %v898 = vpop.permute.xlu0 %897
      %v901 = vsel %vm395, %v743, 0
      %903 = vmatprep.subr.mxu0 0.0
      %904 = vmatpush1.msra.mxu0 %v898
      %905 = vmatprep.subr.mxu0 0.0
      %906 = vmatpush1.msra.mxu0 0.0
      %907 = vmatprep.subr.mxu0 0.0
      %908 = vmatpush1.msra.mxu0 0.0
      %909 = vmatprep.subr.mxu0 0.0
      %910 = vmatpush1.msra.mxu0 0.0
      %911 = vmatprep.subr.mxu0 0.0
      %912 = vmatpush1.msra.mxu0 0.0
      %913 = vmatprep.subr.mxu0 0.0
      %914 = vmatpush1.msra.mxu0 0.0
      %915 = vmatprep.subr.mxu0 0.0
      %916 = vmatpush1.msra.mxu0 0.0
      %917 = vmatprep.subr.mxu0 0.0
      %918 = vmatpush1.msra.mxu0 0.0
      %919 = vmatprep.subr.mxu0 0.0
      %920 = vmatpush1.msra.mxu0 0.0
      %921 = vmatprep.subr.mxu0 0.0
      %922 = vmatpush1.msra.mxu0 0.0
      %923 = vmatprep.subr.mxu0 0.0
      %924 = vmatpush1.msra.mxu0 0.0
      %925 = vmatprep.subr.mxu0 0.0
      %926 = vmatpush1.msra.mxu0 0.0
      %927 = vmatprep.subr.mxu0 0.0
      %928 = vmatpush1.msra.mxu0 0.0
      %929 = vmatprep.subr.mxu0 0.0
      %930 = vmatpush1.msra.mxu0 0.0
      %931 = vmatprep.subr.mxu0 0.0
      %932 = vmatpush1.msra.mxu0 0.0
      %933 = vmatprep.subr.mxu0 0.0
      %934 = vmatpush1.msra.mxu0 0.0
      %935 = vmatprep.subr.mxu0 0.0
      %936 = vmatpush1.msra.mxu0 0.0
      %937 = vmatprep.subr.mxu0 0.0
      %938 = vmatpush1.msra.mxu0 0.0
      %939 = vmatprep.subr.mxu0 0.0
      %940 = vmatpush1.msra.mxu0 0.0
      %941 = vmatprep.subr.mxu0 0.0
      %942 = vmatpush1.msra.mxu0 0.0
      %943 = vmatprep.subr.mxu0 0.0
      %944 = vmatpush1.msra.mxu0 0.0
      %945 = vmatprep.subr.mxu0 0.0
      %946 = vmatpush1.msra.mxu0 0.0
      %947 = vmatprep.subr.mxu0 0.0
      %948 = vmatpush1.msra.mxu0 0.0
      %949 = vmatprep.subr.mxu0 0.0
      %950 = vmatpush1.msra.mxu0 0.0
      %951 = vmatprep.subr.mxu0 0.0
      %952 = vmatpush1.msra.mxu0 0.0
      %953 = vmatprep.subr.mxu0 0.0
      %954 = vmatpush1.msra.mxu0 0.0
      %955 = vmatprep.subr.mxu0 0.0
      %956 = vmatpush1.msra.mxu0 0.0
      %957 = vmatprep.subr.mxu0 0.0
      %958 = vmatpush1.msra.mxu0 0.0
      %959 = vmatprep.subr.mxu0 0.0
      %960 = vmatpush1.msra.mxu0 0.0
      %961 = vmatprep.subr.mxu0 0.0
      %962 = vmatpush1.msra.mxu0 0.0
      %963 = vmatprep.subr.mxu0 0.0
      %964 = vmatpush1.msra.mxu0 0.0
      %965 = vmatprep.subr.mxu0 0.0
      %966 = vmatpush1.msra.mxu0 0.0
      %967 = vmatprep.mubr.f32.mxu0 0.0
      %968 = vmatmul.mubr.f32.gmra.mrb[0].mxu0 %v901
      %v969 = vpop.f32.mrb[0].mxu0
      %v970 = vadd.f32 0.0, %v969
      %v971 = vpop.f32.mrb[0].mxu0
      %972 = vdwg.mxu0
      %973 = vrot.lane.b32.xlu0 %v389, 64
      %v974 = vpop.permute.xlu0 %973
      %v977 = vsel %vm395, %v744, 0
      %979 = vmatprep.subr.mxu0 0.0
      %980 = vmatpush1.msra.mxu0 %v974
      %981 = vmatprep.subr.mxu0 0.0
      %982 = vmatpush1.msra.mxu0 0.0
      %983 = vmatprep.subr.mxu0 0.0
      %984 = vmatpush1.msra.mxu0 0.0
      %985 = vmatprep.subr.mxu0 0.0
      %986 = vmatpush1.msra.mxu0 0.0
      %987 = vmatprep.subr.mxu0 0.0
      %988 = vmatpush1.msra.mxu0 0.0
      %989 = vmatprep.subr.mxu0 0.0
      %990 = vmatpush1.msra.mxu0 0.0
      %991 = vmatprep.subr.mxu0 0.0
      %992 = vmatpush1.msra.mxu0 0.0
      %993 = vmatprep.subr.mxu0 0.0
      %994 = vmatpush1.msra.mxu0 0.0
      %995 = vmatprep.subr.mxu0 0.0
      %996 = vmatpush1.msra.mxu0 0.0
      %997 = vmatprep.subr.mxu0 0.0
      %998 = vmatpush1.msra.mxu0 0.0
      %999 = vmatprep.subr.mxu0 0.0
      %1000 = vmatpush1.msra.mxu0 0.0
      %1001 = vmatprep.subr.mxu0 0.0
      %1002 = vmatpush1.msra.mxu0 0.0
      %1003 = vmatprep.subr.mxu0 0.0
      %1004 = vmatpush1.msra.mxu0 0.0
      %1005 = vmatprep.subr.mxu0 0.0
      %1006 = vmatpush1.msra.mxu0 0.0
      %1007 = vmatprep.subr.mxu0 0.0
      %1008 = vmatpush1.msra.mxu0 0.0
      %1009 = vmatprep.subr.mxu0 0.0
      %1010 = vmatpush1.msra.mxu0 0.0
      %1011 = vmatprep.subr.mxu0 0.0
      %1012 = vmatpush1.msra.mxu0 0.0
      %1013 = vmatprep.subr.mxu0 0.0
      %1014 = vmatpush1.msra.mxu0 0.0
      %1015 = vmatprep.subr.mxu0 0.0
      %1016 = vmatpush1.msra.mxu0 0.0
      %1017 = vmatprep.subr.mxu0 0.0
      %1018 = vmatpush1.msra.mxu0 0.0
      %1019 = vmatprep.subr.mxu0 0.0
      %1020 = vmatpush1.msra.mxu0 0.0
      %1021 = vmatprep.subr.mxu0 0.0
      %1022 = vmatpush1.msra.mxu0 0.0
      %1023 = vmatprep.subr.mxu0 0.0
      %1024 = vmatpush1.msra.mxu0 0.0
      %1025 = vmatprep.subr.mxu0 0.0
      %1026 = vmatpush1.msra.mxu0 0.0
      %1027 = vmatprep.subr.mxu0 0.0
      %1028 = vmatpush1.msra.mxu0 0.0
      %1029 = vmatprep.subr.mxu0 0.0
      %1030 = vmatpush1.msra.mxu0 0.0
      %1031 = vmatprep.subr.mxu0 0.0
      %1032 = vmatpush1.msra.mxu0 0.0
      %1033 = vmatprep.subr.mxu0 0.0
      %1034 = vmatpush1.msra.mxu0 0.0
      %1035 = vmatprep.subr.mxu0 0.0
      %1036 = vmatpush1.msra.mxu0 0.0
      %1037 = vmatprep.subr.mxu0 0.0
      %1038 = vmatpush1.msra.mxu0 0.0
      %1039 = vmatprep.subr.mxu0 0.0
      %1040 = vmatpush1.msra.mxu0 0.0
      %1041 = vmatprep.subr.mxu0 0.0
      %1042 = vmatpush1.msra.mxu0 0.0
      %1043 = vmatprep.mubr.f32.mxu0 0.0
      %1044 = vmatmul.mubr.f32.gmra.mrb[0].mxu0 %v977
      %v1045 = vpop.f32.mrb[0].mxu0
      %v1046 = vadd.f32 0.0, %v1045
      %v1047 = vpop.f32.mrb[0].mxu0
      %1048 = vdwg.mxu0
      %1049 = vrot.lane.b32.xlu0 %v374, 120
      %v1050 = vpop.permute.xlu0 %1049
      %1051 = vrot.lane.b32.xlu0 %v374, 88
      %v1052 = vpop.permute.xlu0 %1051
      %v1053 = vsel %vm395, %v1050, 0
      %v1055 = vsel %vm395, %v1052, 0
      %1057 = vmatprep.subr.mxu0 0.0
      %1058 = vmatpush1.xpose.msra.mxu0 %v1055
      %1059 = vmatprep.subr.mxu0 0.0
      %1060 = vmatpush1.xpose.msra.mxu0 0.0
      %1061 = vmatprep.subr.mxu0 0.0
      %1062 = vmatpush1.xpose.msra.mxu0 0.0
      %1063 = vmatprep.subr.mxu0 0.0
      %1064 = vmatpush1.xpose.msra.mxu0 0.0
      %1065 = vmatprep.subr.mxu0 0.0
      %1066 = vmatpush1.xpose.msra.mxu0 0.0
      %1067 = vmatprep.subr.mxu0 0.0
      %1068 = vmatpush1.xpose.msra.mxu0 0.0
      %1069 = vmatprep.subr.mxu0 0.0
      %1070 = vmatpush1.xpose.msra.mxu0 0.0
      %1071 = vmatprep.subr.mxu0 0.0
      %1072 = vmatpush1.xpose.msra.mxu0 0.0
      %1073 = vmatprep.subr.mxu0 0.0
      %1074 = vmatpush1.xpose.msra.mxu0 0.0
      %1075 = vmatprep.subr.mxu0 0.0
      %1076 = vmatpush1.xpose.msra.mxu0 0.0
      %1077 = vmatprep.subr.mxu0 0.0
      %1078 = vmatpush1.xpose.msra.mxu0 0.0
      %1079 = vmatprep.subr.mxu0 0.0
      %1080 = vmatpush1.xpose.msra.mxu0 0.0
      %1081 = vmatprep.subr.mxu0 0.0
      %1082 = vmatpush1.xpose.msra.mxu0 0.0
      %1083 = vmatprep.subr.mxu0 0.0
      %1084 = vmatpush1.xpose.msra.mxu0 0.0
      %1085 = vmatprep.subr.mxu0 0.0
      %1086 = vmatpush1.xpose.msra.mxu0 0.0
      %1087 = vmatprep.subr.mxu0 0.0
      %1088 = vmatpush1.xpose.msra.mxu0 0.0
      %1089 = vmatprep.subr.mxu0 0.0
      %1090 = vmatpush1.xpose.msra.mxu0 0.0
      %1091 = vmatprep.subr.mxu0 0.0
      %1092 = vmatpush1.xpose.msra.mxu0 0.0
      %1093 = vmatprep.subr.mxu0 0.0
      %1094 = vmatpush1.xpose.msra.mxu0 0.0
      %1095 = vmatprep.subr.mxu0 0.0
      %1096 = vmatpush1.xpose.msra.mxu0 0.0
      %1097 = vmatprep.subr.mxu0 0.0
      %1098 = vmatpush1.xpose.msra.mxu0 0.0
      %1099 = vmatprep.subr.mxu0 0.0
      %1100 = vmatpush1.xpose.msra.mxu0 0.0
      %1101 = vmatprep.subr.mxu0 0.0
      %1102 = vmatpush1.xpose.msra.mxu0 0.0
      %1103 = vmatprep.subr.mxu0 0.0
      %1104 = vmatpush1.xpose.msra.mxu0 0.0
      %1105 = vmatprep.subr.mxu0 0.0
      %1106 = vmatpush1.xpose.msra.mxu0 0.0
      %1107 = vmatprep.subr.mxu0 0.0
      %1108 = vmatpush1.xpose.msra.mxu0 0.0
      %1109 = vmatprep.subr.mxu0 0.0
      %1110 = vmatpush1.xpose.msra.mxu0 0.0
      %1111 = vmatprep.subr.mxu0 0.0
      %1112 = vmatpush1.xpose.msra.mxu0 0.0
      %1113 = vmatprep.subr.mxu0 0.0
      %1114 = vmatpush1.xpose.msra.mxu0 0.0
      %1115 = vmatprep.subr.mxu0 0.0
      %1116 = vmatpush1.xpose.msra.mxu0 0.0
      %1117 = vmatprep.subr.mxu0 0.0
      %1118 = vmatpush1.xpose.msra.mxu0 0.0
      %1119 = vmatprep.subr.mxu0 0.0
      %1120 = vmatpush1.xpose.msra.mxu0 0.0
      %1121 = vmatprep.mubr.f32.mxu0 0.0
      %1122 = vmatmul.mubr.f32.gmra.mrb[0].mxu0 %v1053
      %v1123 = vpop.f32.mrb[0].mxu0
      %v1124 = vadd.f32 0.0, %v1123
      %v1125 = vpop.f32.mrb[0].mxu0
      %1126 = vdwg.mxu0
      %1127 = vrot.lane.b32.xlu0 %v379, 120
      %v1128 = vpop.permute.xlu0 %1127
      %1129 = vrot.lane.b32.xlu0 %v379, 88
      %v1130 = vpop.permute.xlu0 %1129
      %v1131 = vsel %vm395, %v1128, 0
      %v1133 = vsel %vm395, %v1130, 0
      %1135 = vmatprep.subr.mxu0 0.0
      %1136 = vmatpush1.xpose.msra.mxu0 %v1133
      %1137 = vmatprep.subr.mxu0 0.0
      %1138 = vmatpush1.xpose.msra.mxu0 0.0
      %1139 = vmatprep.subr.mxu0 0.0
      %1140 = vmatpush1.xpose.msra.mxu0 0.0
      %1141 = vmatprep.subr.mxu0 0.0
      %1142 = vmatpush1.xpose.msra.mxu0 0.0
      %1143 = vmatprep.subr.mxu0 0.0
      %1144 = vmatpush1.xpose.msra.mxu0 0.0
      %1145 = vmatprep.subr.mxu0 0.0
      %1146 = vmatpush1.xpose.msra.mxu0 0.0
      %1147 = vmatprep.subr.mxu0 0.0
      %1148 = vmatpush1.xpose.msra.mxu0 0.0
      %1149 = vmatprep.subr.mxu0 0.0
      %1150 = vmatpush1.xpose.msra.mxu0 0.0
      %1151 = vmatprep.subr.mxu0 0.0
      %1152 = vmatpush1.xpose.msra.mxu0 0.0
      %1153 = vmatprep.subr.mxu0 0.0
      %1154 = vmatpush1.xpose.msra.mxu0 0.0
      %1155 = vmatprep.subr.mxu0 0.0
      %1156 = vmatpush1.xpose.msra.mxu0 0.0
      %1157 = vmatprep.subr.mxu0 0.0
      %1158 = vmatpush1.xpose.msra.mxu0 0.0
      %1159 = vmatprep.subr.mxu0 0.0
      %1160 = vmatpush1.xpose.msra.mxu0 0.0
      %1161 = vmatprep.subr.mxu0 0.0
      %1162 = vmatpush1.xpose.msra.mxu0 0.0
      %1163 = vmatprep.subr.mxu0 0.0
      %1164 = vmatpush1.xpose.msra.mxu0 0.0
      %1165 = vmatprep.subr.mxu0 0.0
      %1166 = vmatpush1.xpose.msra.mxu0 0.0
      %1167 = vmatprep.subr.mxu0 0.0
      %1168 = vmatpush1.xpose.msra.mxu0 0.0
      %1169 = vmatprep.subr.mxu0 0.0
      %1170 = vmatpush1.xpose.msra.mxu0 0.0
      %1171 = vmatprep.subr.mxu0 0.0
      %1172 = vmatpush1.xpose.msra.mxu0 0.0
      %1173 = vmatprep.subr.mxu0 0.0
      %1174 = vmatpush1.xpose.msra.mxu0 0.0
      %1175 = vmatprep.subr.mxu0 0.0
      %1176 = vmatpush1.xpose.msra.mxu0 0.0
      %1177 = vmatprep.subr.mxu0 0.0
      %1178 = vmatpush1.xpose.msra.mxu0 0.0
      %1179 = vmatprep.subr.mxu0 0.0
      %1180 = vmatpush1.xpose.msra.mxu0 0.0
      %1181 = vmatprep.subr.mxu0 0.0
      %1182 = vmatpush1.xpose.msra.mxu0 0.0
      %1183 = vmatprep.subr.mxu0 0.0
      %1184 = vmatpush1.xpose.msra.mxu0 0.0
      %1185 = vmatprep.subr.mxu0 0.0
      %1186 = vmatpush1.xpose.msra.mxu0 0.0
      %1187 = vmatprep.subr.mxu0 0.0
      %1188 = vmatpush1.xpose.msra.mxu0 0.0
      %1189 = vmatprep.subr.mxu0 0.0
      %1190 = vmatpush1.xpose.msra.mxu0 0.0
      %1191 = vmatprep.subr.mxu0 0.0
      %1192 = vmatpush1.xpose.msra.mxu0 0.0
      %1193 = vmatprep.subr.mxu0 0.0
      %1194 = vmatpush1.xpose.msra.mxu0 0.0
      %1195 = vmatprep.subr.mxu0 0.0
      %1196 = vmatpush1.xpose.msra.mxu0 0.0
      %1197 = vmatprep.subr.mxu0 0.0
      %1198 = vmatpush1.xpose.msra.mxu0 0.0
      %1199 = vmatprep.mubr.f32.mxu0 0.0
      %1200 = vmatmul.mubr.f32.gmra.mrb[0].mxu0 %v1131
      %v1201 = vpop.f32.mrb[0].mxu0
      %v1202 = vadd.f32 0.0, %v1201
      %v1203 = vpop.f32.mrb[0].mxu0
      %1204 = vdwg.mxu0
      %1205 = vrot.lane.b32.xlu0 %v384, 120
      %v1206 = vpop.permute.xlu0 %1205
      %1207 = vrot.lane.b32.xlu0 %v384, 88
      %v1208 = vpop.permute.xlu0 %1207
      %v1209 = vsel %vm395, %v1206, 0
      %v1211 = vsel %vm395, %v1208, 0
      %1213 = vmatprep.subr.mxu0 0.0
      %1214 = vmatpush1.xpose.msra.mxu0 %v1211
      %1215 = vmatprep.subr.mxu0 0.0
      %1216 = vmatpush1.xpose.msra.mxu0 0.0
      %1217 = vmatprep.subr.mxu0 0.0
      %1218 = vmatpush1.xpose.msra.mxu0 0.0
      %1219 = vmatprep.subr.mxu0 0.0
      %1220 = vmatpush1.xpose.msra.mxu0 0.0
      %1221 = vmatprep.subr.mxu0 0.0
      %1222 = vmatpush1.xpose.msra.mxu0 0.0
      %1223 = vmatprep.subr.mxu0 0.0
      %1224 = vmatpush1.xpose.msra.mxu0 0.0
      %1225 = vmatprep.subr.mxu0 0.0
      %1226 = vmatpush1.xpose.msra.mxu0 0.0
      %1227 = vmatprep.subr.mxu0 0.0
      %1228 = vmatpush1.xpose.msra.mxu0 0.0
      %1229 = vmatprep.subr.mxu0 0.0
      %1230 = vmatpush1.xpose.msra.mxu0 0.0
      %1231 = vmatprep.subr.mxu0 0.0
      %1232 = vmatpush1.xpose.msra.mxu0 0.0
      %1233 = vmatprep.subr.mxu0 0.0
      %1234 = vmatpush1.xpose.msra.mxu0 0.0
      %1235 = vmatprep.subr.mxu0 0.0
      %1236 = vmatpush1.xpose.msra.mxu0 0.0
      %1237 = vmatprep.subr.mxu0 0.0
      %1238 = vmatpush1.xpose.msra.mxu0 0.0
      %1239 = vmatprep.subr.mxu0 0.0
      %1240 = vmatpush1.xpose.msra.mxu0 0.0
      %1241 = vmatprep.subr.mxu0 0.0
      %1242 = vmatpush1.xpose.msra.mxu0 0.0
      %1243 = vmatprep.subr.mxu0 0.0
      %1244 = vmatpush1.xpose.msra.mxu0 0.0
      %1245 = vmatprep.subr.mxu0 0.0
      %1246 = vmatpush1.xpose.msra.mxu0 0.0
      %1247 = vmatprep.subr.mxu0 0.0
      %1248 = vmatpush1.xpose.msra.mxu0 0.0
      %1249 = vmatprep.subr.mxu0 0.0
      %1250 = vmatpush1.xpose.msra.mxu0 0.0
      %1251 = vmatprep.subr.mxu0 0.0
      %1252 = vmatpush1.xpose.msra.mxu0 0.0
      %1253 = vmatprep.subr.mxu0 0.0
      %1254 = vmatpush1.xpose.msra.mxu0 0.0
      %1255 = vmatprep.subr.mxu0 0.0
      %1256 = vmatpush1.xpose.msra.mxu0 0.0
      %1257 = vmatprep.subr.mxu0 0.0
      %1258 = vmatpush1.xpose.msra.mxu0 0.0
      %1259 = vmatprep.subr.mxu0 0.0
      %1260 = vmatpush1.xpose.msra.mxu0 0.0
      %1261 = vmatprep.subr.mxu0 0.0
      %1262 = vmatpush1.xpose.msra.mxu0 0.0
      %1263 = vmatprep.subr.mxu0 0.0
      %1264 = vmatpush1.xpose.msra.mxu0 0.0
      %1265 = vmatprep.subr.mxu0 0.0
      %1266 = vmatpush1.xpose.msra.mxu0 0.0
      %1267 = vmatprep.subr.mxu0 0.0
      %1268 = vmatpush1.xpose.msra.mxu0 0.0
      %1269 = vmatprep.subr.mxu0 0.0
      %1270 = vmatpush1.xpose.msra.mxu0 0.0
      %1271 = vmatprep.subr.mxu0 0.0
      %1272 = vmatpush1.xpose.msra.mxu0 0.0
      %1273 = vmatprep.subr.mxu0 0.0
      %1274 = vmatpush1.xpose.msra.mxu0 0.0
      %1275 = vmatprep.subr.mxu0 0.0
      %1276 = vmatpush1.xpose.msra.mxu0 0.0
      %1277 = vmatprep.mubr.f32.mxu0 0.0
      %1278 = vmatmul.mubr.f32.gmra.mrb[0].mxu0 %v1209
      %v1279 = vpop.f32.mrb[0].mxu0
      %v1280 = vadd.f32 0.0, %v1279
      %v1281 = vpop.f32.mrb[0].mxu0
      %1282 = vdwg.mxu0
      %1283 = vrot.lane.b32.xlu0 %v389, 120
      %v1284 = vpop.permute.xlu0 %1283
      %1285 = vrot.lane.b32.xlu0 %v389, 88
      %v1286 = vpop.permute.xlu0 %1285
      %v1287 = vsel %vm395, %v1284, 0
      %v1289 = vsel %vm395, %v1286, 0
      %1291 = vmatprep.subr.mxu0 0.0
      %1292 = vmatpush1.xpose.msra.mxu0 %v1289
      %1293 = vmatprep.subr.mxu0 0.0
      %1294 = vmatpush1.xpose.msra.mxu0 0.0
      %1295 = vmatprep.subr.mxu0 0.0
      %1296 = vmatpush1.xpose.msra.mxu0 0.0
      %1297 = vmatprep.subr.mxu0 0.0
      %1298 = vmatpush1.xpose.msra.mxu0 0.0
      %1299 = vmatprep.subr.mxu0 0.0
      %1300 = vmatpush1.xpose.msra.mxu0 0.0
      %1301 = vmatprep.subr.mxu0 0.0
      %1302 = vmatpush1.xpose.msra.mxu0 0.0
      %1303 = vmatprep.subr.mxu0 0.0
      %1304 = vmatpush1.xpose.msra.mxu0 0.0
      %1305 = vmatprep.subr.mxu0 0.0
      %1306 = vmatpush1.xpose.msra.mxu0 0.0
      %1307 = vmatprep.subr.mxu0 0.0
      %1308 = vmatpush1.xpose.msra.mxu0 0.0
      %1309 = vmatprep.subr.mxu0 0.0
      %1310 = vmatpush1.xpose.msra.mxu0 0.0
      %1311 = vmatprep.subr.mxu0 0.0
      %1312 = vmatpush1.xpose.msra.mxu0 0.0
      %1313 = vmatprep.subr.mxu0 0.0
      %1314 = vmatpush1.xpose.msra.mxu0 0.0
      %1315 = vmatprep.subr.mxu0 0.0
      %1316 = vmatpush1.xpose.msra.mxu0 0.0
      %1317 = vmatprep.subr.mxu0 0.0
      %1318 = vmatpush1.xpose.msra.mxu0 0.0
      %1319 = vmatprep.subr.mxu0 0.0
      %1320 = vmatpush1.xpose.msra.mxu0 0.0
      %1321 = vmatprep.subr.mxu0 0.0
      %1322 = vmatpush1.xpose.msra.mxu0 0.0
      %1323 = vmatprep.subr.mxu0 0.0
      %1324 = vmatpush1.xpose.msra.mxu0 0.0
      %1325 = vmatprep.subr.mxu0 0.0
      %1326 = vmatpush1.xpose.msra.mxu0 0.0
      %1327 = vmatprep.subr.mxu0 0.0
      %1328 = vmatpush1.xpose.msra.mxu0 0.0
      %1329 = vmatprep.subr.mxu0 0.0
      %1330 = vmatpush1.xpose.msra.mxu0 0.0
      %1331 = vmatprep.subr.mxu0 0.0
      %1332 = vmatpush1.xpose.msra.mxu0 0.0
      %1333 = vmatprep.subr.mxu0 0.0
      %1334 = vmatpush1.xpose.msra.mxu0 0.0
      %1335 = vmatprep.subr.mxu0 0.0
      %1336 = vmatpush1.xpose.msra.mxu0 0.0
      %1337 = vmatprep.subr.mxu0 0.0
      %1338 = vmatpush1.xpose.msra.mxu0 0.0
      %1339 = vmatprep.subr.mxu0 0.0
      %1340 = vmatpush1.xpose.msra.mxu0 0.0
      %1341 = vmatprep.subr.mxu0 0.0
      %1342 = vmatpush1.xpose.msra.mxu0 0.0
      %1343 = vmatprep.subr.mxu0 0.0
      %1344 = vmatpush1.xpose.msra.mxu0 0.0
      %1345 = vmatprep.subr.mxu0 0.0
      %1346 = vmatpush1.xpose.msra.mxu0 0.0
      %1347 = vmatprep.subr.mxu0 0.0
      %1348 = vmatpush1.xpose.msra.mxu0 0.0
      %1349 = vmatprep.subr.mxu0 0.0
      %1350 = vmatpush1.xpose.msra.mxu0 0.0
      %1351 = vmatprep.subr.mxu0 0.0
      %1352 = vmatpush1.xpose.msra.mxu0 0.0
      %1353 = vmatprep.subr.mxu0 0.0
      %1354 = vmatpush1.xpose.msra.mxu0 0.0
      %1355 = vmatprep.mubr.f32.mxu0 0.0
      %1356 = vmatmul.mubr.f32.gmra.mrb[0].mxu0 %v1287
      %v1357 = vpop.f32.mrb[0].mxu0
      %v1358 = vadd.f32 0.0, %v1357
      %v1359 = vpop.f32.mrb[0].mxu0
      %1360 = vdwg.mxu0
      %v1361 = vsel %vm395, %v1124, -inf
      %1362 = vmax.xlane.f32.xlu0 %v1361
      %v1363 = vpop.xlane.xlu0 %1362
      %v1364 = vsel %vm395, %v1202, -inf
      %1365 = vmax.xlane.f32.xlu0 %v1364
      %v1366 = vpop.xlane.xlu0 %1365
      %v1367 = vsel %vm395, %v1280, -inf
      %1368 = vmax.xlane.f32.xlu0 %v1367
      %v1369 = vpop.xlane.xlu0 %1368
      %v1370 = vsel %vm395, %v1358, -inf
      %1371 = vmax.xlane.f32.xlu0 %v1370
      %v1372 = vpop.xlane.xlu0 %1371
      %v1373 = vsub.f32 %v1124, %v1363
      %v1374 = vsub.f32 %v1202, %v1366
      %v1375 = vsub.f32 %v1280, %v1369
      %v1376 = vsub.f32 %v1358, %v1372
      %v1377 = vmul.f32 %v1373, 1.442695
      %v1378 = vpow.pop %v1377
      %v1379 = vmul.f32 %v1374, 1.442695
      %v1380 = vpow.pop %v1379
      %v1381 = vmul.f32 %v1375, 1.442695
      %v1382 = vpow.pop %v1381
      %v1383 = vmul.f32 %v1376, 1.442695
      %v1384 = vpow.pop %v1383
      %v1385 = vsel %vm395, %v1378, 0.0
      %1386 = vadd.xlane.f32.xlu0 %v1385
      %v1387 = vpop.xlane.xlu0 %1386
      %v1388 = vsel %vm395, %v1380, 0.0
      %1389 = vadd.xlane.f32.xlu0 %v1388
      %v1390 = vpop.xlane.xlu0 %1389
      %v1391 = vsel %vm395, %v1382, 0.0
      %1392 = vadd.xlane.f32.xlu0 %v1391
      %v1393 = vpop.xlane.xlu0 %1392
      %v1394 = vsel %vm395, %v1384, 0.0
      %1395 = vadd.xlane.f32.xlu0 %v1394
      %v1396 = vpop.xlane.xlu0 %1395
      %v1397 = vrcp.pop %v1387
      %v1398 = vrcp.pop %v1390
      %v1399 = vrcp.pop %v1393
      %v1400 = vrcp.pop %v1396
      %v1401 = vmul.f32 %v1378, %v1397
      %v1402 = vmul.f32 %v1380, %v1398
      %v1403 = vmul.f32 %v1382, %v1399
      %v1404 = vmul.f32 %v1384, %v1400
      %1405 = vrot.lane.b32.xlu0 %v374, 56
      %v1406 = vpop.permute.xlu0 %1405
      %v1409 = vsel %vm395, %v1401, 0
      %1411 = vmatprep.subr.mxu0 0.0
      %1412 = vmatpush1.msra.mxu0 %v1406
      %1413 = vmatprep.subr.mxu0 0.0
      %1414 = vmatpush1.msra.mxu0 0.0
      %1415 = vmatprep.subr.mxu0 0.0
      %1416 = vmatpush1.msra.mxu0 0.0
      %1417 = vmatprep.subr.mxu0 0.0
      %1418 = vmatpush1.msra.mxu0 0.0
      %1419 = vmatprep.subr.mxu0 0.0
      %1420 = vmatpush1.msra.mxu0 0.0
      %1421 = vmatprep.subr.mxu0 0.0
      %1422 = vmatpush1.msra.mxu0 0.0
      %1423 = vmatprep.subr.mxu0 0.0
      %1424 = vmatpush1.msra.mxu0 0.0
      %1425 = vmatprep.subr.mxu0 0.0
      %1426 = vmatpush1.msra.mxu0 0.0
      %1427 = vmatprep.subr.mxu0 0.0
      %1428 = vmatpush1.msra.mxu0 0.0
      %1429 = vmatprep.subr.mxu0 0.0
      %1430 = vmatpush1.msra.mxu0 0.0
      %1431 = vmatprep.subr.mxu0 0.0
      %1432 = vmatpush1.msra.mxu0 0.0
      %1433 = vmatprep.subr.mxu0 0.0
      %1434 = vmatpush1.msra.mxu0 0.0
      %1435 = vmatprep.subr.mxu0 0.0
      %1436 = vmatpush1.msra.mxu0 0.0
      %1437 = vmatprep.subr.mxu0 0.0
      %1438 = vmatpush1.msra.mxu0 0.0
      %1439 = vmatprep.subr.mxu0 0.0
      %1440 = vmatpush1.msra.mxu0 0.0
      %1441 = vmatprep.subr.mxu0 0.0
      %1442 = vmatpush1.msra.mxu0 0.0
      %1443 = vmatprep.subr.mxu0 0.0
      %1444 = vmatpush1.msra.mxu0 0.0
      %1445 = vmatprep.subr.mxu0 0.0
      %1446 = vmatpush1.msra.mxu0 0.0
      %1447 = vmatprep.subr.mxu0 0.0
      %1448 = vmatpush1.msra.mxu0 0.0
      %1449 = vmatprep.subr.mxu0 0.0
      %1450 = vmatpush1.msra.mxu0 0.0
      %1451 = vmatprep.subr.mxu0 0.0
      %1452 = vmatpush1.msra.mxu0 0.0
      %1453 = vmatprep.subr.mxu0 0.0
      %1454 = vmatpush1.msra.mxu0 0.0
      %1455 = vmatprep.subr.mxu0 0.0
      %1456 = vmatpush1.msra.mxu0 0.0
      %1457 = vmatprep.subr.mxu0 0.0
      %1458 = vmatpush1.msra.mxu0 0.0
      %1459 = vmatprep.subr.mxu0 0.0
      %1460 = vmatpush1.msra.mxu0 0.0
      %1461 = vmatprep.subr.mxu0 0.0
      %1462 = vmatpush1.msra.mxu0 0.0
      %1463 = vmatprep.subr.mxu0 0.0
      %1464 = vmatpush1.msra.mxu0 0.0
      %1465 = vmatprep.subr.mxu0 0.0
      %1466 = vmatpush1.msra.mxu0 0.0
      %1467 = vmatprep.subr.mxu0 0.0
      %1468 = vmatpush1.msra.mxu0 0.0
      %1469 = vmatprep.subr.mxu0 0.0
      %1470 = vmatpush1.msra.mxu0 0.0
      %1471 = vmatprep.subr.mxu0 0.0
      %1472 = vmatpush1.msra.mxu0 0.0
      %1473 = vmatprep.subr.mxu0 0.0
      %1474 = vmatpush1.msra.mxu0 0.0
      %1475 = vmatprep.mubr.f32.mxu0 0.0
      %1476 = vmatmul.mubr.f32.gmra.mrb[0].mxu0 %v1409
      %v1477 = vpop.f32.mrb[0].mxu0
      %v1478 = vadd.f32 0.0, %v1477
      %v1479 = vpop.f32.mrb[0].mxu0
      %1480 = vdwg.mxu0
      %1481 = vrot.lane.b32.xlu0 %v379, 56
      %v1482 = vpop.permute.xlu0 %1481
      %v1485 = vsel %vm395, %v1402, 0
      %1487 = vmatprep.subr.mxu0 0.0
      %1488 = vmatpush1.msra.mxu0 %v1482
      %1489 = vmatprep.subr.mxu0 0.0
      %1490 = vmatpush1.msra.mxu0 0.0
      %1491 = vmatprep.subr.mxu0 0.0
      %1492 = vmatpush1.msra.mxu0 0.0
      %1493 = vmatprep.subr.mxu0 0.0
      %1494 = vmatpush1.msra.mxu0 0.0
      %1495 = vmatprep.subr.mxu0 0.0
      %1496 = vmatpush1.msra.mxu0 0.0
      %1497 = vmatprep.subr.mxu0 0.0
      %1498 = vmatpush1.msra.mxu0 0.0
      %1499 = vmatprep.subr.mxu0 0.0
      %1500 = vmatpush1.msra.mxu0 0.0
      %1501 = vmatprep.subr.mxu0 0.0
      %1502 = vmatpush1.msra.mxu0 0.0
      %1503 = vmatprep.subr.mxu0 0.0
      %1504 = vmatpush1.msra.mxu0 0.0
      %1505 = vmatprep.subr.mxu0 0.0
      %1506 = vmatpush1.msra.mxu0 0.0
      %1507 = vmatprep.subr.mxu0 0.0
      %1508 = vmatpush1.msra.mxu0 0.0
      %1509 = vmatprep.subr.mxu0 0.0
      %1510 = vmatpush1.msra.mxu0 0.0
      %1511 = vmatprep.subr.mxu0 0.0
      %1512 = vmatpush1.msra.mxu0 0.0
      %1513 = vmatprep.subr.mxu0 0.0
      %1514 = vmatpush1.msra.mxu0 0.0
      %1515 = vmatprep.subr.mxu0 0.0
      %1516 = vmatpush1.msra.mxu0 0.0
      %1517 = vmatprep.subr.mxu0 0.0
      %1518 = vmatpush1.msra.mxu0 0.0
      %1519 = vmatprep.subr.mxu0 0.0
      %1520 = vmatpush1.msra.mxu0 0.0
      %1521 = vmatprep.subr.mxu0 0.0
      %1522 = vmatpush1.msra.mxu0 0.0
      %1523 = vmatprep.subr.mxu0 0.0
      %1524 = vmatpush1.msra.mxu0 0.0
      %1525 = vmatprep.subr.mxu0 0.0
      %1526 = vmatpush1.msra.mxu0 0.0
      %1527 = vmatprep.subr.mxu0 0.0
      %1528 = vmatpush1.msra.mxu0 0.0
      %1529 = vmatprep.subr.mxu0 0.0
      %1530 = vmatpush1.msra.mxu0 0.0
      %1531 = vmatprep.subr.mxu0 0.0
      %1532 = vmatpush1.msra.mxu0 0.0
      %1533 = vmatprep.subr.mxu0 0.0
      %1534 = vmatpush1.msra.mxu0 0.0
      %1535 = vmatprep.subr.mxu0 0.0
      %1536 = vmatpush1.msra.mxu0 0.0
      %1537 = vmatprep.subr.mxu0 0.0
      %1538 = vmatpush1.msra.mxu0 0.0
      %1539 = vmatprep.subr.mxu0 0.0
      %1540 = vmatpush1.msra.mxu0 0.0
      %1541 = vmatprep.subr.mxu0 0.0
      %1542 = vmatpush1.msra.mxu0 0.0
      %1543 = vmatprep.subr.mxu0 0.0
      %1544 = vmatpush1.msra.mxu0 0.0
      %1545 = vmatprep.subr.mxu0 0.0
      %1546 = vmatpush1.msra.mxu0 0.0
      %1547 = vmatprep.subr.mxu0 0.0
      %1548 = vmatpush1.msra.mxu0 0.0
      %1549 = vmatprep.subr.mxu0 0.0
      %1550 = vmatpush1.msra.mxu0 0.0
      %1551 = vmatprep.mubr.f32.mxu0 0.0
      %1552 = vmatmul.mubr.f32.gmra.mrb[0].mxu0 %v1485
      %v1553 = vpop.f32.mrb[0].mxu0
      %v1554 = vadd.f32 0.0, %v1553
      %v1555 = vpop.f32.mrb[0].mxu0
      %1556 = vdwg.mxu0
      %1557 = vrot.lane.b32.xlu0 %v384, 56
      %v1558 = vpop.permute.xlu0 %1557
      %v1561 = vsel %vm395, %v1403, 0
      %1563 = vmatprep.subr.mxu0 0.0
      %1564 = vmatpush1.msra.mxu0 %v1558
      %1565 = vmatprep.subr.mxu0 0.0
      %1566 = vmatpush1.msra.mxu0 0.0
      %1567 = vmatprep.subr.mxu0 0.0
      %1568 = vmatpush1.msra.mxu0 0.0
      %1569 = vmatprep.subr.mxu0 0.0
      %1570 = vmatpush1.msra.mxu0 0.0
      %1571 = vmatprep.subr.mxu0 0.0
      %1572 = vmatpush1.msra.mxu0 0.0
      %1573 = vmatprep.subr.mxu0 0.0
      %1574 = vmatpush1.msra.mxu0 0.0
      %1575 = vmatprep.subr.mxu0 0.0
      %1576 = vmatpush1.msra.mxu0 0.0
      %1577 = vmatprep.subr.mxu0 0.0
      %1578 = vmatpush1.msra.mxu0 0.0
      %1579 = vmatprep.subr.mxu0 0.0
      %1580 = vmatpush1.msra.mxu0 0.0
      %1581 = vmatprep.subr.mxu0 0.0
      %1582 = vmatpush1.msra.mxu0 0.0
      %1583 = vmatprep.subr.mxu0 0.0
      %1584 = vmatpush1.msra.mxu0 0.0
      %1585 = vmatprep.subr.mxu0 0.0
      %1586 = vmatpush1.msra.mxu0 0.0
      %1587 = vmatprep.subr.mxu0 0.0
      %1588 = vmatpush1.msra.mxu0 0.0
      %1589 = vmatprep.subr.mxu0 0.0
      %1590 = vmatpush1.msra.mxu0 0.0
      %1591 = vmatprep.subr.mxu0 0.0
      %1592 = vmatpush1.msra.mxu0 0.0
      %1593 = vmatprep.subr.mxu0 0.0
      %1594 = vmatpush1.msra.mxu0 0.0
      %1595 = vmatprep.subr.mxu0 0.0
      %1596 = vmatpush1.msra.mxu0 0.0
      %1597 = vmatprep.subr.mxu0 0.0
      %1598 = vmatpush1.msra.mxu0 0.0
      %1599 = vmatprep.subr.mxu0 0.0
      %1600 = vmatpush1.msra.mxu0 0.0
      %1601 = vmatprep.subr.mxu0 0.0
      %1602 = vmatpush1.msra.mxu0 0.0
      %1603 = vmatprep.subr.mxu0 0.0
      %1604 = vmatpush1.msra.mxu0 0.0
      %1605 = vmatprep.subr.mxu0 0.0
      %1606 = vmatpush1.msra.mxu0 0.0
      %1607 = vmatprep.subr.mxu0 0.0
      %1608 = vmatpush1.msra.mxu0 0.0
      %1609 = vmatprep.subr.mxu0 0.0
      %1610 = vmatpush1.msra.mxu0 0.0
      %1611 = vmatprep.subr.mxu0 0.0
      %1612 = vmatpush1.msra.mxu0 0.0
      %1613 = vmatprep.subr.mxu0 0.0
      %1614 = vmatpush1.msra.mxu0 0.0
      %1615 = vmatprep.subr.mxu0 0.0
      %1616 = vmatpush1.msra.mxu0 0.0
      %1617 = vmatprep.subr.mxu0 0.0
      %1618 = vmatpush1.msra.mxu0 0.0
      %1619 = vmatprep.subr.mxu0 0.0
      %1620 = vmatpush1.msra.mxu0 0.0
      %1621 = vmatprep.subr.mxu0 0.0
      %1622 = vmatpush1.msra.mxu0 0.0
      %1623 = vmatprep.subr.mxu0 0.0
      %1624 = vmatpush1.msra.mxu0 0.0
      %1625 = vmatprep.subr.mxu0 0.0
      %1626 = vmatpush1.msra.mxu0 0.0
      %1627 = vmatprep.mubr.f32.mxu0 0.0
      %1628 = vmatmul.mubr.f32.gmra.mrb[0].mxu0 %v1561
      %v1629 = vpop.f32.mrb[0].mxu0
      %v1630 = vadd.f32 0.0, %v1629
      %v1631 = vpop.f32.mrb[0].mxu0
      %1632 = vdwg.mxu0
      %1633 = vrot.lane.b32.xlu0 %v389, 56
      %v1634 = vpop.permute.xlu0 %1633
      %v1637 = vsel %vm395, %v1404, 0
      %1639 = vmatprep.subr.mxu0 0.0
      %1640 = vmatpush1.msra.mxu0 %v1634
      %1641 = vmatprep.subr.mxu0 0.0
      %1642 = vmatpush1.msra.mxu0 0.0
      %1643 = vmatprep.subr.mxu0 0.0
      %1644 = vmatpush1.msra.mxu0 0.0
      %1645 = vmatprep.subr.mxu0 0.0
      %1646 = vmatpush1.msra.mxu0 0.0
      %1647 = vmatprep.subr.mxu0 0.0
      %1648 = vmatpush1.msra.mxu0 0.0
      %1649 = vmatprep.subr.mxu0 0.0
      %1650 = vmatpush1.msra.mxu0 0.0
      %1651 = vmatprep.subr.mxu0 0.0
      %1652 = vmatpush1.msra.mxu0 0.0
      %1653 = vmatprep.subr.mxu0 0.0
      %1654 = vmatpush1.msra.mxu0 0.0
      %1655 = vmatprep.subr.mxu0 0.0
      %1656 = vmatpush1.msra.mxu0 0.0
      %1657 = vmatprep.subr.mxu0 0.0
      %1658 = vmatpush1.msra.mxu0 0.0
      %1659 = vmatprep.subr.mxu0 0.0
      %1660 = vmatpush1.msra.mxu0 0.0
      %1661 = vmatprep.subr.mxu0 0.0
      %1662 = vmatpush1.msra.mxu0 0.0
      %1663 = vmatprep.subr.mxu0 0.0
      %1664 = vmatpush1.msra.mxu0 0.0
      %1665 = vmatprep.subr.mxu0 0.0
      %1666 = vmatpush1.msra.mxu0 0.0
      %1667 = vmatprep.subr.mxu0 0.0
      %1668 = vmatpush1.msra.mxu0 0.0
      %1669 = vmatprep.subr.mxu0 0.0
      %1670 = vmatpush1.msra.mxu0 0.0
      %1671 = vmatprep.subr.mxu0 0.0
      %1672 = vmatpush1.msra.mxu0 0.0
      %1673 = vmatprep.subr.mxu0 0.0
      %1674 = vmatpush1.msra.mxu0 0.0
      %1675 = vmatprep.subr.mxu0 0.0
      %1676 = vmatpush1.msra.mxu0 0.0
      %1677 = vmatprep.subr.mxu0 0.0
      %1678 = vmatpush1.msra.mxu0 0.0
      %1679 = vmatprep.subr.mxu0 0.0
      %1680 = vmatpush1.msra.mxu0 0.0
      %1681 = vmatprep.subr.mxu0 0.0
      %1682 = vmatpush1.msra.mxu0 0.0
      %1683 = vmatprep.subr.mxu0 0.0
      %1684 = vmatpush1.msra.mxu0 0.0
      %1685 = vmatprep.subr.mxu0 0.0
      %1686 = vmatpush1.msra.mxu0 0.0
      %1687 = vmatprep.subr.mxu0 0.0
      %1688 = vmatpush1.msra.mxu0 0.0
      %1689 = vmatprep.subr.mxu0 0.0
      %1690 = vmatpush1.msra.mxu0 0.0
      %1691 = vmatprep.subr.mxu0 0.0
      %1692 = vmatpush1.msra.mxu0 0.0
      %1693 = vmatprep.subr.mxu0 0.0
      %1694 = vmatpush1.msra.mxu0 0.0
      %1695 = vmatprep.subr.mxu0 0.0
      %1696 = vmatpush1.msra.mxu0 0.0
      %1697 = vmatprep.subr.mxu0 0.0
      %1698 = vmatpush1.msra.mxu0 0.0
      %1699 = vmatprep.subr.mxu0 0.0
      %1700 = vmatpush1.msra.mxu0 0.0
      %1701 = vmatprep.subr.mxu0 0.0
      %1702 = vmatpush1.msra.mxu0 0.0
      %1703 = vmatprep.mubr.f32.mxu0 0.0
      %1704 = vmatmul.mubr.f32.gmra.mrb[0].mxu0 %v1637
      %v1705 = vpop.f32.mrb[0].mxu0
      %v1706 = vadd.f32 0.0, %v1705
      %v1707 = vpop.f32.mrb[0].mxu0
      %1708 = vdwg.mxu0
      %1709 = vrot.lane.b32.xlu0 %v374, 112
      %v1710 = vpop.permute.xlu0 %1709
      %1711 = vrot.lane.b32.xlu0 %v374, 80
      %v1712 = vpop.permute.xlu0 %1711
      %v1713 = vsel %vm395, %v1710, 0
      %v1715 = vsel %vm395, %v1712, 0
      %1717 = vmatprep.subr.mxu0 0.0
      %1718 = vmatpush1.xpose.msra.mxu0 %v1715
      %1719 = vmatprep.subr.mxu0 0.0
      %1720 = vmatpush1.xpose.msra.mxu0 0.0
      %1721 = vmatprep.subr.mxu0 0.0
      %1722 = vmatpush1.xpose.msra.mxu0 0.0
      %1723 = vmatprep.subr.mxu0 0.0
      %1724 = vmatpush1.xpose.msra.mxu0 0.0
      %1725 = vmatprep.subr.mxu0 0.0
      %1726 = vmatpush1.xpose.msra.mxu0 0.0
      %1727 = vmatprep.subr.mxu0 0.0
      %1728 = vmatpush1.xpose.msra.mxu0 0.0
      %1729 = vmatprep.subr.mxu0 0.0
      %1730 = vmatpush1.xpose.msra.mxu0 0.0
      %1731 = vmatprep.subr.mxu0 0.0
      %1732 = vmatpush1.xpose.msra.mxu0 0.0
      %1733 = vmatprep.subr.mxu0 0.0
      %1734 = vmatpush1.xpose.msra.mxu0 0.0
      %1735 = vmatprep.subr.mxu0 0.0
      %1736 = vmatpush1.xpose.msra.mxu0 0.0
      %1737 = vmatprep.subr.mxu0 0.0
      %1738 = vmatpush1.xpose.msra.mxu0 0.0
      %1739 = vmatprep.subr.mxu0 0.0
      %1740 = vmatpush1.xpose.msra.mxu0 0.0
      %1741 = vmatprep.subr.mxu0 0.0
      %1742 = vmatpush1.xpose.msra.mxu0 0.0
      %1743 = vmatprep.subr.mxu0 0.0
      %1744 = vmatpush1.xpose.msra.mxu0 0.0
      %1745 = vmatprep.subr.mxu0 0.0
      %1746 = vmatpush1.xpose.msra.mxu0 0.0
      %1747 = vmatprep.subr.mxu0 0.0
      %1748 = vmatpush1.xpose.msra.mxu0 0.0
      %1749 = vmatprep.subr.mxu0 0.0
      %1750 = vmatpush1.xpose.msra.mxu0 0.0
      %1751 = vmatprep.subr.mxu0 0.0
      %1752 = vmatpush1.xpose.msra.mxu0 0.0
      %1753 = vmatprep.subr.mxu0 0.0
      %1754 = vmatpush1.xpose.msra.mxu0 0.0
      %1755 = vmatprep.subr.mxu0 0.0
      %1756 = vmatpush1.xpose.msra.mxu0 0.0
      %1757 = vmatprep.subr.mxu0 0.0
      %1758 = vmatpush1.xpose.msra.mxu0 0.0
      %1759 = vmatprep.subr.mxu0 0.0
      %1760 = vmatpush1.xpose.msra.mxu0 0.0
      %1761 = vmatprep.subr.mxu0 0.0
      %1762 = vmatpush1.xpose.msra.mxu0 0.0
      %1763 = vmatprep.subr.mxu0 0.0
      %1764 = vmatpush1.xpose.msra.mxu0 0.0
      %1765 = vmatprep.subr.mxu0 0.0
      %1766 = vmatpush1.xpose.msra.mxu0 0.0
      %1767 = vmatprep.subr.mxu0 0.0
      %1768 = vmatpush1.xpose.msra.mxu0 0.0
      %1769 = vmatprep.subr.mxu0 0.0
      %1770 = vmatpush1.xpose.msra.mxu0 0.0
      %1771 = vmatprep.subr.mxu0 0.0
      %1772 = vmatpush1.xpose.msra.mxu0 0.0
      %1773 = vmatprep.subr.mxu0 0.0
      %1774 = vmatpush1.xpose.msra.mxu0 0.0
      %1775 = vmatprep.subr.mxu0 0.0
      %1776 = vmatpush1.xpose.msra.mxu0 0.0
      %1777 = vmatprep.subr.mxu0 0.0
      %1778 = vmatpush1.xpose.msra.mxu0 0.0
      %1779 = vmatprep.subr.mxu0 0.0
      %1780 = vmatpush1.xpose.msra.mxu0 0.0
      %1781 = vmatprep.mubr.f32.mxu0 0.0
      %1782 = vmatmul.mubr.f32.gmra.mrb[0].mxu0 %v1713
      %v1783 = vpop.f32.mrb[0].mxu0
      %v1784 = vadd.f32 0.0, %v1783
      %v1785 = vpop.f32.mrb[0].mxu0
      %1786 = vdwg.mxu0
      %1787 = vrot.lane.b32.xlu0 %v379, 112
      %v1788 = vpop.permute.xlu0 %1787
      %1789 = vrot.lane.b32.xlu0 %v379, 80
      %v1790 = vpop.permute.xlu0 %1789
      %v1791 = vsel %vm395, %v1788, 0
      %v1793 = vsel %vm395, %v1790, 0
      %1795 = vmatprep.subr.mxu0 0.0
      %1796 = vmatpush1.xpose.msra.mxu0 %v1793
      %1797 = vmatprep.subr.mxu0 0.0
      %1798 = vmatpush1.xpose.msra.mxu0 0.0
      %1799 = vmatprep.subr.mxu0 0.0
      %1800 = vmatpush1.xpose.msra.mxu0 0.0
      %1801 = vmatprep.subr.mxu0 0.0
      %1802 = vmatpush1.xpose.msra.mxu0 0.0
      %1803 = vmatprep.subr.mxu0 0.0
      %1804 = vmatpush1.xpose.msra.mxu0 0.0
      %1805 = vmatprep.subr.mxu0 0.0
      %1806 = vmatpush1.xpose.msra.mxu0 0.0
      %1807 = vmatprep.subr.mxu0 0.0
      %1808 = vmatpush1.xpose.msra.mxu0 0.0
      %1809 = vmatprep.subr.mxu0 0.0
      %1810 = vmatpush1.xpose.msra.mxu0 0.0
      %1811 = vmatprep.subr.mxu0 0.0
      %1812 = vmatpush1.xpose.msra.mxu0 0.0
      %1813 = vmatprep.subr.mxu0 0.0
      %1814 = vmatpush1.xpose.msra.mxu0 0.0
      %1815 = vmatprep.subr.mxu0 0.0
      %1816 = vmatpush1.xpose.msra.mxu0 0.0
      %1817 = vmatprep.subr.mxu0 0.0
      %1818 = vmatpush1.xpose.msra.mxu0 0.0
      %1819 = vmatprep.subr.mxu0 0.0
      %1820 = vmatpush1.xpose.msra.mxu0 0.0
      %1821 = vmatprep.subr.mxu0 0.0
      %1822 = vmatpush1.xpose.msra.mxu0 0.0
      %1823 = vmatprep.subr.mxu0 0.0
      %1824 = vmatpush1.xpose.msra.mxu0 0.0
      %1825 = vmatprep.subr.mxu0 0.0
      %1826 = vmatpush1.xpose.msra.mxu0 0.0
      %1827 = vmatprep.subr.mxu0 0.0
      %1828 = vmatpush1.xpose.msra.mxu0 0.0
      %1829 = vmatprep.subr.mxu0 0.0
      %1830 = vmatpush1.xpose.msra.mxu0 0.0
      %1831 = vmatprep.subr.mxu0 0.0
      %1832 = vmatpush1.xpose.msra.mxu0 0.0
      %1833 = vmatprep.subr.mxu0 0.0
      %1834 = vmatpush1.xpose.msra.mxu0 0.0
      %1835 = vmatprep.subr.mxu0 0.0
      %1836 = vmatpush1.xpose.msra.mxu0 0.0
      %1837 = vmatprep.subr.mxu0 0.0
      %1838 = vmatpush1.xpose.msra.mxu0 0.0
      %1839 = vmatprep.subr.mxu0 0.0
      %1840 = vmatpush1.xpose.msra.mxu0 0.0
      %1841 = vmatprep.subr.mxu0 0.0
      %1842 = vmatpush1.xpose.msra.mxu0 0.0
      %1843 = vmatprep.subr.mxu0 0.0
      %1844 = vmatpush1.xpose.msra.mxu0 0.0
      %1845 = vmatprep.subr.mxu0 0.0
      %1846 = vmatpush1.xpose.msra.mxu0 0.0
      %1847 = vmatprep.subr.mxu0 0.0
      %1848 = vmatpush1.xpose.msra.mxu0 0.0
      %1849 = vmatprep.subr.mxu0 0.0
      %1850 = vmatpush1.xpose.msra.mxu0 0.0
      %1851 = vmatprep.subr.mxu0 0.0
      %1852 = vmatpush1.xpose.msra.mxu0 0.0
      %1853 = vmatprep.subr.mxu0 0.0
      %1854 = vmatpush1.xpose.msra.mxu0 0.0
      %1855 = vmatprep.subr.mxu0 0.0
      %1856 = vmatpush1.xpose.msra.mxu0 0.0
      %1857 = vmatprep.subr.mxu0 0.0
      %1858 = vmatpush1.xpose.msra.mxu0 0.0
      %1859 = vmatprep.mubr.f32.mxu0 0.0
      %1860 = vmatmul.mubr.f32.gmra.mrb[0].mxu0 %v1791
      %v1861 = vpop.f32.mrb[0].mxu0
      %v1862 = vadd.f32 0.0, %v1861
      %v1863 = vpop.f32.mrb[0].mxu0
      %1864 = vdwg.mxu0
      %1865 = vrot.lane.b32.xlu0 %v384, 112
      %v1866 = vpop.permute.xlu0 %1865
      %1867 = vrot.lane.b32.xlu0 %v384, 80
      %v1868 = vpop.permute.xlu0 %1867
      %v1869 = vsel %vm395, %v1866, 0
      %v1871 = vsel %vm395, %v1868, 0
      %1873 = vmatprep.subr.mxu0 0.0
      %1874 = vmatpush1.xpose.msra.mxu0 %v1871
      %1875 = vmatprep.subr.mxu0 0.0
      %1876 = vmatpush1.xpose.msra.mxu0 0.0
      %1877 = vmatprep.subr.mxu0 0.0
      %1878 = vmatpush1.xpose.msra.mxu0 0.0
      %1879 = vmatprep.subr.mxu0 0.0
      %1880 = vmatpush1.xpose.msra.mxu0 0.0
      %1881 = vmatprep.subr.mxu0 0.0
      %1882 = vmatpush1.xpose.msra.mxu0 0.0
      %1883 = vmatprep.subr.mxu0 0.0
      %1884 = vmatpush1.xpose.msra.mxu0 0.0
      %1885 = vmatprep.subr.mxu0 0.0
      %1886 = vmatpush1.xpose.msra.mxu0 0.0
      %1887 = vmatprep.subr.mxu0 0.0
      %1888 = vmatpush1.xpose.msra.mxu0 0.0
      %1889 = vmatprep.subr.mxu0 0.0
      %1890 = vmatpush1.xpose.msra.mxu0 0.0
      %1891 = vmatprep.subr.mxu0 0.0
      %1892 = vmatpush1.xpose.msra.mxu0 0.0
      %1893 = vmatprep.subr.mxu0 0.0
      %1894 = vmatpush1.xpose.msra.mxu0 0.0
      %1895 = vmatprep.subr.mxu0 0.0
      %1896 = vmatpush1.xpose.msra.mxu0 0.0
      %1897 = vmatprep.subr.mxu0 0.0
      %1898 = vmatpush1.xpose.msra.mxu0 0.0
      %1899 = vmatprep.subr.mxu0 0.0
      %1900 = vmatpush1.xpose.msra.mxu0 0.0
      %1901 = vmatprep.subr.mxu0 0.0
      %1902 = vmatpush1.xpose.msra.mxu0 0.0
      %1903 = vmatprep.subr.mxu0 0.0
      %1904 = vmatpush1.xpose.msra.mxu0 0.0
      %1905 = vmatprep.subr.mxu0 0.0
      %1906 = vmatpush1.xpose.msra.mxu0 0.0
      %1907 = vmatprep.subr.mxu0 0.0
      %1908 = vmatpush1.xpose.msra.mxu0 0.0
      %1909 = vmatprep.subr.mxu0 0.0
      %1910 = vmatpush1.xpose.msra.mxu0 0.0
      %1911 = vmatprep.subr.mxu0 0.0
      %1912 = vmatpush1.xpose.msra.mxu0 0.0
      %1913 = vmatprep.subr.mxu0 0.0
      %1914 = vmatpush1.xpose.msra.mxu0 0.0
      %1915 = vmatprep.subr.mxu0 0.0
      %1916 = vmatpush1.xpose.msra.mxu0 0.0
      %1917 = vmatprep.subr.mxu0 0.0
      %1918 = vmatpush1.xpose.msra.mxu0 0.0
      %1919 = vmatprep.subr.mxu0 0.0
      %1920 = vmatpush1.xpose.msra.mxu0 0.0
      %1921 = vmatprep.subr.mxu0 0.0
      %1922 = vmatpush1.xpose.msra.mxu0 0.0
      %1923 = vmatprep.subr.mxu0 0.0
      %1924 = vmatpush1.xpose.msra.mxu0 0.0
      %1925 = vmatprep.subr.mxu0 0.0
      %1926 = vmatpush1.xpose.msra.mxu0 0.0
      %1927 = vmatprep.subr.mxu0 0.0
      %1928 = vmatpush1.xpose.msra.mxu0 0.0
      %1929 = vmatprep.subr.mxu0 0.0
      %1930 = vmatpush1.xpose.msra.mxu0 0.0
      %1931 = vmatprep.subr.mxu0 0.0
      %1932 = vmatpush1.xpose.msra.mxu0 0.0
      %1933 = vmatprep.subr.mxu0 0.0
      %1934 = vmatpush1.xpose.msra.mxu0 0.0
      %1935 = vmatprep.subr.mxu0 0.0
      %1936 = vmatpush1.xpose.msra.mxu0 0.0
      %1937 = vmatprep.mubr.f32.mxu0 0.0
      %1938 = vmatmul.mubr.f32.gmra.mrb[0].mxu0 %v1869
      %v1939 = vpop.f32.mrb[0].mxu0
      %v1940 = vadd.f32 0.0, %v1939
      %v1941 = vpop.f32.mrb[0].mxu0
      %1942 = vdwg.mxu0
      %1943 = vrot.lane.b32.xlu0 %v389, 112
      %v1944 = vpop.permute.xlu0 %1943
      %1945 = vrot.lane.b32.xlu0 %v389, 80
      %v1946 = vpop.permute.xlu0 %1945
      %v1947 = vsel %vm395, %v1944, 0
      %v1949 = vsel %vm395, %v1946, 0
      %1951 = vmatprep.subr.mxu0 0.0
      %1952 = vmatpush1.xpose.msra.mxu0 %v1949
      %1953 = vmatprep.subr.mxu0 0.0
      %1954 = vmatpush1.xpose.msra.mxu0 0.0
      %1955 = vmatprep.subr.mxu0 0.0
      %1956 = vmatpush1.xpose.msra.mxu0 0.0
      %1957 = vmatprep.subr.mxu0 0.0
      %1958 = vmatpush1.xpose.msra.mxu0 0.0
      %1959 = vmatprep.subr.mxu0 0.0
      %1960 = vmatpush1.xpose.msra.mxu0 0.0
      %1961 = vmatprep.subr.mxu0 0.0
      %1962 = vmatpush1.xpose.msra.mxu0 0.0
      %1963 = vmatprep.subr.mxu0 0.0
      %1964 = vmatpush1.xpose.msra.mxu0 0.0
      %1965 = vmatprep.subr.mxu0 0.0
      %1966 = vmatpush1.xpose.msra.mxu0 0.0
      %1967 = vmatprep.subr.mxu0 0.0
      %1968 = vmatpush1.xpose.msra.mxu0 0.0
      %1969 = vmatprep.subr.mxu0 0.0
      %1970 = vmatpush1.xpose.msra.mxu0 0.0
      %1971 = vmatprep.subr.mxu0 0.0
      %1972 = vmatpush1.xpose.msra.mxu0 0.0
      %1973 = vmatprep.subr.mxu0 0.0
      %1974 = vmatpush1.xpose.msra.mxu0 0.0
      %1975 = vmatprep.subr.mxu0 0.0
      %1976 = vmatpush1.xpose.msra.mxu0 0.0
      %1977 = vmatprep.subr.mxu0 0.0
      %1978 = vmatpush1.xpose.msra.mxu0 0.0
      %1979 = vmatprep.subr.mxu0 0.0
      %1980 = vmatpush1.xpose.msra.mxu0 0.0
      %1981 = vmatprep.subr.mxu0 0.0
      %1982 = vmatpush1.xpose.msra.mxu0 0.0
      %1983 = vmatprep.subr.mxu0 0.0
      %1984 = vmatpush1.xpose.msra.mxu0 0.0
      %1985 = vmatprep.subr.mxu0 0.0
      %1986 = vmatpush1.xpose.msra.mxu0 0.0
      %1987 = vmatprep.subr.mxu0 0.0
      %1988 = vmatpush1.xpose.msra.mxu0 0.0
      %1989 = vmatprep.subr.mxu0 0.0
      %1990 = vmatpush1.xpose.msra.mxu0 0.0
      %1991 = vmatprep.subr.mxu0 0.0
      %1992 = vmatpush1.xpose.msra.mxu0 0.0
      %1993 = vmatprep.subr.mxu0 0.0
      %1994 = vmatpush1.xpose.msra.mxu0 0.0
      %1995 = vmatprep.subr.mxu0 0.0
      %1996 = vmatpush1.xpose.msra.mxu0 0.0
      %1997 = vmatprep.subr.mxu0 0.0
      %1998 = vmatpush1.xpose.msra.mxu0 0.0
      %1999 = vmatprep.subr.mxu0 0.0
      %2000 = vmatpush1.xpose.msra.mxu0 0.0
      %2001 = vmatprep.subr.mxu0 0.0
      %2002 = vmatpush1.xpose.msra.mxu0 0.0
      %2003 = vmatprep.subr.mxu0 0.0
      %2004 = vmatpush1.xpose.msra.mxu0 0.0
      %2005 = vmatprep.subr.mxu0 0.0
      %2006 = vmatpush1.xpose.msra.mxu0 0.0
      %2007 = vmatprep.subr.mxu0 0.0
      %2008 = vmatpush1.xpose.msra.mxu0 0.0
      %2009 = vmatprep.subr.mxu0 0.0
      %2010 = vmatpush1.xpose.msra.mxu0 0.0
      %2011 = vmatprep.subr.mxu0 0.0
      %2012 = vmatpush1.xpose.msra.mxu0 0.0
      %2013 = vmatprep.subr.mxu0 0.0
      %2014 = vmatpush1.xpose.msra.mxu0 0.0
      %2015 = vmatprep.mubr.f32.mxu0 0.0
      %2016 = vmatmul.mubr.f32.gmra.mrb[0].mxu0 %v1947
      %v2017 = vpop.f32.mrb[0].mxu0
      %v2018 = vadd.f32 0.0, %v2017
      %v2019 = vpop.f32.mrb[0].mxu0
      %2020 = vdwg.mxu0
      %v2021 = vsel %vm395, %v1784, -inf
      %2022 = vmax.xlane.f32.xlu0 %v2021
      %v2023 = vpop.xlane.xlu0 %2022
      %v2024 = vsel %vm395, %v1862, -inf
      %2025 = vmax.xlane.f32.xlu0 %v2024
      %v2026 = vpop.xlane.xlu0 %2025
      %v2027 = vsel %vm395, %v1940, -inf
      %2028 = vmax.xlane.f32.xlu0 %v2027
      %v2029 = vpop.xlane.xlu0 %2028
      %v2030 = vsel %vm395, %v2018, -inf
      %2031 = vmax.xlane.f32.xlu0 %v2030
      %v2032 = vpop.xlane.xlu0 %2031
      %v2033 = vsub.f32 %v1784, %v2023
      %v2034 = vsub.f32 %v1862, %v2026
      %v2035 = vsub.f32 %v1940, %v2029
      %v2036 = vsub.f32 %v2018, %v2032
      %v2037 = vmul.f32 %v2033, 1.442695
      %v2038 = vpow.pop %v2037
      %v2039 = vmul.f32 %v2034, 1.442695
      %v2040 = vpow.pop %v2039
      %v2041 = vmul.f32 %v2035, 1.442695
      %v2042 = vpow.pop %v2041
      %v2043 = vmul.f32 %v2036, 1.442695
      %v2044 = vpow.pop %v2043
      %v2045 = vsel %vm395, %v2038, 0.0
      %2046 = vadd.xlane.f32.xlu0 %v2045
      %v2047 = vpop.xlane.xlu0 %2046
      %v2048 = vsel %vm395, %v2040, 0.0
      %2049 = vadd.xlane.f32.xlu0 %v2048
      %v2050 = vpop.xlane.xlu0 %2049
      %v2051 = vsel %vm395, %v2042, 0.0
      %2052 = vadd.xlane.f32.xlu0 %v2051
      %v2053 = vpop.xlane.xlu0 %2052
      %v2054 = vsel %vm395, %v2044, 0.0
      %2055 = vadd.xlane.f32.xlu0 %v2054
      %v2056 = vpop.xlane.xlu0 %2055
      %v2057 = vrcp.pop %v2047
      %v2058 = vrcp.pop %v2050
      %v2059 = vrcp.pop %v2053
      %v2060 = vrcp.pop %v2056
      %v2061 = vmul.f32 %v2038, %v2057
      %v2062 = vmul.f32 %v2040, %v2058
      %v2063 = vmul.f32 %v2042, %v2059
      %v2064 = vmul.f32 %v2044, %v2060
      %2065 = vrot.lane.b32.xlu0 %v374, 48
      %v2066 = vpop.permute.xlu0 %2065
      %v2069 = vsel %vm395, %v2061, 0
      %2071 = vmatprep.subr.mxu0 0.0
      %2072 = vmatpush1.msra.mxu0 %v2066
      %2073 = vmatprep.subr.mxu0 0.0
      %2074 = vmatpush1.msra.mxu0 0.0
      %2075 = vmatprep.subr.mxu0 0.0
      %2076 = vmatpush1.msra.mxu0 0.0
      %2077 = vmatprep.subr.mxu0 0.0
      %2078 = vmatpush1.msra.mxu0 0.0
      %2079 = vmatprep.subr.mxu0 0.0
      %2080 = vmatpush1.msra.mxu0 0.0
      %2081 = vmatprep.subr.mxu0 0.0
      %2082 = vmatpush1.msra.mxu0 0.0
      %2083 = vmatprep.subr.mxu0 0.0
      %2084 = vmatpush1.msra.mxu0 0.0
      %2085 = vmatprep.subr.mxu0 0.0
      %2086 = vmatpush1.msra.mxu0 0.0
      %2087 = vmatprep.subr.mxu0 0.0
      %2088 = vmatpush1.msra.mxu0 0.0
      %2089 = vmatprep.subr.mxu0 0.0
      %2090 = vmatpush1.msra.mxu0 0.0
      %2091 = vmatprep.subr.mxu0 0.0
      %2092 = vmatpush1.msra.mxu0 0.0
      %2093 = vmatprep.subr.mxu0 0.0
      %2094 = vmatpush1.msra.mxu0 0.0
      %2095 = vmatprep.subr.mxu0 0.0
      %2096 = vmatpush1.msra.mxu0 0.0
      %2097 = vmatprep.subr.mxu0 0.0
      %2098 = vmatpush1.msra.mxu0 0.0
      %2099 = vmatprep.subr.mxu0 0.0
      %2100 = vmatpush1.msra.mxu0 0.0
      %2101 = vmatprep.subr.mxu0 0.0
      %2102 = vmatpush1.msra.mxu0 0.0
      %2103 = vmatprep.subr.mxu0 0.0
      %2104 = vmatpush1.msra.mxu0 0.0
      %2105 = vmatprep.subr.mxu0 0.0
      %2106 = vmatpush1.msra.mxu0 0.0
      %2107 = vmatprep.subr.mxu0 0.0
      %2108 = vmatpush1.msra.mxu0 0.0
      %2109 = vmatprep.subr.mxu0 0.0
      %2110 = vmatpush1.msra.mxu0 0.0
      %2111 = vmatprep.subr.mxu0 0.0
      %2112 = vmatpush1.msra.mxu0 0.0
      %2113 = vmatprep.subr.mxu0 0.0
      %2114 = vmatpush1.msra.mxu0 0.0
      %2115 = vmatprep.subr.mxu0 0.0
      %2116 = vmatpush1.msra.mxu0 0.0
      %2117 = vmatprep.subr.mxu0 0.0
      %2118 = vmatpush1.msra.mxu0 0.0
      %2119 = vmatprep.subr.mxu0 0.0
      %2120 = vmatpush1.msra.mxu0 0.0
      %2121 = vmatprep.subr.mxu0 0.0
      %2122 = vmatpush1.msra.mxu0 0.0
      %2123 = vmatprep.subr.mxu0 0.0
      %2124 = vmatpush1.msra.mxu0 0.0
      %2125 = vmatprep.subr.mxu0 0.0
      %2126 = vmatpush1.msra.mxu0 0.0
      %2127 = vmatprep.subr.mxu0 0.0
      %2128 = vmatpush1.msra.mxu0 0.0
      %2129 = vmatprep.subr.mxu0 0.0
      %2130 = vmatpush1.msra.mxu0 0.0
      %2131 = vmatprep.subr.mxu0 0.0
      %2132 = vmatpush1.msra.mxu0 0.0
      %2133 = vmatprep.subr.mxu0 0.0
      %2134 = vmatpush1.msra.mxu0 0.0
      %2135 = vmatprep.mubr.f32.mxu0 0.0
      %2136 = vmatmul.mubr.f32.gmra.mrb[0].mxu0 %v2069
      %v2137 = vpop.f32.mrb[0].mxu0
      %v2138 = vadd.f32 0.0, %v2137
      %v2139 = vpop.f32.mrb[0].mxu0
      %2140 = vdwg.mxu0
      %2141 = vrot.lane.b32.xlu0 %v379, 48
      %v2142 = vpop.permute.xlu0 %2141
      %v2145 = vsel %vm395, %v2062, 0
      %2147 = vmatprep.subr.mxu0 0.0
      %2148 = vmatpush1.msra.mxu0 %v2142
      %2149 = vmatprep.subr.mxu0 0.0
      %2150 = vmatpush1.msra.mxu0 0.0
      %2151 = vmatprep.subr.mxu0 0.0
      %2152 = vmatpush1.msra.mxu0 0.0
      %2153 = vmatprep.subr.mxu0 0.0
      %2154 = vmatpush1.msra.mxu0 0.0
      %2155 = vmatprep.subr.mxu0 0.0
      %2156 = vmatpush1.msra.mxu0 0.0
      %2157 = vmatprep.subr.mxu0 0.0
      %2158 = vmatpush1.msra.mxu0 0.0
      %2159 = vmatprep.subr.mxu0 0.0
      %2160 = vmatpush1.msra.mxu0 0.0
      %2161 = vmatprep.subr.mxu0 0.0
      %2162 = vmatpush1.msra.mxu0 0.0
      %2163 = vmatprep.subr.mxu0 0.0
      %2164 = vmatpush1.msra.mxu0 0.0
      %2165 = vmatprep.subr.mxu0 0.0
      %2166 = vmatpush1.msra.mxu0 0.0
      %2167 = vmatprep.subr.mxu0 0.0
      %2168 = vmatpush1.msra.mxu0 0.0
      %2169 = vmatprep.subr.mxu0 0.0
      %2170 = vmatpush1.msra.mxu0 0.0
      %2171 = vmatprep.subr.mxu0 0.0
      %2172 = vmatpush1.msra.mxu0 0.0
      %2173 = vmatprep.subr.mxu0 0.0
      %2174 = vmatpush1.msra.mxu0 0.0
      %2175 = vmatprep.subr.mxu0 0.0
      %2176 = vmatpush1.msra.mxu0 0.0
      %2177 = vmatprep.subr.mxu0 0.0
      %2178 = vmatpush1.msra.mxu0 0.0
      %2179 = vmatprep.subr.mxu0 0.0
      %2180 = vmatpush1.msra.mxu0 0.0
      %2181 = vmatprep.subr.mxu0 0.0
      %2182 = vmatpush1.msra.mxu0 0.0
      %2183 = vmatprep.subr.mxu0 0.0
      %2184 = vmatpush1.msra.mxu0 0.0
      %2185 = vmatprep.subr.mxu0 0.0
      %2186 = vmatpush1.msra.mxu0 0.0
      %2187 = vmatprep.subr.mxu0 0.0
      %2188 = vmatpush1.msra.mxu0 0.0
      %2189 = vmatprep.subr.mxu0 0.0
      %2190 = vmatpush1.msra.mxu0 0.0
      %2191 = vmatprep.subr.mxu0 0.0
      %2192 = vmatpush1.msra.mxu0 0.0
      %2193 = vmatprep.subr.mxu0 0.0
      %2194 = vmatpush1.msra.mxu0 0.0
      %2195 = vmatprep.subr.mxu0 0.0
      %2196 = vmatpush1.msra.mxu0 0.0
      %2197 = vmatprep.subr.mxu0 0.0
      %2198 = vmatpush1.msra.mxu0 0.0
      %2199 = vmatprep.subr.mxu0 0.0
      %2200 = vmatpush1.msra.mxu0 0.0
      %2201 = vmatprep.subr.mxu0 0.0
      %2202 = vmatpush1.msra.mxu0 0.0
      %2203 = vmatprep.subr.mxu0 0.0
      %2204 = vmatpush1.msra.mxu0 0.0
      %2205 = vmatprep.subr.mxu0 0.0
      %2206 = vmatpush1.msra.mxu0 0.0
      %2207 = vmatprep.subr.mxu0 0.0
      %2208 = vmatpush1.msra.mxu0 0.0
      %2209 = vmatprep.subr.mxu0 0.0
      %2210 = vmatpush1.msra.mxu0 0.0
      %2211 = vmatprep.mubr.f32.mxu0 0.0
      %2212 = vmatmul.mubr.f32.gmra.mrb[0].mxu0 %v2145
      %v2213 = vpop.f32.mrb[0].mxu0
      %v2214 = vadd.f32 0.0, %v2213
      %v2215 = vpop.f32.mrb[0].mxu0
      %2216 = vdwg.mxu0
      %2217 = vrot.lane.b32.xlu0 %v384, 48
      %v2218 = vpop.permute.xlu0 %2217
      %v2221 = vsel %vm395, %v2063, 0
      %2223 = vmatprep.subr.mxu0 0.0
      %2224 = vmatpush1.msra.mxu0 %v2218
      %2225 = vmatprep.subr.mxu0 0.0
      %2226 = vmatpush1.msra.mxu0 0.0
      %2227 = vmatprep.subr.mxu0 0.0
      %2228 = vmatpush1.msra.mxu0 0.0
      %2229 = vmatprep.subr.mxu0 0.0
      %2230 = vmatpush1.msra.mxu0 0.0
      %2231 = vmatprep.subr.mxu0 0.0
      %2232 = vmatpush1.msra.mxu0 0.0
      %2233 = vmatprep.subr.mxu0 0.0
      %2234 = vmatpush1.msra.mxu0 0.0
      %2235 = vmatprep.subr.mxu0 0.0
      %2236 = vmatpush1.msra.mxu0 0.0
      %2237 = vmatprep.subr.mxu0 0.0
      %2238 = vmatpush1.msra.mxu0 0.0
      %2239 = vmatprep.subr.mxu0 0.0
      %2240 = vmatpush1.msra.mxu0 0.0
      %2241 = vmatprep.subr.mxu0 0.0
      %2242 = vmatpush1.msra.mxu0 0.0
      %2243 = vmatprep.subr.mxu0 0.0
      %2244 = vmatpush1.msra.mxu0 0.0
      %2245 = vmatprep.subr.mxu0 0.0
      %2246 = vmatpush1.msra.mxu0 0.0
      %2247 = vmatprep.subr.mxu0 0.0
      %2248 = vmatpush1.msra.mxu0 0.0
      %2249 = vmatprep.subr.mxu0 0.0
      %2250 = vmatpush1.msra.mxu0 0.0
      %2251 = vmatprep.subr.mxu0 0.0
      %2252 = vmatpush1.msra.mxu0 0.0
      %2253 = vmatprep.subr.mxu0 0.0
      %2254 = vmatpush1.msra.mxu0 0.0
      %2255 = vmatprep.subr.mxu0 0.0
      %2256 = vmatpush1.msra.mxu0 0.0
      %2257 = vmatprep.subr.mxu0 0.0
      %2258 = vmatpush1.msra.mxu0 0.0
      %2259 = vmatprep.subr.mxu0 0.0
      %2260 = vmatpush1.msra.mxu0 0.0
      %2261 = vmatprep.subr.mxu0 0.0
      %2262 = vmatpush1.msra.mxu0 0.0
      %2263 = vmatprep.subr.mxu0 0.0
      %2264 = vmatpush1.msra.mxu0 0.0
      %2265 = vmatprep.subr.mxu0 0.0
      %2266 = vmatpush1.msra.mxu0 0.0
      %2267 = vmatprep.subr.mxu0 0.0
      %2268 = vmatpush1.msra.mxu0 0.0
      %2269 = vmatprep.subr.mxu0 0.0
      %2270 = vmatpush1.msra.mxu0 0.0
      %2271 = vmatprep.subr.mxu0 0.0
      %2272 = vmatpush1.msra.mxu0 0.0
      %2273 = vmatprep.subr.mxu0 0.0
      %2274 = vmatpush1.msra.mxu0 0.0
      %2275 = vmatprep.subr.mxu0 0.0
      %2276 = vmatpush1.msra.mxu0 0.0
      %2277 = vmatprep.subr.mxu0 0.0
      %2278 = vmatpush1.msra.mxu0 0.0
      %2279 = vmatprep.subr.mxu0 0.0
      %2280 = vmatpush1.msra.mxu0 0.0
      %2281 = vmatprep.subr.mxu0 0.0
      %2282 = vmatpush1.msra.mxu0 0.0
      %2283 = vmatprep.subr.mxu0 0.0
      %2284 = vmatpush1.msra.mxu0 0.0
      %2285 = vmatprep.subr.mxu0 0.0
      %2286 = vmatpush1.msra.mxu0 0.0
      %2287 = vmatprep.mubr.f32.mxu0 0.0
      %2288 = vmatmul.mubr.f32.gmra.mrb[0].mxu0 %v2221
      %v2289 = vpop.f32.mrb[0].mxu0
      %v2290 = vadd.f32 0.0, %v2289
      %v2291 = vpop.f32.mrb[0].mxu0
      %2292 = vdwg.mxu0
      %2293 = vrot.lane.b32.xlu0 %v389, 48
      %v2294 = vpop.permute.xlu0 %2293
      %v2297 = vsel %vm395, %v2064, 0
      %2299 = vmatprep.subr.mxu0 0.0
      %2300 = vmatpush1.msra.mxu0 %v2294
      %2301 = vmatprep.subr.mxu0 0.0
      %2302 = vmatpush1.msra.mxu0 0.0
      %2303 = vmatprep.subr.mxu0 0.0
      %2304 = vmatpush1.msra.mxu0 0.0
      %2305 = vmatprep.subr.mxu0 0.0
      %2306 = vmatpush1.msra.mxu0 0.0
      %2307 = vmatprep.subr.mxu0 0.0
      %2308 = vmatpush1.msra.mxu0 0.0
      %2309 = vmatprep.subr.mxu0 0.0
      %2310 = vmatpush1.msra.mxu0 0.0
      %2311 = vmatprep.subr.mxu0 0.0
      %2312 = vmatpush1.msra.mxu0 0.0
      %2313 = vmatprep.subr.mxu0 0.0
      %2314 = vmatpush1.msra.mxu0 0.0
      %2315 = vmatprep.subr.mxu0 0.0
      %2316 = vmatpush1.msra.mxu0 0.0
      %2317 = vmatprep.subr.mxu0 0.0
      %2318 = vmatpush1.msra.mxu0 0.0
      %2319 = vmatprep.subr.mxu0 0.0
      %2320 = vmatpush1.msra.mxu0 0.0
      %2321 = vmatprep.subr.mxu0 0.0
      %2322 = vmatpush1.msra.mxu0 0.0
      %2323 = vmatprep.subr.mxu0 0.0
      %2324 = vmatpush1.msra.mxu0 0.0
      %2325 = vmatprep.subr.mxu0 0.0
      %2326 = vmatpush1.msra.mxu0 0.0
      %2327 = vmatprep.subr.mxu0 0.0
      %2328 = vmatpush1.msra.mxu0 0.0
      %2329 = vmatprep.subr.mxu0 0.0
      %2330 = vmatpush1.msra.mxu0 0.0
      %2331 = vmatprep.subr.mxu0 0.0
      %2332 = vmatpush1.msra.mxu0 0.0
      %2333 = vmatprep.subr.mxu0 0.0
      %2334 = vmatpush1.msra.mxu0 0.0
      %2335 = vmatprep.subr.mxu0 0.0
      %2336 = vmatpush1.msra.mxu0 0.0
      %2337 = vmatprep.subr.mxu0 0.0
      %2338 = vmatpush1.msra.mxu0 0.0
      %2339 = vmatprep.subr.mxu0 0.0
      %2340 = vmatpush1.msra.mxu0 0.0
      %2341 = vmatprep.subr.mxu0 0.0
      %2342 = vmatpush1.msra.mxu0 0.0
      %2343 = vmatprep.subr.mxu0 0.0
      %2344 = vmatpush1.msra.mxu0 0.0
      %2345 = vmatprep.subr.mxu0 0.0
      %2346 = vmatpush1.msra.mxu0 0.0
      %2347 = vmatprep.subr.mxu0 0.0
      %2348 = vmatpush1.msra.mxu0 0.0
      %2349 = vmatprep.subr.mxu0 0.0
      %2350 = vmatpush1.msra.mxu0 0.0
      %2351 = vmatprep.subr.mxu0 0.0
      %2352 = vmatpush1.msra.mxu0 0.0
      %2353 = vmatprep.subr.mxu0 0.0
      %2354 = vmatpush1.msra.mxu0 0.0
      %2355 = vmatprep.subr.mxu0 0.0
      %2356 = vmatpush1.msra.mxu0 0.0
      %2357 = vmatprep.subr.mxu0 0.0
      %2358 = vmatpush1.msra.mxu0 0.0
      %2359 = vmatprep.subr.mxu0 0.0
      %2360 = vmatpush1.msra.mxu0 0.0
      %2361 = vmatprep.subr.mxu0 0.0
      %2362 = vmatpush1.msra.mxu0 0.0
      %2363 = vmatprep.mubr.f32.mxu0 0.0
      %2364 = vmatmul.mubr.f32.gmra.mrb[0].mxu0 %v2297
      %v2365 = vpop.f32.mrb[0].mxu0
      %v2366 = vadd.f32 0.0, %v2365
      %v2367 = vpop.f32.mrb[0].mxu0
      %2368 = vdwg.mxu0
      %2369 = vrot.lane.b32.xlu0 %v374, 104
      %v2370 = vpop.permute.xlu0 %2369
      %2371 = vrot.lane.b32.xlu0 %v374, 72
      %v2372 = vpop.permute.xlu0 %2371
      %v2373 = vsel %vm395, %v2370, 0
      %v2375 = vsel %vm395, %v2372, 0
      %2377 = vmatprep.subr.mxu0 0.0
      %2378 = vmatpush1.xpose.msra.mxu0 %v2375
      %2379 = vmatprep.subr.mxu0 0.0
      %2380 = vmatpush1.xpose.msra.mxu0 0.0
      %2381 = vmatprep.subr.mxu0 0.0
      %2382 = vmatpush1.xpose.msra.mxu0 0.0
      %2383 = vmatprep.subr.mxu0 0.0
      %2384 = vmatpush1.xpose.msra.mxu0 0.0
      %2385 = vmatprep.subr.mxu0 0.0
      %2386 = vmatpush1.xpose.msra.mxu0 0.0
      %2387 = vmatprep.subr.mxu0 0.0
      %2388 = vmatpush1.xpose.msra.mxu0 0.0
      %2389 = vmatprep.subr.mxu0 0.0
      %2390 = vmatpush1.xpose.msra.mxu0 0.0
      %2391 = vmatprep.subr.mxu0 0.0
      %2392 = vmatpush1.xpose.msra.mxu0 0.0
      %2393 = vmatprep.subr.mxu0 0.0
      %2394 = vmatpush1.xpose.msra.mxu0 0.0
      %2395 = vmatprep.subr.mxu0 0.0
      %2396 = vmatpush1.xpose.msra.mxu0 0.0
      %2397 = vmatprep.subr.mxu0 0.0
      %2398 = vmatpush1.xpose.msra.mxu0 0.0
      %2399 = vmatprep.subr.mxu0 0.0
      %2400 = vmatpush1.xpose.msra.mxu0 0.0
      %2401 = vmatprep.subr.mxu0 0.0
      %2402 = vmatpush1.xpose.msra.mxu0 0.0
      %2403 = vmatprep.subr.mxu0 0.0
      %2404 = vmatpush1.xpose.msra.mxu0 0.0
      %2405 = vmatprep.subr.mxu0 0.0
      %2406 = vmatpush1.xpose.msra.mxu0 0.0
      %2407 = vmatprep.subr.mxu0 0.0
      %2408 = vmatpush1.xpose.msra.mxu0 0.0
      %2409 = vmatprep.subr.mxu0 0.0
      %2410 = vmatpush1.xpose.msra.mxu0 0.0
      %2411 = vmatprep.subr.mxu0 0.0
      %2412 = vmatpush1.xpose.msra.mxu0 0.0
      %2413 = vmatprep.subr.mxu0 0.0
      %2414 = vmatpush1.xpose.msra.mxu0 0.0
      %2415 = vmatprep.subr.mxu0 0.0
      %2416 = vmatpush1.xpose.msra.mxu0 0.0
      %2417 = vmatprep.subr.mxu0 0.0
      %2418 = vmatpush1.xpose.msra.mxu0 0.0
      %2419 = vmatprep.subr.mxu0 0.0
      %2420 = vmatpush1.xpose.msra.mxu0 0.0
      %2421 = vmatprep.subr.mxu0 0.0
      %2422 = vmatpush1.xpose.msra.mxu0 0.0
      %2423 = vmatprep.subr.mxu0 0.0
      %2424 = vmatpush1.xpose.msra.mxu0 0.0
      %2425 = vmatprep.subr.mxu0 0.0
      %2426 = vmatpush1.xpose.msra.mxu0 0.0
      %2427 = vmatprep.subr.mxu0 0.0
      %2428 = vmatpush1.xpose.msra.mxu0 0.0
      %2429 = vmatprep.subr.mxu0 0.0
      %2430 = vmatpush1.xpose.msra.mxu0 0.0
      %2431 = vmatprep.subr.mxu0 0.0
      %2432 = vmatpush1.xpose.msra.mxu0 0.0
      %2433 = vmatprep.subr.mxu0 0.0
      %2434 = vmatpush1.xpose.msra.mxu0 0.0
      %2435 = vmatprep.subr.mxu0 0.0
      %2436 = vmatpush1.xpose.msra.mxu0 0.0
      %2437 = vmatprep.subr.mxu0 0.0
      %2438 = vmatpush1.xpose.msra.mxu0 0.0
      %2439 = vmatprep.subr.mxu0 0.0
      %2440 = vmatpush1.xpose.msra.mxu0 0.0
      %2441 = vmatprep.mubr.f32.mxu0 0.0
      %2442 = vmatmul.mubr.f32.gmra.mrb[0].mxu0 %v2373
      %v2443 = vpop.f32.mrb[0].mxu0
      %v2444 = vadd.f32 0.0, %v2443
      %v2445 = vpop.f32.mrb[0].mxu0
      %2446 = vdwg.mxu0
      %2447 = vrot.lane.b32.xlu0 %v379, 104
      %v2448 = vpop.permute.xlu0 %2447
      %2449 = vrot.lane.b32.xlu0 %v379, 72
      %v2450 = vpop.permute.xlu0 %2449
      %v2451 = vsel %vm395, %v2448, 0
      %v2453 = vsel %vm395, %v2450, 0
      %2455 = vmatprep.subr.mxu0 0.0
      %2456 = vmatpush1.xpose.msra.mxu0 %v2453
      %2457 = vmatprep.subr.mxu0 0.0
      %2458 = vmatpush1.xpose.msra.mxu0 0.0
      %2459 = vmatprep.subr.mxu0 0.0
      %2460 = vmatpush1.xpose.msra.mxu0 0.0
      %2461 = vmatprep.subr.mxu0 0.0
      %2462 = vmatpush1.xpose.msra.mxu0 0.0
      %2463 = vmatprep.subr.mxu0 0.0
      %2464 = vmatpush1.xpose.msra.mxu0 0.0
      %2465 = vmatprep.subr.mxu0 0.0
      %2466 = vmatpush1.xpose.msra.mxu0 0.0
      %2467 = vmatprep.subr.mxu0 0.0
      %2468 = vmatpush1.xpose.msra.mxu0 0.0
      %2469 = vmatprep.subr.mxu0 0.0
      %2470 = vmatpush1.xpose.msra.mxu0 0.0
      %2471 = vmatprep.subr.mxu0 0.0
      %2472 = vmatpush1.xpose.msra.mxu0 0.0
      %2473 = vmatprep.subr.mxu0 0.0
      %2474 = vmatpush1.xpose.msra.mxu0 0.0
      %2475 = vmatprep.subr.mxu0 0.0
      %2476 = vmatpush1.xpose.msra.mxu0 0.0
      %2477 = vmatprep.subr.mxu0 0.0
      %2478 = vmatpush1.xpose.msra.mxu0 0.0
      %2479 = vmatprep.subr.mxu0 0.0
      %2480 = vmatpush1.xpose.msra.mxu0 0.0
      %2481 = vmatprep.subr.mxu0 0.0
      %2482 = vmatpush1.xpose.msra.mxu0 0.0
      %2483 = vmatprep.subr.mxu0 0.0
      %2484 = vmatpush1.xpose.msra.mxu0 0.0
      %2485 = vmatprep.subr.mxu0 0.0
      %2486 = vmatpush1.xpose.msra.mxu0 0.0
      %2487 = vmatprep.subr.mxu0 0.0
      %2488 = vmatpush1.xpose.msra.mxu0 0.0
      %2489 = vmatprep.subr.mxu0 0.0
      %2490 = vmatpush1.xpose.msra.mxu0 0.0
      %2491 = vmatprep.subr.mxu0 0.0
      %2492 = vmatpush1.xpose.msra.mxu0 0.0
      %2493 = vmatprep.subr.mxu0 0.0
      %2494 = vmatpush1.xpose.msra.mxu0 0.0
      %2495 = vmatprep.subr.mxu0 0.0
      %2496 = vmatpush1.xpose.msra.mxu0 0.0
      %2497 = vmatprep.subr.mxu0 0.0
      %2498 = vmatpush1.xpose.msra.mxu0 0.0
      %2499 = vmatprep.subr.mxu0 0.0
      %2500 = vmatpush1.xpose.msra.mxu0 0.0
      %2501 = vmatprep.subr.mxu0 0.0
      %2502 = vmatpush1.xpose.msra.mxu0 0.0
      %2503 = vmatprep.subr.mxu0 0.0
      %2504 = vmatpush1.xpose.msra.mxu0 0.0
      %2505 = vmatprep.subr.mxu0 0.0
      %2506 = vmatpush1.xpose.msra.mxu0 0.0
      %2507 = vmatprep.subr.mxu0 0.0
      %2508 = vmatpush1.xpose.msra.mxu0 0.0
      %2509 = vmatprep.subr.mxu0 0.0
      %2510 = vmatpush1.xpose.msra.mxu0 0.0
      %2511 = vmatprep.subr.mxu0 0.0
      %2512 = vmatpush1.xpose.msra.mxu0 0.0
      %2513 = vmatprep.subr.mxu0 0.0
      %2514 = vmatpush1.xpose.msra.mxu0 0.0
      %2515 = vmatprep.subr.mxu0 0.0
      %2516 = vmatpush1.xpose.msra.mxu0 0.0
      %2517 = vmatprep.subr.mxu0 0.0
      %2518 = vmatpush1.xpose.msra.mxu0 0.0
      %2519 = vmatprep.mubr.f32.mxu0 0.0
      %2520 = vmatmul.mubr.f32.gmra.mrb[0].mxu0 %v2451
      %v2521 = vpop.f32.mrb[0].mxu0
      %v2522 = vadd.f32 0.0, %v2521
      %v2523 = vpop.f32.mrb[0].mxu0
      %2524 = vdwg.mxu0
      %2525 = vrot.lane.b32.xlu0 %v384, 104
      %v2526 = vpop.permute.xlu0 %2525
      %2527 = vrot.lane.b32.xlu0 %v384, 72
      %v2528 = vpop.permute.xlu0 %2527
      %v2529 = vsel %vm395, %v2526, 0
      %v2531 = vsel %vm395, %v2528, 0
      %2533 = vmatprep.subr.mxu0 0.0
      %2534 = vmatpush1.xpose.msra.mxu0 %v2531
      %2535 = vmatprep.subr.mxu0 0.0
      %2536 = vmatpush1.xpose.msra.mxu0 0.0
      %2537 = vmatprep.subr.mxu0 0.0
      %2538 = vmatpush1.xpose.msra.mxu0 0.0
      %2539 = vmatprep.subr.mxu0 0.0
      %2540 = vmatpush1.xpose.msra.mxu0 0.0
      %2541 = vmatprep.subr.mxu0 0.0
      %2542 = vmatpush1.xpose.msra.mxu0 0.0
      %2543 = vmatprep.subr.mxu0 0.0
      %2544 = vmatpush1.xpose.msra.mxu0 0.0
      %2545 = vmatprep.subr.mxu0 0.0
      %2546 = vmatpush1.xpose.msra.mxu0 0.0
      %2547 = vmatprep.subr.mxu0 0.0
      %2548 = vmatpush1.xpose.msra.mxu0 0.0
      %2549 = vmatprep.subr.mxu0 0.0
      %2550 = vmatpush1.xpose.msra.mxu0 0.0
      %2551 = vmatprep.subr.mxu0 0.0
      %2552 = vmatpush1.xpose.msra.mxu0 0.0
      %2553 = vmatprep.subr.mxu0 0.0
      %2554 = vmatpush1.xpose.msra.mxu0 0.0
      %2555 = vmatprep.subr.mxu0 0.0
      %2556 = vmatpush1.xpose.msra.mxu0 0.0
      %2557 = vmatprep.subr.mxu0 0.0
      %2558 = vmatpush1.xpose.msra.mxu0 0.0
      %2559 = vmatprep.subr.mxu0 0.0
      %2560 = vmatpush1.xpose.msra.mxu0 0.0
      %2561 = vmatprep.subr.mxu0 0.0
      %2562 = vmatpush1.xpose.msra.mxu0 0.0
      %2563 = vmatprep.subr.mxu0 0.0
      %2564 = vmatpush1.xpose.msra.mxu0 0.0
      %2565 = vmatprep.subr.mxu0 0.0
      %2566 = vmatpush1.xpose.msra.mxu0 0.0
      %2567 = vmatprep.subr.mxu0 0.0
      %2568 = vmatpush1.xpose.msra.mxu0 0.0
      %2569 = vmatprep.subr.mxu0 0.0
      %2570 = vmatpush1.xpose.msra.mxu0 0.0
      %2571 = vmatprep.subr.mxu0 0.0
      %2572 = vmatpush1.xpose.msra.mxu0 0.0
      %2573 = vmatprep.subr.mxu0 0.0
      %2574 = vmatpush1.xpose.msra.mxu0 0.0
      %2575 = vmatprep.subr.mxu0 0.0
      %2576 = vmatpush1.xpose.msra.mxu0 0.0
      %2577 = vmatprep.subr.mxu0 0.0
      %2578 = vmatpush1.xpose.msra.mxu0 0.0
      %2579 = vmatprep.subr.mxu0 0.0
      %2580 = vmatpush1.xpose.msra.mxu0 0.0
      %2581 = vmatprep.subr.mxu0 0.0
      %2582 = vmatpush1.xpose.msra.mxu0 0.0
      %2583 = vmatprep.subr.mxu0 0.0
      %2584 = vmatpush1.xpose.msra.mxu0 0.0
      %2585 = vmatprep.subr.mxu0 0.0
      %2586 = vmatpush1.xpose.msra.mxu0 0.0
      %2587 = vmatprep.subr.mxu0 0.0
      %2588 = vmatpush1.xpose.msra.mxu0 0.0
      %2589 = vmatprep.subr.mxu0 0.0
      %2590 = vmatpush1.xpose.msra.mxu0 0.0
      %2591 = vmatprep.subr.mxu0 0.0
      %2592 = vmatpush1.xpose.msra.mxu0 0.0
      %2593 = vmatprep.subr.mxu0 0.0
      %2594 = vmatpush1.xpose.msra.mxu0 0.0
      %2595 = vmatprep.subr.mxu0 0.0
      %2596 = vmatpush1.xpose.msra.mxu0 0.0
      %2597 = vmatprep.mubr.f32.mxu0 0.0
      %2598 = vmatmul.mubr.f32.gmra.mrb[0].mxu0 %v2529
      %v2599 = vpop.f32.mrb[0].mxu0
      %v2600 = vadd.f32 0.0, %v2599
      %v2601 = vpop.f32.mrb[0].mxu0
      %2602 = vdwg.mxu0
      %2603 = vrot.lane.b32.xlu0 %v389, 104
      %v2604 = vpop.permute.xlu0 %2603
      %2605 = vrot.lane.b32.xlu0 %v389, 72
      %v2606 = vpop.permute.xlu0 %2605
      %v2607 = vsel %vm395, %v2604, 0
      %v2609 = vsel %vm395, %v2606, 0
      %2611 = vmatprep.subr.mxu0 0.0
      %2612 = vmatpush1.xpose.msra.mxu0 %v2609
      %2613 = vmatprep.subr.mxu0 0.0
      %2614 = vmatpush1.xpose.msra.mxu0 0.0
      %2615 = vmatprep.subr.mxu0 0.0
      %2616 = vmatpush1.xpose.msra.mxu0 0.0
      %2617 = vmatprep.subr.mxu0 0.0
      %2618 = vmatpush1.xpose.msra.mxu0 0.0
      %2619 = vmatprep.subr.mxu0 0.0
      %2620 = vmatpush1.xpose.msra.mxu0 0.0
      %2621 = vmatprep.subr.mxu0 0.0
      %2622 = vmatpush1.xpose.msra.mxu0 0.0
      %2623 = vmatprep.subr.mxu0 0.0
      %2624 = vmatpush1.xpose.msra.mxu0 0.0
      %2625 = vmatprep.subr.mxu0 0.0
      %2626 = vmatpush1.xpose.msra.mxu0 0.0
      %2627 = vmatprep.subr.mxu0 0.0
      %2628 = vmatpush1.xpose.msra.mxu0 0.0
      %2629 = vmatprep.subr.mxu0 0.0
      %2630 = vmatpush1.xpose.msra.mxu0 0.0
      %2631 = vmatprep.subr.mxu0 0.0
      %2632 = vmatpush1.xpose.msra.mxu0 0.0
      %2633 = vmatprep.subr.mxu0 0.0
      %2634 = vmatpush1.xpose.msra.mxu0 0.0
      %2635 = vmatprep.subr.mxu0 0.0
      %2636 = vmatpush1.xpose.msra.mxu0 0.0
      %2637 = vmatprep.subr.mxu0 0.0
      %2638 = vmatpush1.xpose.msra.mxu0 0.0
      %2639 = vmatprep.subr.mxu0 0.0
      %2640 = vmatpush1.xpose.msra.mxu0 0.0
      %2641 = vmatprep.subr.mxu0 0.0
      %2642 = vmatpush1.xpose.msra.mxu0 0.0
      %2643 = vmatprep.subr.mxu0 0.0
      %2644 = vmatpush1.xpose.msra.mxu0 0.0
      %2645 = vmatprep.subr.mxu0 0.0
      %2646 = vmatpush1.xpose.msra.mxu0 0.0
      %2647 = vmatprep.subr.mxu0 0.0
      %2648 = vmatpush1.xpose.msra.mxu0 0.0
      %2649 = vmatprep.subr.mxu0 0.0
      %2650 = vmatpush1.xpose.msra.mxu0 0.0
      %2651 = vmatprep.subr.mxu0 0.0
      %2652 = vmatpush1.xpose.msra.mxu0 0.0
      %2653 = vmatprep.subr.mxu0 0.0
      %2654 = vmatpush1.xpose.msra.mxu0 0.0
      %2655 = vmatprep.subr.mxu0 0.0
      %2656 = vmatpush1.xpose.msra.mxu0 0.0
      %2657 = vmatprep.subr.mxu0 0.0
      %2658 = vmatpush1.xpose.msra.mxu0 0.0
      %2659 = vmatprep.subr.mxu0 0.0
      %2660 = vmatpush1.xpose.msra.mxu0 0.0
      %2661 = vmatprep.subr.mxu0 0.0
      %2662 = vmatpush1.xpose.msra.mxu0 0.0
      %2663 = vmatprep.subr.mxu0 0.0
      %2664 = vmatpush1.xpose.msra.mxu0 0.0
      %2665 = vmatprep.subr.mxu0 0.0
      %2666 = vmatpush1.xpose.msra.mxu0 0.0
      %2667 = vmatprep.subr.mxu0 0.0
      %2668 = vmatpush1.xpose.msra.mxu0 0.0
      %2669 = vmatprep.subr.mxu0 0.0
      %2670 = vmatpush1.xpose.msra.mxu0 0.0
      %2671 = vmatprep.subr.mxu0 0.0
      %2672 = vmatpush1.xpose.msra.mxu0 0.0
      %2673 = vmatprep.subr.mxu0 0.0
      %2674 = vmatpush1.xpose.msra.mxu0 0.0
      %2675 = vmatprep.mubr.f32.mxu0 0.0
      %2676 = vmatmul.mubr.f32.gmra.mrb[0].mxu0 %v2607
      %v2677 = vpop.f32.mrb[0].mxu0
      %v2678 = vadd.f32 0.0, %v2677
      %v2679 = vpop.f32.mrb[0].mxu0
      %2680 = vdwg.mxu0
      %v2681 = vsel %vm395, %v2444, -inf
      %2682 = vmax.xlane.f32.xlu0 %v2681
      %v2683 = vpop.xlane.xlu0 %2682
      %v2684 = vsel %vm395, %v2522, -inf
      %2685 = vmax.xlane.f32.xlu0 %v2684
      %v2686 = vpop.xlane.xlu0 %2685
      %v2687 = vsel %vm395, %v2600, -inf
      %2688 = vmax.xlane.f32.xlu0 %v2687
      %v2689 = vpop.xlane.xlu0 %2688
      %v2690 = vsel %vm395, %v2678, -inf
      %2691 = vmax.xlane.f32.xlu0 %v2690
      %v2692 = vpop.xlane.xlu0 %2691
      %v2693 = vsub.f32 %v2444, %v2683
      %v2694 = vsub.f32 %v2522, %v2686
      %v2695 = vsub.f32 %v2600, %v2689
      %v2696 = vsub.f32 %v2678, %v2692
      %v2697 = vmul.f32 %v2693, 1.442695
      %v2698 = vpow.pop %v2697
      %v2699 = vmul.f32 %v2694, 1.442695
      %v2700 = vpow.pop %v2699
      %v2701 = vmul.f32 %v2695, 1.442695
      %v2702 = vpow.pop %v2701
      %v2703 = vmul.f32 %v2696, 1.442695
      %v2704 = vpow.pop %v2703
      %v2705 = vsel %vm395, %v2698, 0.0
      %2706 = vadd.xlane.f32.xlu0 %v2705
      %v2707 = vpop.xlane.xlu0 %2706
      %v2708 = vsel %vm395, %v2700, 0.0
      %2709 = vadd.xlane.f32.xlu0 %v2708
      %v2710 = vpop.xlane.xlu0 %2709
      %v2711 = vsel %vm395, %v2702, 0.0
      %2712 = vadd.xlane.f32.xlu0 %v2711
      %v2713 = vpop.xlane.xlu0 %2712
      %v2714 = vsel %vm395, %v2704, 0.0
      %2715 = vadd.xlane.f32.xlu0 %v2714
      %v2716 = vpop.xlane.xlu0 %2715
      %v2717 = vrcp.pop %v2707
      %v2718 = vrcp.pop %v2710
      %v2719 = vrcp.pop %v2713
      %v2720 = vrcp.pop %v2716
      %v2721 = vmul.f32 %v2698, %v2717
      %v2722 = vmul.f32 %v2700, %v2718
      %v2723 = vmul.f32 %v2702, %v2719
      %v2724 = vmul.f32 %v2704, %v2720
      %2725 = vrot.lane.b32.xlu0 %v374, 40
      %v2726 = vpop.permute.xlu0 %2725
      %v2729 = vsel %vm395, %v2721, 0
      %2731 = vmatprep.subr.mxu0 0.0
      %2732 = vmatpush1.msra.mxu0 %v2726
      %2733 = vmatprep.subr.mxu0 0.0
      %2734 = vmatpush1.msra.mxu0 0.0
      %2735 = vmatprep.subr.mxu0 0.0
      %2736 = vmatpush1.msra.mxu0 0.0
      %2737 = vmatprep.subr.mxu0 0.0
      %2738 = vmatpush1.msra.mxu0 0.0
      %2739 = vmatprep.subr.mxu0 0.0
      %2740 = vmatpush1.msra.mxu0 0.0
      %2741 = vmatprep.subr.mxu0 0.0
      %2742 = vmatpush1.msra.mxu0 0.0
      %2743 = vmatprep.subr.mxu0 0.0
      %2744 = vmatpush1.msra.mxu0 0.0
      %2745 = vmatprep.subr.mxu0 0.0
      %2746 = vmatpush1.msra.mxu0 0.0
      %2747 = vmatprep.subr.mxu0 0.0
      %2748 = vmatpush1.msra.mxu0 0.0
      %2749 = vmatprep.subr.mxu0 0.0
      %2750 = vmatpush1.msra.mxu0 0.0
      %2751 = vmatprep.subr.mxu0 0.0
      %2752 = vmatpush1.msra.mxu0 0.0
      %2753 = vmatprep.subr.mxu0 0.0
      %2754 = vmatpush1.msra.mxu0 0.0
      %2755 = vmatprep.subr.mxu0 0.0
      %2756 = vmatpush1.msra.mxu0 0.0
      %2757 = vmatprep.subr.mxu0 0.0
      %2758 = vmatpush1.msra.mxu0 0.0
      %2759 = vmatprep.subr.mxu0 0.0
      %2760 = vmatpush1.msra.mxu0 0.0
      %2761 = vmatprep.subr.mxu0 0.0
      %2762 = vmatpush1.msra.mxu0 0.0
      %2763 = vmatprep.subr.mxu0 0.0
      %2764 = vmatpush1.msra.mxu0 0.0
      %2765 = vmatprep.subr.mxu0 0.0
      %2766 = vmatpush1.msra.mxu0 0.0
      %2767 = vmatprep.subr.mxu0 0.0
      %2768 = vmatpush1.msra.mxu0 0.0
      %2769 = vmatprep.subr.mxu0 0.0
      %2770 = vmatpush1.msra.mxu0 0.0
      %2771 = vmatprep.subr.mxu0 0.0
      %2772 = vmatpush1.msra.mxu0 0.0
      %2773 = vmatprep.subr.mxu0 0.0
      %2774 = vmatpush1.msra.mxu0 0.0
      %2775 = vmatprep.subr.mxu0 0.0
      %2776 = vmatpush1.msra.mxu0 0.0
      %2777 = vmatprep.subr.mxu0 0.0
      %2778 = vmatpush1.msra.mxu0 0.0
      %2779 = vmatprep.subr.mxu0 0.0
      %2780 = vmatpush1.msra.mxu0 0.0
      %2781 = vmatprep.subr.mxu0 0.0
      %2782 = vmatpush1.msra.mxu0 0.0
      %2783 = vmatprep.subr.mxu0 0.0
      %2784 = vmatpush1.msra.mxu0 0.0
      %2785 = vmatprep.subr.mxu0 0.0
      %2786 = vmatpush1.msra.mxu0 0.0
      %2787 = vmatprep.subr.mxu0 0.0
      %2788 = vmatpush1.msra.mxu0 0.0
      %2789 = vmatprep.subr.mxu0 0.0
      %2790 = vmatpush1.msra.mxu0 0.0
      %2791 = vmatprep.subr.mxu0 0.0
      %2792 = vmatpush1.msra.mxu0 0.0
      %2793 = vmatprep.subr.mxu0 0.0
      %2794 = vmatpush1.msra.mxu0 0.0
      %2795 = vmatprep.mubr.f32.mxu0 0.0
      %2796 = vmatmul.mubr.f32.gmra.mrb[0].mxu0 %v2729
      %v2797 = vpop.f32.mrb[0].mxu0
      %v2798 = vadd.f32 0.0, %v2797
      %v2799 = vpop.f32.mrb[0].mxu0
      %2800 = vdwg.mxu0
      %2801 = vrot.lane.b32.xlu0 %v379, 40
      %v2802 = vpop.permute.xlu0 %2801
      %v2805 = vsel %vm395, %v2722, 0
      %2807 = vmatprep.subr.mxu0 0.0
      %2808 = vmatpush1.msra.mxu0 %v2802
      %2809 = vmatprep.subr.mxu0 0.0
      %2810 = vmatpush1.msra.mxu0 0.0
      %2811 = vmatprep.subr.mxu0 0.0
      %2812 = vmatpush1.msra.mxu0 0.0
      %2813 = vmatprep.subr.mxu0 0.0
      %2814 = vmatpush1.msra.mxu0 0.0
      %2815 = vmatprep.subr.mxu0 0.0
      %2816 = vmatpush1.msra.mxu0 0.0
      %2817 = vmatprep.subr.mxu0 0.0
      %2818 = vmatpush1.msra.mxu0 0.0
      %2819 = vmatprep.subr.mxu0 0.0
      %2820 = vmatpush1.msra.mxu0 0.0
      %2821 = vmatprep.subr.mxu0 0.0
      %2822 = vmatpush1.msra.mxu0 0.0
      %2823 = vmatprep.subr.mxu0 0.0
      %2824 = vmatpush1.msra.mxu0 0.0
      %2825 = vmatprep.subr.mxu0 0.0
      %2826 = vmatpush1.msra.mxu0 0.0
      %2827 = vmatprep.subr.mxu0 0.0
      %2828 = vmatpush1.msra.mxu0 0.0
      %2829 = vmatprep.subr.mxu0 0.0
      %2830 = vmatpush1.msra.mxu0 0.0
      %2831 = vmatprep.subr.mxu0 0.0
      %2832 = vmatpush1.msra.mxu0 0.0
      %2833 = vmatprep.subr.mxu0 0.0
      %2834 = vmatpush1.msra.mxu0 0.0
      %2835 = vmatprep.subr.mxu0 0.0
      %2836 = vmatpush1.msra.mxu0 0.0
      %2837 = vmatprep.subr.mxu0 0.0
      %2838 = vmatpush1.msra.mxu0 0.0
      %2839 = vmatprep.subr.mxu0 0.0
      %2840 = vmatpush1.msra.mxu0 0.0
      %2841 = vmatprep.subr.mxu0 0.0
      %2842 = vmatpush1.msra.mxu0 0.0
      %2843 = vmatprep.subr.mxu0 0.0
      %2844 = vmatpush1.msra.mxu0 0.0
      %2845 = vmatprep.subr.mxu0 0.0
      %2846 = vmatpush1.msra.mxu0 0.0
      %2847 = vmatprep.subr.mxu0 0.0
      %2848 = vmatpush1.msra.mxu0 0.0
      %2849 = vmatprep.subr.mxu0 0.0
      %2850 = vmatpush1.msra.mxu0 0.0
      %2851 = vmatprep.subr.mxu0 0.0
      %2852 = vmatpush1.msra.mxu0 0.0
      %2853 = vmatprep.subr.mxu0 0.0
      %2854 = vmatpush1.msra.mxu0 0.0
      %2855 = vmatprep.subr.mxu0 0.0
      %2856 = vmatpush1.msra.mxu0 0.0
      %2857 = vmatprep.subr.mxu0 0.0
      %2858 = vmatpush1.msra.mxu0 0.0
      %2859 = vmatprep.subr.mxu0 0.0
      %2860 = vmatpush1.msra.mxu0 0.0
      %2861 = vmatprep.subr.mxu0 0.0
      %2862 = vmatpush1.msra.mxu0 0.0
      %2863 = vmatprep.subr.mxu0 0.0
      %2864 = vmatpush1.msra.mxu0 0.0
      %2865 = vmatprep.subr.mxu0 0.0
      %2866 = vmatpush1.msra.mxu0 0.0
      %2867 = vmatprep.subr.mxu0 0.0
      %2868 = vmatpush1.msra.mxu0 0.0
      %2869 = vmatprep.subr.mxu0 0.0
      %2870 = vmatpush1.msra.mxu0 0.0
      %2871 = vmatprep.mubr.f32.mxu0 0.0
      %2872 = vmatmul.mubr.f32.gmra.mrb[0].mxu0 %v2805
      %v2873 = vpop.f32.mrb[0].mxu0
      %v2874 = vadd.f32 0.0, %v2873
      %v2875 = vpop.f32.mrb[0].mxu0
      %2876 = vdwg.mxu0
      %2877 = vrot.lane.b32.xlu0 %v384, 40
      %v2878 = vpop.permute.xlu0 %2877
      %v2881 = vsel %vm395, %v2723, 0
      %2883 = vmatprep.subr.mxu0 0.0
      %2884 = vmatpush1.msra.mxu0 %v2878
      %2885 = vmatprep.subr.mxu0 0.0
      %2886 = vmatpush1.msra.mxu0 0.0
      %2887 = vmatprep.subr.mxu0 0.0
      %2888 = vmatpush1.msra.mxu0 0.0
      %2889 = vmatprep.subr.mxu0 0.0
      %2890 = vmatpush1.msra.mxu0 0.0
      %2891 = vmatprep.subr.mxu0 0.0
      %2892 = vmatpush1.msra.mxu0 0.0
      %2893 = vmatprep.subr.mxu0 0.0
      %2894 = vmatpush1.msra.mxu0 0.0
      %2895 = vmatprep.subr.mxu0 0.0
      %2896 = vmatpush1.msra.mxu0 0.0
      %2897 = vmatprep.subr.mxu0 0.0
      %2898 = vmatpush1.msra.mxu0 0.0
      %2899 = vmatprep.subr.mxu0 0.0
      %2900 = vmatpush1.msra.mxu0 0.0
      %2901 = vmatprep.subr.mxu0 0.0
      %2902 = vmatpush1.msra.mxu0 0.0
      %2903 = vmatprep.subr.mxu0 0.0
      %2904 = vmatpush1.msra.mxu0 0.0
      %2905 = vmatprep.subr.mxu0 0.0
      %2906 = vmatpush1.msra.mxu0 0.0
      %2907 = vmatprep.subr.mxu0 0.0
      %2908 = vmatpush1.msra.mxu0 0.0
      %2909 = vmatprep.subr.mxu0 0.0
      %2910 = vmatpush1.msra.mxu0 0.0
      %2911 = vmatprep.subr.mxu0 0.0
      %2912 = vmatpush1.msra.mxu0 0.0
      %2913 = vmatprep.subr.mxu0 0.0
      %2914 = vmatpush1.msra.mxu0 0.0
      %2915 = vmatprep.subr.mxu0 0.0
      %2916 = vmatpush1.msra.mxu0 0.0
      %2917 = vmatprep.subr.mxu0 0.0
      %2918 = vmatpush1.msra.mxu0 0.0
      %2919 = vmatprep.subr.mxu0 0.0
      %2920 = vmatpush1.msra.mxu0 0.0
      %2921 = vmatprep.subr.mxu0 0.0
      %2922 = vmatpush1.msra.mxu0 0.0
      %2923 = vmatprep.subr.mxu0 0.0
      %2924 = vmatpush1.msra.mxu0 0.0
      %2925 = vmatprep.subr.mxu0 0.0
      %2926 = vmatpush1.msra.mxu0 0.0
      %2927 = vmatprep.subr.mxu0 0.0
      %2928 = vmatpush1.msra.mxu0 0.0
      %2929 = vmatprep.subr.mxu0 0.0
      %2930 = vmatpush1.msra.mxu0 0.0
      %2931 = vmatprep.subr.mxu0 0.0
      %2932 = vmatpush1.msra.mxu0 0.0
      %2933 = vmatprep.subr.mxu0 0.0
      %2934 = vmatpush1.msra.mxu0 0.0
      %2935 = vmatprep.subr.mxu0 0.0
      %2936 = vmatpush1.msra.mxu0 0.0
      %2937 = vmatprep.subr.mxu0 0.0
      %2938 = vmatpush1.msra.mxu0 0.0
      %2939 = vmatprep.subr.mxu0 0.0
      %2940 = vmatpush1.msra.mxu0 0.0
      %2941 = vmatprep.subr.mxu0 0.0
      %2942 = vmatpush1.msra.mxu0 0.0
      %2943 = vmatprep.subr.mxu0 0.0
      %2944 = vmatpush1.msra.mxu0 0.0
      %2945 = vmatprep.subr.mxu0 0.0
      %2946 = vmatpush1.msra.mxu0 0.0
      %2947 = vmatprep.mubr.f32.mxu0 0.0
      %2948 = vmatmul.mubr.f32.gmra.mrb[0].mxu0 %v2881
      %v2949 = vpop.f32.mrb[0].mxu0
      %v2950 = vadd.f32 0.0, %v2949
      %v2951 = vpop.f32.mrb[0].mxu0
      %2952 = vdwg.mxu0
      %2953 = vrot.lane.b32.xlu0 %v389, 40
      %v2954 = vpop.permute.xlu0 %2953
      %v2957 = vsel %vm395, %v2724, 0
      %2959 = vmatprep.subr.mxu0 0.0
      %2960 = vmatpush1.msra.mxu0 %v2954
      %2961 = vmatprep.subr.mxu0 0.0
      %2962 = vmatpush1.msra.mxu0 0.0
      %2963 = vmatprep.subr.mxu0 0.0
      %2964 = vmatpush1.msra.mxu0 0.0
      %2965 = vmatprep.subr.mxu0 0.0
      %2966 = vmatpush1.msra.mxu0 0.0
      %2967 = vmatprep.subr.mxu0 0.0
      %2968 = vmatpush1.msra.mxu0 0.0
      %2969 = vmatprep.subr.mxu0 0.0
      %2970 = vmatpush1.msra.mxu0 0.0
      %2971 = vmatprep.subr.mxu0 0.0
      %2972 = vmatpush1.msra.mxu0 0.0
      %2973 = vmatprep.subr.mxu0 0.0
      %2974 = vmatpush1.msra.mxu0 0.0
      %2975 = vmatprep.subr.mxu0 0.0
      %2976 = vmatpush1.msra.mxu0 0.0
      %2977 = vmatprep.subr.mxu0 0.0
      %2978 = vmatpush1.msra.mxu0 0.0
      %2979 = vmatprep.subr.mxu0 0.0
      %2980 = vmatpush1.msra.mxu0 0.0
      %2981 = vmatprep.subr.mxu0 0.0
      %2982 = vmatpush1.msra.mxu0 0.0
      %2983 = vmatprep.subr.mxu0 0.0
      %2984 = vmatpush1.msra.mxu0 0.0
      %2985 = vmatprep.subr.mxu0 0.0
      %2986 = vmatpush1.msra.mxu0 0.0
      %2987 = vmatprep.subr.mxu0 0.0
      %2988 = vmatpush1.msra.mxu0 0.0
      %2989 = vmatprep.subr.mxu0 0.0
      %2990 = vmatpush1.msra.mxu0 0.0
      %2991 = vmatprep.subr.mxu0 0.0
      %2992 = vmatpush1.msra.mxu0 0.0
      %2993 = vmatprep.subr.mxu0 0.0
      %2994 = vmatpush1.msra.mxu0 0.0
      %2995 = vmatprep.subr.mxu0 0.0
      %2996 = vmatpush1.msra.mxu0 0.0
      %2997 = vmatprep.subr.mxu0 0.0
      %2998 = vmatpush1.msra.mxu0 0.0
      %2999 = vmatprep.subr.mxu0 0.0
      %3000 = vmatpush1.msra.mxu0 0.0
      %3001 = vmatprep.subr.mxu0 0.0
      %3002 = vmatpush1.msra.mxu0 0.0
      %3003 = vmatprep.subr.mxu0 0.0
      %3004 = vmatpush1.msra.mxu0 0.0
      %3005 = vmatprep.subr.mxu0 0.0
      %3006 = vmatpush1.msra.mxu0 0.0
      %3007 = vmatprep.subr.mxu0 0.0
      %3008 = vmatpush1.msra.mxu0 0.0
      %3009 = vmatprep.subr.mxu0 0.0
      %3010 = vmatpush1.msra.mxu0 0.0
      %3011 = vmatprep.subr.mxu0 0.0
      %3012 = vmatpush1.msra.mxu0 0.0
      %3013 = vmatprep.subr.mxu0 0.0
      %3014 = vmatpush1.msra.mxu0 0.0
      %3015 = vmatprep.subr.mxu0 0.0
      %3016 = vmatpush1.msra.mxu0 0.0
      %3017 = vmatprep.subr.mxu0 0.0
      %3018 = vmatpush1.msra.mxu0 0.0
      %3019 = vmatprep.subr.mxu0 0.0
      %3020 = vmatpush1.msra.mxu0 0.0
      %3021 = vmatprep.subr.mxu0 0.0
      %3022 = vmatpush1.msra.mxu0 0.0
      %3023 = vmatprep.mubr.f32.mxu0 0.0
      %3024 = vmatmul.mubr.f32.gmra.mrb[0].mxu0 %v2957
      %v3025 = vpop.f32.mrb[0].mxu0
      %v3026 = vadd.f32 0.0, %v3025
      %v3027 = vpop.f32.mrb[0].mxu0
      %3028 = vdwg.mxu0
      %3033 = vrot.lane.b32.xlu0 %v1478, 8
      %v3034 = vpop.permute.xlu0 %3033
      %3035 = vrot.lane.b32.xlu0 %v1554, 8
      %v3036 = vpop.permute.xlu0 %3035
      %3037 = vrot.lane.b32.xlu0 %v1630, 8
      %v3038 = vpop.permute.xlu0 %3037
      %3039 = vrot.lane.b32.xlu0 %v1706, 8
      %v3040 = vpop.permute.xlu0 %3039
      %3049 = vrot.lane.b32.xlu0 %v2138, 16
      %v3050 = vpop.permute.xlu0 %3049
      %3051 = vrot.lane.b32.xlu0 %v2214, 16
      %v3052 = vpop.permute.xlu0 %3051
      %3053 = vrot.lane.b32.xlu0 %v2290, 16
      %v3054 = vpop.permute.xlu0 %3053
      %3055 = vrot.lane.b32.xlu0 %v2366, 16
      %v3056 = vpop.permute.xlu0 %3055
      %3065 = vrot.lane.b32.xlu0 %v2798, 24
      %v3066 = vpop.permute.xlu0 %3065
      %3067 = vrot.lane.b32.xlu0 %v2874, 24
      %v3068 = vpop.permute.xlu0 %3067
      %3069 = vrot.lane.b32.xlu0 %v2950, 24
      %v3070 = vpop.permute.xlu0 %3069
      %3071 = vrot.lane.b32.xlu0 %v3026, 24
      %v3072 = vpop.permute.xlu0 %3071
      %v3077 = vsel %vm395, %v818, %v3034
      %v3078 = vsel %vm395, %v894, %v3036
      %v3079 = vsel %vm395, %v970, %v3038
      %v3080 = vsel %vm395, %v1046, %v3040
      %vm3081 = vcmask 130048
      %v3082 = vsel %vm3081, %v3077, %v3050
      %v3083 = vsel %vm3081, %v3078, %v3052
      %v3084 = vsel %vm3081, %v3079, %v3054
      %v3085 = vsel %vm3081, %v3080, %v3056
      %vm3086 = vcmask 195584
      %v3087 = vsel %vm3086, %v3082, %v3066
      %v3088 = vsel %vm3086, %v3083, %v3068
      %v3089 = vsel %vm3086, %v3084, %v3070
      %v3090 = vsel %vm3086, %v3085, %v3072
      %v3091 = vlaneseq
      %v3092 = vshrl.u32 %v3091, 7
      %v3093 = vsub.s32 1, %v3092
      %v3094 = vrot.slane %v232, %v3093
      %3099 = vrot.lane.b32.xlu0 %v233, 32
      %v3100 = vpop.permute.xlu0 %3099
      %3101 = vrot.lane.b32.xlu0 %v234, 32
      %v3102 = vpop.permute.xlu0 %3101
      %3103 = vrot.lane.b32.xlu0 %v235, 32
      %v3104 = vpop.permute.xlu0 %3103
      %3105 = vrot.lane.b32.xlu0 %v236, 32
      %v3106 = vpop.permute.xlu0 %3105
      %v3112 = vsel %vm237, %v3087, 0
      %v3115 = vsel %vm237, %v3088, 0
      %v3118 = vsel %vm237, %v3089, 0
      %v3121 = vsel %vm237, %v3090, 0
      %3123 = vmatprep.subr.mxu0 0.0
      %3124 = vmatpush1.msra.mxu0 %v3100
      %3125 = vmatprep.subr.mxu0 0.0
      %3126 = vmatpush1.msra.mxu0 %v3102
      %3127 = vmatprep.subr.mxu0 0.0
      %3128 = vmatpush1.msra.mxu0 %v3104
      %3129 = vmatprep.subr.mxu0 0.0
      %3130 = vmatpush1.msra.mxu0 %v3106
      %3131 = vmatprep.subr.mxu0 0.0
      %3132 = vmatpush1.msra.mxu0 0.0
      %3133 = vmatprep.subr.mxu0 0.0
      %3134 = vmatpush1.msra.mxu0 0.0
      %3135 = vmatprep.subr.mxu0 0.0
      %3136 = vmatpush1.msra.mxu0 0.0
      %3137 = vmatprep.subr.mxu0 0.0
      %3138 = vmatpush1.msra.mxu0 0.0
      %3139 = vmatprep.subr.mxu0 0.0
      %3140 = vmatpush1.msra.mxu0 0.0
      %3141 = vmatprep.subr.mxu0 0.0
      %3142 = vmatpush1.msra.mxu0 0.0
      %3143 = vmatprep.subr.mxu0 0.0
      %3144 = vmatpush1.msra.mxu0 0.0
      %3145 = vmatprep.subr.mxu0 0.0
      %3146 = vmatpush1.msra.mxu0 0.0
      %3147 = vmatprep.subr.mxu0 0.0
      %3148 = vmatpush1.msra.mxu0 0.0
      %3149 = vmatprep.subr.mxu0 0.0
      %3150 = vmatpush1.msra.mxu0 0.0
      %3151 = vmatprep.subr.mxu0 0.0
      %3152 = vmatpush1.msra.mxu0 0.0
      %3153 = vmatprep.subr.mxu0 0.0
      %3154 = vmatpush1.msra.mxu0 0.0
      %3155 = vmatprep.subr.mxu0 0.0
      %3156 = vmatpush1.msra.mxu0 0.0
      %3157 = vmatprep.subr.mxu0 0.0
      %3158 = vmatpush1.msra.mxu0 0.0
      %3159 = vmatprep.subr.mxu0 0.0
      %3160 = vmatpush1.msra.mxu0 0.0
      %3161 = vmatprep.subr.mxu0 0.0
      %3162 = vmatpush1.msra.mxu0 0.0
      %3163 = vmatprep.subr.mxu0 0.0
      %3164 = vmatpush1.msra.mxu0 0.0
      %3165 = vmatprep.subr.mxu0 0.0
      %3166 = vmatpush1.msra.mxu0 0.0
      %3167 = vmatprep.subr.mxu0 0.0
      %3168 = vmatpush1.msra.mxu0 0.0
      %3169 = vmatprep.subr.mxu0 0.0
      %3170 = vmatpush1.msra.mxu0 0.0
      %3171 = vmatprep.subr.mxu0 0.0
      %3172 = vmatpush1.msra.mxu0 0.0
      %3173 = vmatprep.subr.mxu0 0.0
      %3174 = vmatpush1.msra.mxu0 0.0
      %3175 = vmatprep.subr.mxu0 0.0
      %3176 = vmatpush1.msra.mxu0 0.0
      %3177 = vmatprep.subr.mxu0 0.0
      %3178 = vmatpush1.msra.mxu0 0.0
      %3179 = vmatprep.subr.mxu0 0.0
      %3180 = vmatpush1.msra.mxu0 0.0
      %3181 = vmatprep.subr.mxu0 0.0
      %3182 = vmatpush1.msra.mxu0 0.0
      %3183 = vmatprep.subr.mxu0 0.0
      %3184 = vmatpush1.msra.mxu0 0.0
      %3185 = vmatprep.subr.mxu0 0.0
      %3186 = vmatpush1.msra.mxu0 0.0
      %3187 = vmatprep.mubr.f32.mxu0 0.0
      %3188 = vmatmul.mubr.f32.gmra.mrb[0].mxu0 %v3112
      %v3189 = vpop.f32.mrb[0].mxu0
      %v3190 = vadd.f32 %v3094, %v3189
      %v3191 = vpop.f32.mrb[0].mxu0
      %3192 = vmatprep.mubr.f32.mxu0 0.0
      %3193 = vmatmul.mubr.f32.gmra.mrb[0].mxu0 %v3115
      %v3194 = vpop.f32.mrb[0].mxu0
      %v3195 = vadd.f32 %v3094, %v3194
      %v3196 = vpop.f32.mrb[0].mxu0
      %3197 = vmatprep.mubr.f32.mxu0 0.0
      %3198 = vmatmul.mubr.f32.gmra.mrb[0].mxu0 %v3118
      %v3199 = vpop.f32.mrb[0].mxu0
      %v3200 = vadd.f32 %v3094, %v3199
      %v3201 = vpop.f32.mrb[0].mxu0
      %3202 = vmatprep.mubr.f32.mxu0 0.0
      %3203 = vmatmul.mubr.f32.gmra.mrb[0].mxu0 %v3121
      %v3204 = vpop.f32.mrb[0].mxu0
      %v3205 = vadd.f32 %v3094, %v3204
      %v3206 = vpop.f32.mrb[0].mxu0
      %3207 = vdwg.mxu0
      %v3208 = vadd.f32 %v228, %v3190
      %v3209 = vadd.f32 %v229, %v3195
      %v3210 = vadd.f32 %v230, %v3200
      %v3211 = vadd.f32 %v231, %v3205
      %v3212 = vsel %vm237, %v3208, 0.0
      %3213 = vadd.xlane.f32.xlu0 %v3212
      %v3214 = vpop.xlane.xlu0 %3213
      %v3215 = vsel %vm237, %v3209, 0.0
      %3216 = vadd.xlane.f32.xlu0 %v3215
      %v3217 = vpop.xlane.xlu0 %3216
      %v3218 = vsel %vm237, %v3210, 0.0
      %3219 = vadd.xlane.f32.xlu0 %v3218
      %v3220 = vpop.xlane.xlu0 %3219
      %v3221 = vsel %vm237, %v3211, 0.0
      %3222 = vadd.xlane.f32.xlu0 %v3221
      %v3223 = vpop.xlane.xlu0 %3222
      %v3224 = vmul.f32 %v3214, %v250
      %v3225 = vmul.f32 %v3217, %v250
      %v3226 = vmul.f32 %v3220, %v250
      %v3227 = vmul.f32 %v3223, %v250
      %v3228 = vsub.f32 %v3208, %v3224
      %v3229 = vsub.f32 %v3209, %v3225
      %v3230 = vsub.f32 %v3210, %v3226
      %v3231 = vsub.f32 %v3211, %v3227
      %v3232 = vmul.f32 %v3228, %v3228
      %v3233 = vmul.f32 %v3229, %v3229
      %v3234 = vmul.f32 %v3230, %v3230
      %v3235 = vmul.f32 %v3231, %v3231
      %v3236 = vsel %vm237, %v3232, 0.0
      %3237 = vadd.xlane.f32.xlu0 %v3236
      %v3238 = vpop.xlane.xlu0 %3237
      %v3239 = vsel %vm237, %v3233, 0.0
      %3240 = vadd.xlane.f32.xlu0 %v3239
      %v3241 = vpop.xlane.xlu0 %3240
      %v3242 = vsel %vm237, %v3234, 0.0
      %3243 = vadd.xlane.f32.xlu0 %v3242
      %v3244 = vpop.xlane.xlu0 %3243
      %v3245 = vsel %vm237, %v3235, 0.0
      %3246 = vadd.xlane.f32.xlu0 %v3245
      %v3247 = vpop.xlane.xlu0 %3246
      %v3248 = vmul.f32 %v3238, %v250
      %v3249 = vmul.f32 %v3241, %v250
      %v3250 = vmul.f32 %v3244, %v250
      %v3251 = vmul.f32 %v3247, %v250
      %v3252 = vadd.f32 %v3248, 1e-05
      %v3253 = vadd.f32 %v3249, 1e-05
      %v3254 = vadd.f32 %v3250, 1e-05
      %v3255 = vadd.f32 %v3251, 1e-05
      %v3256 = vrsqrt.pop %v3252
      %v3257 = vrsqrt.pop %v3253
      %v3258 = vrsqrt.pop %v3254
      %v3259 = vrsqrt.pop %v3255
      %v3260 = vmul.f32 %v3228, %v3256
      %v3261 = vmul.f32 %v3229, %v3257
      %v3262 = vmul.f32 %v3230, %v3258
      %v3263 = vmul.f32 %v3231, %v3259
      %v3264 = vld [vmem:[%s2] sm:$0xff]
      %v3265 = vld [vmem:[%s2 + $0x8] sm:$0xff]
      %v3266 = vld [vmem:[%s2 + $0x10] sm:$0xff]
      %v3267 = vld [vmem:[%s2 + $0x18] sm:$0xff]
      %v3268 = vlaneseq
      %v3269 = vshrl.u32 %v3268, 7
      %v3270 = vsub.s32 2, %v3269
      %v3271 = vrot.slane %v232, %v3270
      %v3273 = vsel %vm237, %v3260, 0
      %v3276 = vsel %vm237, %v3261, 0
      %v3279 = vsel %vm237, %v3262, 0
      %v3282 = vsel %vm237, %v3263, 0
      %3284 = vmatprep.subr.mxu0 0.0
      %3285 = vmatpush1.msra.mxu0 %v3264
      %3286 = vmatprep.subr.mxu0 0.0
      %3287 = vmatpush1.msra.mxu0 %v3265
      %3288 = vmatprep.subr.mxu0 0.0
      %3289 = vmatpush1.msra.mxu0 %v3266
      %3290 = vmatprep.subr.mxu0 0.0
      %3291 = vmatpush1.msra.mxu0 %v3267
      %3292 = vmatprep.subr.mxu0 0.0
      %3293 = vmatpush1.msra.mxu0 0.0
      %3294 = vmatprep.subr.mxu0 0.0
      %3295 = vmatpush1.msra.mxu0 0.0
      %3296 = vmatprep.subr.mxu0 0.0
      %3297 = vmatpush1.msra.mxu0 0.0
      %3298 = vmatprep.subr.mxu0 0.0
      %3299 = vmatpush1.msra.mxu0 0.0
      %3300 = vmatprep.subr.mxu0 0.0
      %3301 = vmatpush1.msra.mxu0 0.0
      %3302 = vmatprep.subr.mxu0 0.0
      %3303 = vmatpush1.msra.mxu0 0.0
      %3304 = vmatprep.subr.mxu0 0.0
      %3305 = vmatpush1.msra.mxu0 0.0
      %3306 = vmatprep.subr.mxu0 0.0
      %3307 = vmatpush1.msra.mxu0 0.0
      %3308 = vmatprep.subr.mxu0 0.0
      %3309 = vmatpush1.msra.mxu0 0.0
      %3310 = vmatprep.subr.mxu0 0.0
      %3311 = vmatpush1.msra.mxu0 0.0
      %3312 = vmatprep.subr.mxu0 0.0
      %3313 = vmatpush1.msra.mxu0 0.0
      %3314 = vmatprep.subr.mxu0 0.0
      %3315 = vmatpush1.msra.mxu0 0.0
      %3316 = vmatprep.subr.mxu0 0.0
      %3317 = vmatpush1.msra.mxu0 0.0
      %3318 = vmatprep.subr.mxu0 0.0
      %3319 = vmatpush1.msra.mxu0 0.0
      %3320 = vmatprep.subr.mxu0 0.0
      %3321 = vmatpush1.msra.mxu0 0.0
      %3322 = vmatprep.subr.mxu0 0.0
      %3323 = vmatpush1.msra.mxu0 0.0
      %3324 = vmatprep.subr.mxu0 0.0
      %3325 = vmatpush1.msra.mxu0 0.0
      %3326 = vmatprep.subr.mxu0 0.0
      %3327 = vmatpush1.msra.mxu0 0.0
      %3328 = vmatprep.subr.mxu0 0.0
      %3329 = vmatpush1.msra.mxu0 0.0
      %3330 = vmatprep.subr.mxu0 0.0
      %3331 = vmatpush1.msra.mxu0 0.0
      %3332 = vmatprep.subr.mxu0 0.0
      %3333 = vmatpush1.msra.mxu0 0.0
      %3334 = vmatprep.subr.mxu0 0.0
      %3335 = vmatpush1.msra.mxu0 0.0
      %3336 = vmatprep.subr.mxu0 0.0
      %3337 = vmatpush1.msra.mxu0 0.0
      %3338 = vmatprep.subr.mxu0 0.0
      %3339 = vmatpush1.msra.mxu0 0.0
      %3340 = vmatprep.subr.mxu0 0.0
      %3341 = vmatpush1.msra.mxu0 0.0
      %3342 = vmatprep.subr.mxu0 0.0
      %3343 = vmatpush1.msra.mxu0 0.0
      %3344 = vmatprep.subr.mxu0 0.0
      %3345 = vmatpush1.msra.mxu0 0.0
      %3346 = vmatprep.subr.mxu0 0.0
      %3347 = vmatpush1.msra.mxu0 0.0
      %3348 = vmatprep.mubr.f32.mxu0 0.0
      %3349 = vmatmul.mubr.f32.gmra.mrb[0].mxu0 %v3273
      %v3350 = vpop.f32.mrb[0].mxu0
      %v3351 = vadd.f32 %v3271, %v3350
      %v3352 = vpop.f32.mrb[0].mxu0
      %3353 = vmatprep.mubr.f32.mxu0 0.0
      %3354 = vmatmul.mubr.f32.gmra.mrb[0].mxu0 %v3276
      %v3355 = vpop.f32.mrb[0].mxu0
      %v3356 = vadd.f32 %v3271, %v3355
      %v3357 = vpop.f32.mrb[0].mxu0
      %3358 = vmatprep.mubr.f32.mxu0 0.0
      %3359 = vmatmul.mubr.f32.gmra.mrb[0].mxu0 %v3279
      %v3360 = vpop.f32.mrb[0].mxu0
      %v3361 = vadd.f32 %v3271, %v3360
      %v3362 = vpop.f32.mrb[0].mxu0
      %3363 = vmatprep.mubr.f32.mxu0 0.0
      %3364 = vmatmul.mubr.f32.gmra.mrb[0].mxu0 %v3282
      %v3365 = vpop.f32.mrb[0].mxu0
      %v3366 = vadd.f32 %v3271, %v3365
      %v3367 = vpop.f32.mrb[0].mxu0
      %3368 = vdwg.mxu0
      %v3369 = vmul.f32 %v3351, 0.5
      %v3370 = vmul.f32 %v3356, 0.5
      %v3371 = vmul.f32 %v3361, 0.5
      %v3372 = vmul.f32 %v3366, 0.5
      %v3373 = vmul.f32 %v3351, 0.70710677
      %v3374 = vmul.f32 %v3356, 0.70710677
      %v3375 = vmul.f32 %v3361, 0.70710677
      %v3376 = vmul.f32 %v3366, 0.70710677
      %v3377 = verf.f32.pop %v3373
      %v3378 = verf.f32.pop %v3374
      %v3379 = verf.f32.pop %v3375
      %v3380 = verf.f32.pop %v3376
      %v3381 = vadd.f32 %v3377, 1.0
      %v3382 = vadd.f32 %v3378, 1.0
      %v3383 = vadd.f32 %v3379, 1.0
      %v3384 = vadd.f32 %v3380, 1.0
      %v3385 = vmul.f32 %v3369, %v3381
      %v3386 = vmul.f32 %v3370, %v3382
      %v3387 = vmul.f32 %v3371, %v3383
      %v3388 = vmul.f32 %v3372, %v3384
      %v3389 = vld [vmem:[%s3] sm:$0xff]
      %v3390 = vld [vmem:[%s3 + $0x8] sm:$0xff]
      %v3391 = vld [vmem:[%s3 + $0x10] sm:$0xff]
      %v3392 = vld [vmem:[%s3 + $0x18] sm:$0xff]
      %v3393 = vld [vmem:[%s3 + $0x20] sm:$0xff]
      %v3394 = vld [vmem:[%s3 + $0x28] sm:$0xff]
      %v3395 = vld [vmem:[%s3 + $0x30] sm:$0xff]
      %v3396 = vld [vmem:[%s3 + $0x38] sm:$0xff]
      %v3397 = vld [vmem:[%s3 + $0x40] sm:$0xff]
      %v3398 = vld [vmem:[%s3 + $0x48] sm:$0xff]
      %v3399 = vld [vmem:[%s3 + $0x50] sm:$0xff]
      %v3400 = vld [vmem:[%s3 + $0x58] sm:$0xff]
      %v3401 = vld [vmem:[%s3 + $0x60] sm:$0xff]
      %v3402 = vld [vmem:[%s3 + $0x68] sm:$0xff]
      %v3403 = vld [vmem:[%s3 + $0x70] sm:$0xff]
      %v3404 = vld [vmem:[%s3 + $0x78] sm:$0xff]
      %v3405 = vlaneseq
      %v3406 = vshrl.u32 %v3405, 7
      %v3407 = vsub.s32 3, %v3406
      %v3408 = vrot.slane %v232, %v3407
      %3409 = vmatprep.subr.mxu0 0.0
      %3410 = vmatpush1.msra.mxu0 %v3389
      %3411 = vmatprep.subr.mxu0 0.0
      %3412 = vmatpush1.msra.mxu0 %v3390
      %3413 = vmatprep.subr.mxu0 0.0
      %3414 = vmatpush1.msra.mxu0 %v3391
      %3415 = vmatprep.subr.mxu0 0.0
      %3416 = vmatpush1.msra.mxu0 %v3392
      %3417 = vmatprep.subr.mxu0 0.0
      %3418 = vmatpush1.msra.mxu0 %v3393
      %3419 = vmatprep.subr.mxu0 0.0
      %3420 = vmatpush1.msra.mxu0 %v3394
      %3421 = vmatprep.subr.mxu0 0.0
      %3422 = vmatpush1.msra.mxu0 %v3395
      %3423 = vmatprep.subr.mxu0 0.0
      %3424 = vmatpush1.msra.mxu0 %v3396
      %3425 = vmatprep.subr.mxu0 0.0
      %3426 = vmatpush1.msra.mxu0 %v3397
      %3427 = vmatprep.subr.mxu0 0.0
      %3428 = vmatpush1.msra.mxu0 %v3398
      %3429 = vmatprep.subr.mxu0 0.0
      %3430 = vmatpush1.msra.mxu0 %v3399
      %3431 = vmatprep.subr.mxu0 0.0
      %3432 = vmatpush1.msra.mxu0 %v3400
      %3433 = vmatprep.subr.mxu0 0.0
      %3434 = vmatpush1.msra.mxu0 %v3401
      %3435 = vmatprep.subr.mxu0 0.0
      %3436 = vmatpush1.msra.mxu0 %v3402
      %3437 = vmatprep.subr.mxu0 0.0
      %3438 = vmatpush1.msra.mxu0 %v3403
      %3439 = vmatprep.subr.mxu0 0.0
      %3440 = vmatpush1.msra.mxu0 %v3404
      %3441 = vmatprep.subr.mxu0 0.0
      %3442 = vmatpush1.msra.mxu0 0.0
      %3443 = vmatprep.subr.mxu0 0.0
      %3444 = vmatpush1.msra.mxu0 0.0
      %3445 = vmatprep.subr.mxu0 0.0
      %3446 = vmatpush1.msra.mxu0 0.0
      %3447 = vmatprep.subr.mxu0 0.0
      %3448 = vmatpush1.msra.mxu0 0.0
      %3449 = vmatprep.subr.mxu0 0.0
      %3450 = vmatpush1.msra.mxu0 0.0
      %3451 = vmatprep.subr.mxu0 0.0
      %3452 = vmatpush1.msra.mxu0 0.0
      %3453 = vmatprep.subr.mxu0 0.0
      %3454 = vmatpush1.msra.mxu0 0.0
      %3455 = vmatprep.subr.mxu0 0.0
      %3456 = vmatpush1.msra.mxu0 0.0
      %3457 = vmatprep.subr.mxu0 0.0
      %3458 = vmatpush1.msra.mxu0 0.0
      %3459 = vmatprep.subr.mxu0 0.0
      %3460 = vmatpush1.msra.mxu0 0.0
      %3461 = vmatprep.subr.mxu0 0.0
      %3462 = vmatpush1.msra.mxu0 0.0
      %3463 = vmatprep.subr.mxu0 0.0
      %3464 = vmatpush1.msra.mxu0 0.0
      %3465 = vmatprep.subr.mxu0 0.0
      %3466 = vmatpush1.msra.mxu0 0.0
      %3467 = vmatprep.subr.mxu0 0.0
      %3468 = vmatpush1.msra.mxu0 0.0
      %3469 = vmatprep.subr.mxu0 0.0
      %3470 = vmatpush1.msra.mxu0 0.0
      %3471 = vmatprep.subr.mxu0 0.0
      %3472 = vmatpush1.msra.mxu0 0.0
      %3473 = vmatprep.mubr.f32.mxu0 0.0
      %3474 = vmatmul.mubr.f32.gmra.mrb[0].mxu0 %v3385
      %v3475 = vpop.f32.mrb[0].mxu0
      %v3476 = vadd.f32 %v3408, %v3475
      %v3477 = vpop.f32.mrb[0].mxu0
      %3478 = vmatprep.mubr.f32.mxu0 0.0
      %3479 = vmatmul.mubr.f32.gmra.mrb[0].mxu0 %v3386
      %v3480 = vpop.f32.mrb[0].mxu0
      %v3481 = vadd.f32 %v3408, %v3480
      %v3482 = vpop.f32.mrb[0].mxu0
      %3483 = vmatprep.mubr.f32.mxu0 0.0
      %3484 = vmatmul.mubr.f32.gmra.mrb[0].mxu0 %v3387
      %v3485 = vpop.f32.mrb[0].mxu0
      %v3486 = vadd.f32 %v3408, %v3485
      %v3487 = vpop.f32.mrb[0].mxu0
      %3488 = vmatprep.mubr.f32.mxu0 0.0
      %3489 = vmatmul.mubr.f32.gmra.mrb[0].mxu0 %v3388
      %v3490 = vpop.f32.mrb[0].mxu0
      %v3491 = vadd.f32 %v3408, %v3490
      %v3492 = vpop.f32.mrb[0].mxu0
      %3493 = vdwg.mxu0
      %v3494 = vadd.f32 %v3208, %v3476
      %v3495 = vadd.f32 %v3209, %v3481
      %v3496 = vadd.f32 %v3210, %v3486
      %v3497 = vadd.f32 %v3211, %v3491
      %3498 = vst.msk [vmem:[%s226] sm:$0xff] %vm237, %v3494
      %3499 = vst.msk [vmem:[%s226 + $0x8] sm:$0xff] %vm237, %v3495
      %3500 = vst.msk [vmem:[%s226 + $0x10] sm:$0xff] %vm237, %v3496
      %3501 = vst.msk [vmem:[%s226 + $0x18] sm:$0xff] %vm237, %v3497
      %s3502 = smul.u32 4, %s16
      %p3503 = scmp.lt.s32.totalorder %s3502, 7
      %s3504 = scalar_select %p3503, %s3502, 7
      %s3505 = smul.addr %s3504, 8
      %s3506 = scalar_lea.vmem %s5, %s3505
      // Predicated region
      $region41: #{tpu_custom_call.1} parent=39 // pred_check
        %p3507 = pneg %p144
      $region42: #{tpu_custom_call.1} parent=39 // pred_check_branch
        %3509 = sbr.rel (%p3507) target = $region44
      $region43: #{tpu_custom_call.1} parent=39 // pred_region
        %s3510 = smul.u32 4, %s16
      $region44: #{tpu_custom_call.1} parent=39 // pred_fallthru
        _
    $region40: #{tpu_custom_call.1} parent=5 // pred_fallthru
      _
    %p3511 = scmp.le.s32.totalorder 2, %s11
    // Predicated region
    $region45: #{tpu_custom_call.1} parent=5 // pred_check
      %p3512 = pneg %p3511
    $region46: #{tpu_custom_call.1} parent=5 // pred_check_branch
      %3514 = sbr.rel (%p3512) target = $region48
    $region47: #{tpu_custom_call.1} parent=5 // pred_region
      %s3515 = ssub.s32 %s11, 2
      // Predicated region
      $region49: #{tpu_custom_call.1} parent=47 // pred_check
        %p3516 = pneg %p150
      $region50: #{tpu_custom_call.1} parent=47 // pred_check_branch
        %3518 = sbr.rel (%p3516) target = $region52
      $region51: #{tpu_custom_call.1} parent=47 // pred_region
        %s3519 = smul.u32 4, %s17
        %p3520 = scmp.lt.s32.totalorder %s3519, 7
        %s3521 = scalar_select %p3520, %s3519, 7
        %s3522 = smul.addr %s3521, 8
        %s3523 = scalar_lea.vmem %s5, %s3522
      $region52: #{tpu_custom_call.1} parent=47 // pred_fallthru
        _
    $region48: #{tpu_custom_call.1} parent=5 // pred_fallthru
      _
  $region6: #{tpu_custom_call.1} parent=0 // loop_footer
    %s15 = sadd.s32 1, %s11
  $region7: #{tpu_custom_call.1} parent=0 // loop_footer_branch
    %10 = sbr.rel target = $region3
  $region8: #{tpu_custom_call.1} parent=0 // loop_exit
    _

</llo_original>
